<compile_context>
chip_gen: v6e
topology: v6e:2x2x1
jax: 0.10.0
libtpu: 0.0.40
codegen_flags: <defaults>
</compile_context>

<pallas_src>
import functools
from math import sqrt

import jax
import jax.numpy as jnp
from jax import lax
from jax.experimental import pallas as pl
from jax.experimental.pallas import tpu as pltpu


def _make_fused_lstm_ae_kernel(seq, batch, n_features, hidden,
                               n_enc_layers, n_dec_layers, compute_dtype):
    """Build a kernel that runs the full encoder+decoder stacked LSTM."""
    H = hidden
    L = n_enc_layers + n_dec_layers
    # Fully unroll short time loops; cap unrolling for long sequences.
    unroll = True if seq <= 64 else 8

    def kernel(*refs):
        x_ref = refs[0]                                   # (B, S, F) f32, batch-first
        w_refs = refs[1:1 + 3 * L]                        # per layer: W_ih^T, W_hh^T, bias
        (enc_y_ref, enc_hn_ref, enc_cn_ref,
         dec_y_ref, dec_hn_ref, dec_cn_ref) = refs[1 + 3 * L:1 + 3 * L + 6]
        seq_scr, gx_scr = refs[1 + 3 * L + 6:]            # VMEM scratch

        for l in range(L):                                # statically unrolled layer loop
            wih = w_refs[3 * l][...]                      # (in_l, 4H) compute_dtype
            whh = w_refs[3 * l + 1][...]                  # (H,    4H) compute_dtype
            b = w_refs[3 * l + 2][...]                    # (1,    4H) f32

            if l == 0:
                in_dim = n_features
                x_in = x_ref[...]                         # (B, S, F)
            else:
                in_dim = H
                x_in = seq_scr[...]                       # previous layer's output (B, S, H)

            # ---- Hoisted input projection: one MXU matmul for all timesteps.
            x2 = x_in.reshape(batch * seq, in_dim).astype(compute_dtype)
            gx = jnp.dot(x2, wih, preferred_element_type=jnp.float32) + b
            gx_scr[...] = gx.reshape(batch, seq, 4 * H)   # (B, S, 4H) f32

            # ---- Recurrence: only h @ W_hh^T on the sequential path.
            def step(t, carry):
                h, c = carry                              # f32 (B, H)
                gx_t = gx_scr[:, pl.ds(t, 1), :].reshape(batch, 4 * H)
                gates = gx_t + jnp.dot(h.astype(compute_dtype), whh,
                                       preferred_element_type=jnp.float32)
                # PyTorch gate order: i, f, g, o.  (With H not a multiple of 128
                # these slices are sub-vreg lane extracts; unavoidable w/o padding H.)
                i_g = jax.nn.sigmoid(gates[:, 0 * H:1 * H])
                f_g = jax.nn.sigmoid(gates[:, 1 * H:2 * H])
                g_g = jnp.tanh(gates[:, 2 * H:3 * H])
                o_g = jax.nn.sigmoid(gates[:, 3 * H:4 * H])
                c_new = f_g * c + i_g * g_g
                h_new = o_g * jnp.tanh(c_new)
                seq_scr[:, pl.ds(t, 1), :] = h_new.reshape(batch, 1, H)
                return (h_new, c_new)

            h0 = jnp.zeros((batch, H), jnp.float32)       # PyTorch zero init (h0, c0)
            c0 = jnp.zeros((batch, H), jnp.float32)
            h_n, c_n = lax.fori_loop(0, seq, step, (h0, c0), unroll=unroll)

            # ---- Final states written once per layer (not per timestep).
            if l < n_enc_layers:
                enc_hn_ref[l] = h_n
                enc_cn_ref[l] = c_n
                if l == n_enc_layers - 1:
                    enc_y_ref[...] = seq_scr[...]         # encoder output sequence
            else:
                dl = l - n_enc_layers
                dec_hn_ref[dl] = h_n
                dec_cn_ref[dl] = c_n
                if dl == n_dec_layers - 1:
                    dec_y_ref[...] = seq_scr[...]         # decoder output sequence

            # TODO(synk): inter-layer dropout (training-mode only in PyTorch) not applied.

    return kernel


@functools.partial(jax.jit, static_argnames=("compute_dtype",))
def global_ae_forward(ts_batch, enc_params, dec_params, compute_dtype=jnp.bfloat16):
    """Fused forward pass of global_AE. ts_batch: (batch, seq, n_features)."""
    batch, seq, n_features = ts_batch.shape
    H = enc_params[0]["w_hh"].shape[1]
    L_enc, L_dec = len(enc_params), len(dec_params)
    all_params = list(enc_params) + list(dec_params)

    inputs = [ts_batch.astype(jnp.float32)]
    in_specs = [pl.BlockSpec((batch, seq, n_features), lambda i: (0, 0, 0))]
    for p in all_params:
        # Pre-transpose to (in, 4H)/(H, 4H); cast matmul operands to bf16,
        # keep the combined bias in f32 (added post fp32 accumulation).
        wih_t = jnp.asarray(p["w_ih"], jnp.float32).T.astype(compute_dtype)
        whh_t = jnp.asarray(p["w_hh"], jnp.float32).T.astype(compute_dtype)
        bias = (jnp.asarray(p["b_ih"], jnp.float32)
                + jnp.asarray(p["b_hh"], jnp.float32)).reshape(1, 4 * H)
        inputs += [wih_t, whh_t, bias]
        in_specs += [
            pl.BlockSpec(wih_t.shape, lambda i: (0, 0)),
            pl.BlockSpec(whh_t.shape, lambda i: (0, 0)),
            pl.BlockSpec(bias.shape, lambda i: (0, 0)),
        ]

    out_shape = (
        jax.ShapeDtypeStruct((batch, seq, H), jnp.float32),    # enc outputs
        jax.ShapeDtypeStruct((L_enc, batch, H), jnp.float32),  # enc h_n
        jax.ShapeDtypeStruct((L_enc, batch, H), jnp.float32),  # enc c_n
        jax.ShapeDtypeStruct((batch, seq, H), jnp.float32),    # dec outputs
        jax.ShapeDtypeStruct((L_dec, batch, H), jnp.float32),  # dec h_n
        jax.ShapeDtypeStruct((L_dec, batch, H), jnp.float32),  # dec c_n
    )
    out_specs = [
        pl.BlockSpec((batch, seq, H), lambda i: (0, 0, 0)),
        pl.BlockSpec((L_enc, batch, H), lambda i: (0, 0, 0)),
        pl.BlockSpec((L_enc, batch, H), lambda i: (0, 0, 0)),
        pl.BlockSpec((batch, seq, H), lambda i: (0, 0, 0)),
        pl.BlockSpec((L_dec, batch, H), lambda i: (0, 0, 0)),
        pl.BlockSpec((L_dec, batch, H), lambda i: (0, 0, 0)),
    ]

    kernel = _make_fused_lstm_ae_kernel(seq, batch, n_features, H,
                                        L_enc, L_dec, compute_dtype)

    outs = pl.pallas_call(
        kernel,
        out_shape=out_shape,
        grid_spec=pltpu.PrefetchScalarGridSpec(
            num_scalar_prefetch=0,
            grid=(1,),                                   # single invocation; time loop is in-kernel
            in_specs=in_specs,
            out_specs=out_specs,
            scratch_shapes=[
                pltpu.VMEM((batch, seq, H), jnp.float32),       # current layer output seq
                pltpu.VMEM((batch, seq, 4 * H), jnp.float32),   # hoisted x-projection (all t)
            ],
        ),
        compiler_params=pltpu.CompilerParams(
            dimension_semantics=("arbitrary",),
        ),
    )(*inputs)

    enc_y, enc_hn, enc_cn, dec_y, dec_hn, dec_cn = outs
    return (enc_y, (enc_hn, enc_cn)), (dec_y, (dec_hn, dec_cn))


def _init_lstm_params(key, input_size, hidden_size, num_layers):
    """Deterministic init matching PyTorch LSTM param shapes (uniform +-1/sqrt(H))."""
    k = 1.0 / sqrt(hidden_size)
    params = []
    for layer in range(num_layers):
        in_sz = input_size if layer == 0 else hidden_size
        key, k1, k2, k3, k4 = jax.random.split(key, 5)
        params.append(dict(
            w_ih=jax.random.uniform(k1, (4 * hidden_size, in_sz), jnp.float32, -k, k),
            w_hh=jax.random.uniform(k2, (4 * hidden_size, hidden_size), jnp.float32, -k, k),
            b_ih=jax.random.uniform(k3, (4 * hidden_size,), jnp.float32, -k, k),
            b_hh=jax.random.uniform(k4, (4 * hidden_size,), jnp.float32, -k, k),
        ))
    return params


class GlobalAE:
    """JAX/Pallas port of global_AE: encoder LSTM + decoder LSTM (one fused kernel)."""

    def __init__(self, n_features, hidden_size, n_layers, dropout, key,
                 compute_dtype=jnp.bfloat16):
        self.hidden_size = hidden_size
        self.n_features = n_features
        self.n_layers = n_layers
        self.dropout = dropout   # TODO(synk): dropout is training-only in PyTorch; not applied here.
        self.compute_dtype = compute_dtype
        k_enc, k_dec = jax.random.split(key)
        self.enc_params = _init_lstm_params(k_enc, n_features, hidden_size, n_layers[0])
        self.dec_params = _init_lstm_params(k_dec, hidden_size, hidden_size, n_layers[1])

    def __call__(self, ts_batch):
        return global_ae_forward(ts_batch, self.enc_params, self.dec_params,
                                 compute_dtype=self.compute_dtype)


def _lstm_reference(x_bf, layer_params):
    """Pure-JAX (lax.scan) stacked-LSTM reference with PyTorch semantics."""
    y = x_bf.astype(jnp.float32)
    h_list, c_list = [], []
    for p in layer_params:
        w_ih, w_hh = p["w_ih"], p["w_hh"]
        b = p["b_ih"] + p["b_hh"]
        H = w_hh.shape[1]
        B = y.shape[0]
        x_tm = jnp.swapaxes(y, 0, 1)                      # (S, B, in)

        def step(carry, x_t, w_ih=w_ih, w_hh=w_hh, b=b, H=H):
            h, c = carry
            gates = x_t @ w_ih.T + h @ w_hh.T + b
            i = jax.nn.sigmoid(gates[:, 0 * H:1 * H])
            f = jax.nn.sigmoid(gates[:, 1 * H:2 * H])
            g = jnp.tanh(gates[:, 2 * H:3 * H])
            o = jax.nn.sigmoid(gates[:, 3 * H:4 * H])
            c = f * c + i * g
            h = o * jnp.tanh(c)
            return (h, c), h

        init = (jnp.zeros((B, H), jnp.float32), jnp.zeros((B, H), jnp.float32))
        (h_n, c_n), y_tm = lax.scan(step, init, x_tm)
        y = jnp.swapaxes(y_tm, 0, 1)
        h_list.append(h_n)
        c_list.append(c_n)
    return y, (jnp.stack(h_list, axis=0), jnp.stack(c_list, axis=0))


if __name__ == "__main__":
    key = jax.random.PRNGKey(0)
    k_params, k_data = jax.random.split(key)

    batch, seq, n_features, hidden = 2, 8, 4, 32
    model = GlobalAE(n_features=n_features, hidden_size=hidden,
                     n_layers=[1, 1], dropout=[0.0, 0.0], key=k_params)

    ts_batch = jax.random.normal(k_data, (batch, seq, n_features), jnp.float32)

    # Default (bf16-matmul) fused kernel.
    (enc_out, (enc_h, enc_c)), (dec_out, (dec_h, dec_c)) = model(ts_batch)
    jax.block_until_ready((enc_out, enc_h, enc_c, dec_out, dec_h, dec_c))

    assert enc_out.shape == (batch, seq, hidden)
    assert enc_h.shape == (1, batch, hidden) and enc_c.shape == (1, batch, hidden)
    assert dec_out.shape == (batch, seq, hidden)
    assert dec_h.shape == (1, batch, hidden) and dec_c.shape == (1, batch, hidden)
    assert bool(jnp.all(jnp.isfinite(enc_out))) and bool(jnp.all(jnp.isfinite(dec_out)))

    # Numerical check of the fused kernel in exact (fp32-matmul) mode vs a pure-JAX reference.
    (enc_o32, (enc_h32, enc_c32)), (dec_o32, (dec_h32, dec_c32)) = global_ae_forward(
        ts_batch, model.enc_params, model.dec_params, compute_dtype=jnp.float32)
    with jax.default_matmul_precision("highest"):
        ref_enc_y, (ref_enc_h, ref_enc_c) = _lstm_reference(ts_batch, model.enc_params)
        ref_dec_y, (ref_dec_h, ref_dec_c) = _lstm_reference(ref_enc_y, model.dec_params)
    for got, want in [(enc_o32, ref_enc_y), (enc_h32, ref_enc_h), (enc_c32, ref_enc_c),
                      (dec_o32, ref_dec_y), (dec_h32, ref_dec_h), (dec_c32, ref_dec_c)]:
        assert float(jnp.max(jnp.abs(got - want))) < 1e-2

    print("KERNEL_OK")
</pallas_src>

<mosaic_0001>
module attributes {stable_mosaic.version = 11 : i64} {
  func.func @kernel(%arg0: i32, %arg1: memref<2x8x4xf32, #tpu.memory_space<vmem>>, %arg2: memref<4x128xbf16, #tpu.memory_space<vmem>>, %arg3: memref<32x128xbf16, #tpu.memory_space<vmem>>, %arg4: memref<1x128xf32, #tpu.memory_space<vmem>>, %arg5: memref<32x128xbf16, #tpu.memory_space<vmem>>, %arg6: memref<32x128xbf16, #tpu.memory_space<vmem>>, %arg7: memref<1x128xf32, #tpu.memory_space<vmem>>, %arg8: memref<2x8x32xf32, #tpu.memory_space<vmem>>, %arg9: memref<1x2x32xf32, #tpu.memory_space<vmem>>, %arg10: memref<1x2x32xf32, #tpu.memory_space<vmem>>, %arg11: memref<2x8x32xf32, #tpu.memory_space<vmem>>, %arg12: memref<1x2x32xf32, #tpu.memory_space<vmem>>, %arg13: memref<1x2x32xf32, #tpu.memory_space<vmem>>, %arg14: memref<2x8x32xf32, #tpu.memory_space<vmem>>, %arg15: memref<2x8x128xf32, #tpu.memory_space<vmem>>) attributes {dimension_semantics = [#tpu.dimension_semantics<arbitrary>], iteration_bounds = array<i64: 1>, scalar_prefetch = 0 : i64, scratch_operands = 2 : i64, tpu.core_type = #tpu.core_type<tc>, window_params = [{pipeline_mode = #tpu.pipeline_mode<synchronous>, transform_indices = @transform_0, window_bounds = array<i64: 2, 8, 4>}, {pipeline_mode = #tpu.pipeline_mode<synchronous>, transform_indices = @transform_1, window_bounds = array<i64: 4, 128>}, {pipeline_mode = #tpu.pipeline_mode<synchronous>, transform_indices = @transform_2, window_bounds = array<i64: 32, 128>}, {pipeline_mode = #tpu.pipeline_mode<synchronous>, transform_indices = @transform_3, window_bounds = array<i64: 1, 128>}, {pipeline_mode = #tpu.pipeline_mode<synchronous>, transform_indices = @transform_4, window_bounds = array<i64: 32, 128>}, {pipeline_mode = #tpu.pipeline_mode<synchronous>, transform_indices = @transform_5, window_bounds = array<i64: 32, 128>}, {pipeline_mode = #tpu.pipeline_mode<synchronous>, transform_indices = @transform_6, window_bounds = array<i64: 1, 128>}, {pipeline_mode = #tpu.pipeline_mode<synchronous>, transform_indices = @transform_7, window_bounds = array<i64: 2, 8, 32>}, {pipeline_mode = #tpu.pipeline_mode<synchronous>, transform_indices = @transform_8, window_bounds = array<i64: 1, 2, 32>}, {pipeline_mode = #tpu.pipeline_mode<synchronous>, transform_indices = @transform_9, window_bounds = array<i64: 1, 2, 32>}, {pipeline_mode = #tpu.pipeline_mode<synchronous>, transform_indices = @transform_10, window_bounds = array<i64: 2, 8, 32>}, {pipeline_mode = #tpu.pipeline_mode<synchronous>, transform_indices = @transform_11, window_bounds = array<i64: 1, 2, 32>}, {pipeline_mode = #tpu.pipeline_mode<synchronous>, transform_indices = @transform_12, window_bounds = array<i64: 1, 2, 32>}]} {
    %c0 = arith.constant 0 : index
    %c0_0 = arith.constant 0 : index
    %0 = vector.load %arg2[%c0, %c0_0] : memref<4x128xbf16, #tpu.memory_space<vmem>>, vector<4x128xbf16>
    %c0_1 = arith.constant 0 : index
    %c0_2 = arith.constant 0 : index
    %1 = vector.load %arg3[%c0_1, %c0_2] : memref<32x128xbf16, #tpu.memory_space<vmem>>, vector<32x128xbf16>
    %c0_3 = arith.constant 0 : index
    %c0_4 = arith.constant 0 : index
    %2 = vector.load %arg4[%c0_3, %c0_4] : memref<1x128xf32, #tpu.memory_space<vmem>>, vector<1x128xf32>
    %c0_5 = arith.constant 0 : index
    %c0_6 = arith.constant 0 : index
    %c0_7 = arith.constant 0 : index
    %3 = vector.load %arg1[%c0_5, %c0_6, %c0_7] : memref<2x8x4xf32, #tpu.memory_space<vmem>>, vector<2x8x4xf32>
    %4 = vector.shape_cast %3 : vector<2x8x4xf32> to vector<16x4xf32>
    %5 = arith.truncf %4 : vector<16x4xf32> to vector<16x4xbf16>
    %cst = arith.constant dense<0.000000e+00> : vector<16x128xf32>
    %6 = tpu.matmul %5, %0, %cst {dimension_numbers = #tpu.dot_dimension_numbers<[1], [0], [0], [1], [0, 0, 1, 1], [], []>} : vector<16x4xbf16>, vector<4x128xbf16>, vector<16x128xf32> -> vector<16x128xf32>
    %7 = vector.broadcast %2 : vector<1x128xf32> to vector<16x128xf32>
    %8 = arith.addf %6, %7 : vector<16x128xf32>
    %9 = vector.shape_cast %8 : vector<16x128xf32> to vector<2x8x128xf32>
    %c0_8 = arith.constant 0 : index
    %c0_9 = arith.constant 0 : index
    %c0_10 = arith.constant 0 : index
    %10 = vector.load %arg15[%c0_8, %c0_9, %c0_10] : memref<2x8x128xf32, #tpu.memory_space<vmem>>, vector<2x8x128xf32>
    tpu.vector_store %arg15[%c0_8, %c0_9, %c0_10], %9 {strides = array<i32>} : memref<2x8x128xf32, #tpu.memory_space<vmem>>, vector<2x8x128xf32>,
    %cst_11 = arith.constant 0.000000e+00 : f32
    %11 = vector.broadcast %cst_11 : f32 to vector<2x32xf32>
    %cst_12 = arith.constant 0.000000e+00 : f32
    %12 = vector.broadcast %cst_12 : f32 to vector<2x32xf32>
    %c0_i32 = arith.constant 0 : i32
    %c0_13 = arith.constant 0 : index
    %13 = arith.index_cast %c0_i32 : i32 to index
    %c0_14 = arith.constant 0 : index
    %14 = vector.load %arg15[%c0_13, %13, %c0_14] : memref<2x8x128xf32, #tpu.memory_space<vmem>>, vector<2x1x128xf32>
    %15 = vector.shape_cast %14 : vector<2x1x128xf32> to vector<2x128xf32>
    %16 = arith.truncf %11 : vector<2x32xf32> to vector<2x32xbf16>
    %cst_15 = arith.constant dense<0.000000e+00> : vector<2x128xf32>
    %17 = tpu.matmul %16, %1, %cst_15 {dimension_numbers = #tpu.dot_dimension_numbers<[1], [0], [0], [1], [0, 0, 1, 1], [], []>} : vector<2x32xbf16>, vector<32x128xbf16>, vector<2x128xf32> -> vector<2x128xf32>
    %18 = arith.addf %15, %17 : vector<2x128xf32>
    %19 = vector.extract_strided_slice %18 {offsets = [0, 0], sizes = [2, 32], strides = [1, 1]} : vector<2x128xf32> to vector<2x32xf32>
    %20 = arith.negf %19 : vector<2x32xf32>
    %21 = math.exp %20 : vector<2x32xf32>
    %cst_16 = arith.constant 1.000000e+00 : f32
    %22 = vector.broadcast %cst_16 : f32 to vector<2x32xf32>
    %23 = arith.addf %22, %21 : vector<2x32xf32>
    %24 = arith.divf %22, %23 : vector<2x32xf32>
    %25 = vector.extract_strided_slice %18 {offsets = [0, 32], sizes = [2, 32], strides = [1, 1]} : vector<2x128xf32> to vector<2x32xf32>
    %26 = arith.negf %25 : vector<2x32xf32>
    %27 = math.exp %26 : vector<2x32xf32>
    %cst_17 = arith.constant 1.000000e+00 : f32
    %28 = vector.broadcast %cst_17 : f32 to vector<2x32xf32>
    %29 = arith.addf %28, %27 : vector<2x32xf32>
    %30 = arith.divf %28, %29 : vector<2x32xf32>
    %31 = vector.extract_strided_slice %18 {offsets = [0, 64], sizes = [2, 32], strides = [1, 1]} : vector<2x128xf32> to vector<2x32xf32>
    %32 = math.tanh %31 : vector<2x32xf32>
    %33 = vector.extract_strided_slice %18 {offsets = [0, 96], sizes = [2, 32], strides = [1, 1]} : vector<2x128xf32> to vector<2x32xf32>
    %34 = arith.negf %33 : vector<2x32xf32>
    %35 = math.exp %34 : vector<2x32xf32>
    %cst_18 = arith.constant 1.000000e+00 : f32
    %36 = vector.broadcast %cst_18 : f32 to vector<2x32xf32>
    %37 = arith.addf %36, %35 : vector<2x32xf32>
    %38 = arith.divf %36, %37 : vector<2x32xf32>
    %39 = arith.mulf %30, %12 : vector<2x32xf32>
    %40 = arith.mulf %24, %32 : vector<2x32xf32>
    %41 = arith.addf %39, %40 : vector<2x32xf32>
    %42 = math.tanh %41 : vector<2x32xf32>
    %43 = arith.mulf %38, %42 : vector<2x32xf32>
    %44 = vector.shape_cast %43 : vector<2x32xf32> to vector<2x1x32xf32>
    %c0_19 = arith.constant 0 : index
    %45 = arith.index_cast %c0_i32 : i32 to index
    %c0_20 = arith.constant 0 : index
    %46 = vector.load %arg14[%c0_19, %45, %c0_20] : memref<2x8x32xf32, #tpu.memory_space<vmem>>, vector<2x1x32xf32>
    tpu.vector_store %arg14[%c0_19, %45, %c0_20], %44 {strides = array<i32>} : memref<2x8x32xf32, #tpu.memory_space<vmem>>, vector<2x1x32xf32>,
    %c1_i32 = arith.constant 1 : i32
    %c0_21 = arith.constant 0 : index
    %47 = arith.index_cast %c1_i32 : i32 to index
    %c0_22 = arith.constant 0 : index
    %48 = vector.load %arg15[%c0_21, %47, %c0_22] : memref<2x8x128xf32, #tpu.memory_space<vmem>>, vector<2x1x128xf32>
    %49 = vector.shape_cast %48 : vector<2x1x128xf32> to vector<2x128xf32>
    %50 = arith.truncf %43 : vector<2x32xf32> to vector<2x32xbf16>
    %cst_23 = arith.constant dense<0.000000e+00> : vector<2x128xf32>
    %51 = tpu.matmul %50, %1, %cst_23 {dimension_numbers = #tpu.dot_dimension_numbers<[1], [0], [0], [1], [0, 0, 1, 1], [], []>} : vector<2x32xbf16>, vector<32x128xbf16>, vector<2x128xf32> -> vector<2x128xf32>
    %52 = arith.addf %49, %51 : vector<2x128xf32>
    %53 = vector.extract_strided_slice %52 {offsets = [0, 0], sizes = [2, 32], strides = [1, 1]} : vector<2x128xf32> to vector<2x32xf32>
    %54 = arith.negf %53 : vector<2x32xf32>
    %55 = math.exp %54 : vector<2x32xf32>
    %cst_24 = arith.constant 1.000000e+00 : f32
    %56 = vector.broadcast %cst_24 : f32 to vector<2x32xf32>
    %57 = arith.addf %56, %55 : vector<2x32xf32>
    %58 = arith.divf %56, %57 : vector<2x32xf32>
    %59 = vector.extract_strided_slice %52 {offsets = [0, 32], sizes = [2, 32], strides = [1, 1]} : vector<2x128xf32> to vector<2x32xf32>
    %60 = arith.negf %59 : vector<2x32xf32>
    %61 = math.exp %60 : vector<2x32xf32>
    %cst_25 = arith.constant 1.000000e+00 : f32
    %62 = vector.broadcast %cst_25 : f32 to vector<2x32xf32>
    %63 = arith.addf %62, %61 : vector<2x32xf32>
    %64 = arith.divf %62, %63 : vector<2x32xf32>
    %65 = vector.extract_strided_slice %52 {offsets = [0, 64], sizes = [2, 32], strides = [1, 1]} : vector<2x128xf32> to vector<2x32xf32>
    %66 = math.tanh %65 : vector<2x32xf32>
    %67 = vector.extract_strided_slice %52 {offsets = [0, 96], sizes = [2, 32], strides = [1, 1]} : vector<2x128xf32> to vector<2x32xf32>
    %68 = arith.negf %67 : vector<2x32xf32>
    %69 = math.exp %68 : vector<2x32xf32>
    %cst_26 = arith.constant 1.000000e+00 : f32
    %70 = vector.broadcast %cst_26 : f32 to vector<2x32xf32>
    %71 = arith.addf %70, %69 : vector<2x32xf32>
    %72 = arith.divf %70, %71 : vector<2x32xf32>
    %73 = arith.mulf %64, %41 : vector<2x32xf32>
    %74 = arith.mulf %58, %66 : vector<2x32xf32>
    %75 = arith.addf %73, %74 : vector<2x32xf32>
    %76 = math.tanh %75 : vector<2x32xf32>
    %77 = arith.mulf %72, %76 : vector<2x32xf32>
    %78 = vector.shape_cast %77 : vector<2x32xf32> to vector<2x1x32xf32>
    %c0_27 = arith.constant 0 : index
    %79 = arith.index_cast %c1_i32 : i32 to index
    %c0_28 = arith.constant 0 : index
    %80 = vector.load %arg14[%c0_27, %79, %c0_28] : memref<2x8x32xf32, #tpu.memory_space<vmem>>, vector<2x1x32xf32>
    tpu.vector_store %arg14[%c0_27, %79, %c0_28], %78 {strides = array<i32>} : memref<2x8x32xf32, #tpu.memory_space<vmem>>, vector<2x1x32xf32>,
    %c2_i32 = arith.constant 2 : i32
    %c0_29 = arith.constant 0 : index
    %81 = arith.index_cast %c2_i32 : i32 to index
    %c0_30 = arith.constant 0 : index
    %82 = vector.load %arg15[%c0_29, %81, %c0_30] : memref<2x8x128xf32, #tpu.memory_space<vmem>>, vector<2x1x128xf32>
    %83 = vector.shape_cast %82 : vector<2x1x128xf32> to vector<2x128xf32>
    %84 = arith.truncf %77 : vector<2x32xf32> to vector<2x32xbf16>
    %cst_31 = arith.constant dense<0.000000e+00> : vector<2x128xf32>
    %85 = tpu.matmul %84, %1, %cst_31 {dimension_numbers = #tpu.dot_dimension_numbers<[1], [0], [0], [1], [0, 0, 1, 1], [], []>} : vector<2x32xbf16>, vector<32x128xbf16>, vector<2x128xf32> -> vector<2x128xf32>
    %86 = arith.addf %83, %85 : vector<2x128xf32>
    %87 = vector.extract_strided_slice %86 {offsets = [0, 0], sizes = [2, 32], strides = [1, 1]} : vector<2x128xf32> to vector<2x32xf32>
    %88 = arith.negf %87 : vector<2x32xf32>
    %89 = math.exp %88 : vector<2x32xf32>
    %cst_32 = arith.constant 1.000000e+00 : f32
    %90 = vector.broadcast %cst_32 : f32 to vector<2x32xf32>
    %91 = arith.addf %90, %89 : vector<2x32xf32>
    %92 = arith.divf %90, %91 : vector<2x32xf32>
    %93 = vector.extract_strided_slice %86 {offsets = [0, 32], sizes = [2, 32], strides = [1, 1]} : vector<2x128xf32> to vector<2x32xf32>
    %94 = arith.negf %93 : vector<2x32xf32>
    %95 = math.exp %94 : vector<2x32xf32>
    %cst_33 = arith.constant 1.000000e+00 : f32
    %96 = vector.broadcast %cst_33 : f32 to vector<2x32xf32>
    %97 = arith.addf %96, %95 : vector<2x32xf32>
    %98 = arith.divf %96, %97 : vector<2x32xf32>
    %99 = vector.extract_strided_slice %86 {offsets = [0, 64], sizes = [2, 32], strides = [1, 1]} : vector<2x128xf32> to vector<2x32xf32>
    %100 = math.tanh %99 : vector<2x32xf32>
    %101 = vector.extract_strided_slice %86 {offsets = [0, 96], sizes = [2, 32], strides = [1, 1]} : vector<2x128xf32> to vector<2x32xf32>
    %102 = arith.negf %101 : vector<2x32xf32>
    %103 = math.exp %102 : vector<2x32xf32>
    %cst_34 = arith.constant 1.000000e+00 : f32
    %104 = vector.broadcast %cst_34 : f32 to vector<2x32xf32>
    %105 = arith.addf %104, %103 : vector<2x32xf32>
    %106 = arith.divf %104, %105 : vector<2x32xf32>
    %107 = arith.mulf %98, %75 : vector<2x32xf32>
    %108 = arith.mulf %92, %100 : vector<2x32xf32>
    %109 = arith.addf %107, %108 : vector<2x32xf32>
    %110 = math.tanh %109 : vector<2x32xf32>
    %111 = arith.mulf %106, %110 : vector<2x32xf32>
    %112 = vector.shape_cast %111 : vector<2x32xf32> to vector<2x1x32xf32>
    %c0_35 = arith.constant 0 : index
    %113 = arith.index_cast %c2_i32 : i32 to index
    %c0_36 = arith.constant 0 : index
    %114 = vector.load %arg14[%c0_35, %113, %c0_36] : memref<2x8x32xf32, #tpu.memory_space<vmem>>, vector<2x1x32xf32>
    tpu.vector_store %arg14[%c0_35, %113, %c0_36], %112 {strides = array<i32>} : memref<2x8x32xf32, #tpu.memory_space<vmem>>, vector<2x1x32xf32>,
    %c3_i32 = arith.constant 3 : i32
    %c0_37 = arith.constant 0 : index
    %115 = arith.index_cast %c3_i32 : i32 to index
    %c0_38 = arith.constant 0 : index
    %116 = vector.load %arg15[%c0_37, %115, %c0_38] : memref<2x8x128xf32, #tpu.memory_space<vmem>>, vector<2x1x128xf32>
    %117 = vector.shape_cast %116 : vector<2x1x128xf32> to vector<2x128xf32>
    %118 = arith.truncf %111 : vector<2x32xf32> to vector<2x32xbf16>
    %cst_39 = arith.constant dense<0.000000e+00> : vector<2x128xf32>
    %119 = tpu.matmul %118, %1, %cst_39 {dimension_numbers = #tpu.dot_dimension_numbers<[1], [0], [0], [1], [0, 0, 1, 1], [], []>} : vector<2x32xbf16>, vector<32x128xbf16>, vector<2x128xf32> -> vector<2x128xf32>
    %120 = arith.addf %117, %119 : vector<2x128xf32>
    %121 = vector.extract_strided_slice %120 {offsets = [0, 0], sizes = [2, 32], strides = [1, 1]} : vector<2x128xf32> to vector<2x32xf32>
    %122 = arith.negf %121 : vector<2x32xf32>
    %123 = math.exp %122 : vector<2x32xf32>
    %cst_40 = arith.constant 1.000000e+00 : f32
    %124 = vector.broadcast %cst_40 : f32 to vector<2x32xf32>
    %125 = arith.addf %124, %123 : vector<2x32xf32>
    %126 = arith.divf %124, %125 : vector<2x32xf32>
    %127 = vector.extract_strided_slice %120 {offsets = [0, 32], sizes = [2, 32], strides = [1, 1]} : vector<2x128xf32> to vector<2x32xf32>
    %128 = arith.negf %127 : vector<2x32xf32>
    %129 = math.exp %128 : vector<2x32xf32>
    %cst_41 = arith.constant 1.000000e+00 : f32
    %130 = vector.broadcast %cst_41 : f32 to vector<2x32xf32>
    %131 = arith.addf %130, %129 : vector<2x32xf32>
    %132 = arith.divf %130, %131 : vector<2x32xf32>
    %133 = vector.extract_strided_slice %120 {offsets = [0, 64], sizes = [2, 32], strides = [1, 1]} : vector<2x128xf32> to vector<2x32xf32>
    %134 = math.tanh %133 : vector<2x32xf32>
    %135 = vector.extract_strided_slice %120 {offsets = [0, 96], sizes = [2, 32], strides = [1, 1]} : vector<2x128xf32> to vector<2x32xf32>
    %136 = arith.negf %135 : vector<2x32xf32>
    %137 = math.exp %136 : vector<2x32xf32>
    %cst_42 = arith.constant 1.000000e+00 : f32
    %138 = vector.broadcast %cst_42 : f32 to vector<2x32xf32>
    %139 = arith.addf %138, %137 : vector<2x32xf32>
    %140 = arith.divf %138, %139 : vector<2x32xf32>
    %141 = arith.mulf %132, %109 : vector<2x32xf32>
    %142 = arith.mulf %126, %134 : vector<2x32xf32>
    %143 = arith.addf %141, %142 : vector<2x32xf32>
    %144 = math.tanh %143 : vector<2x32xf32>
    %145 = arith.mulf %140, %144 : vector<2x32xf32>
    %146 = vector.shape_cast %145 : vector<2x32xf32> to vector<2x1x32xf32>
    %c0_43 = arith.constant 0 : index
    %147 = arith.index_cast %c3_i32 : i32 to index
    %c0_44 = arith.constant 0 : index
    %148 = vector.load %arg14[%c0_43, %147, %c0_44] : memref<2x8x32xf32, #tpu.memory_space<vmem>>, vector<2x1x32xf32>
    tpu.vector_store %arg14[%c0_43, %147, %c0_44], %146 {strides = array<i32>} : memref<2x8x32xf32, #tpu.memory_space<vmem>>, vector<2x1x32xf32>,
    %c4_i32 = arith.constant 4 : i32
    %c0_45 = arith.constant 0 : index
    %149 = arith.index_cast %c4_i32 : i32 to index
    %c0_46 = arith.constant 0 : index
    %150 = vector.load %arg15[%c0_45, %149, %c0_46] : memref<2x8x128xf32, #tpu.memory_space<vmem>>, vector<2x1x128xf32>
    %151 = vector.shape_cast %150 : vector<2x1x128xf32> to vector<2x128xf32>
    %152 = arith.truncf %145 : vector<2x32xf32> to vector<2x32xbf16>
    %cst_47 = arith.constant dense<0.000000e+00> : vector<2x128xf32>
    %153 = tpu.matmul %152, %1, %cst_47 {dimension_numbers = #tpu.dot_dimension_numbers<[1], [0], [0], [1], [0, 0, 1, 1], [], []>} : vector<2x32xbf16>, vector<32x128xbf16>, vector<2x128xf32> -> vector<2x128xf32>
    %154 = arith.addf %151, %153 : vector<2x128xf32>
    %155 = vector.extract_strided_slice %154 {offsets = [0, 0], sizes = [2, 32], strides = [1, 1]} : vector<2x128xf32> to vector<2x32xf32>
    %156 = arith.negf %155 : vector<2x32xf32>
    %157 = math.exp %156 : vector<2x32xf32>
    %cst_48 = arith.constant 1.000000e+00 : f32
    %158 = vector.broadcast %cst_48 : f32 to vector<2x32xf32>
    %159 = arith.addf %158, %157 : vector<2x32xf32>
    %160 = arith.divf %158, %159 : vector<2x32xf32>
    %161 = vector.extract_strided_slice %154 {offsets = [0, 32], sizes = [2, 32], strides = [1, 1]} : vector<2x128xf32> to vector<2x32xf32>
    %162 = arith.negf %161 : vector<2x32xf32>
    %163 = math.exp %162 : vector<2x32xf32>
    %cst_49 = arith.constant 1.000000e+00 : f32
    %164 = vector.broadcast %cst_49 : f32 to vector<2x32xf32>
    %165 = arith.addf %164, %163 : vector<2x32xf32>
    %166 = arith.divf %164, %165 : vector<2x32xf32>
    %167 = vector.extract_strided_slice %154 {offsets = [0, 64], sizes = [2, 32], strides = [1, 1]} : vector<2x128xf32> to vector<2x32xf32>
    %168 = math.tanh %167 : vector<2x32xf32>
    %169 = vector.extract_strided_slice %154 {offsets = [0, 96], sizes = [2, 32], strides = [1, 1]} : vector<2x128xf32> to vector<2x32xf32>
    %170 = arith.negf %169 : vector<2x32xf32>
    %171 = math.exp %170 : vector<2x32xf32>
    %cst_50 = arith.constant 1.000000e+00 : f32
    %172 = vector.broadcast %cst_50 : f32 to vector<2x32xf32>
    %173 = arith.addf %172, %171 : vector<2x32xf32>
    %174 = arith.divf %172, %173 : vector<2x32xf32>
    %175 = arith.mulf %166, %143 : vector<2x32xf32>
    %176 = arith.mulf %160, %168 : vector<2x32xf32>
    %177 = arith.addf %175, %176 : vector<2x32xf32>
    %178 = math.tanh %177 : vector<2x32xf32>
    %179 = arith.mulf %174, %178 : vector<2x32xf32>
    %180 = vector.shape_cast %179 : vector<2x32xf32> to vector<2x1x32xf32>
    %c0_51 = arith.constant 0 : index
    %181 = arith.index_cast %c4_i32 : i32 to index
    %c0_52 = arith.constant 0 : index
    %182 = vector.load %arg14[%c0_51, %181, %c0_52] : memref<2x8x32xf32, #tpu.memory_space<vmem>>, vector<2x1x32xf32>
    tpu.vector_store %arg14[%c0_51, %181, %c0_52], %180 {strides = array<i32>} : memref<2x8x32xf32, #tpu.memory_space<vmem>>, vector<2x1x32xf32>,
    %c5_i32 = arith.constant 5 : i32
    %c0_53 = arith.constant 0 : index
    %183 = arith.index_cast %c5_i32 : i32 to index
    %c0_54 = arith.constant 0 : index
    %184 = vector.load %arg15[%c0_53, %183, %c0_54] : memref<2x8x128xf32, #tpu.memory_space<vmem>>, vector<2x1x128xf32>
    %185 = vector.shape_cast %184 : vector<2x1x128xf32> to vector<2x128xf32>
    %186 = arith.truncf %179 : vector<2x32xf32> to vector<2x32xbf16>
    %cst_55 = arith.constant dense<0.000000e+00> : vector<2x128xf32>
    %187 = tpu.matmul %186, %1, %cst_55 {dimension_numbers = #tpu.dot_dimension_numbers<[1], [0], [0], [1], [0, 0, 1, 1], [], []>} : vector<2x32xbf16>, vector<32x128xbf16>, vector<2x128xf32> -> vector<2x128xf32>
    %188 = arith.addf %185, %187 : vector<2x128xf32>
    %189 = vector.extract_strided_slice %188 {offsets = [0, 0], sizes = [2, 32], strides = [1, 1]} : vector<2x128xf32> to vector<2x32xf32>
    %190 = arith.negf %189 : vector<2x32xf32>
    %191 = math.exp %190 : vector<2x32xf32>
    %cst_56 = arith.constant 1.000000e+00 : f32
    %192 = vector.broadcast %cst_56 : f32 to vector<2x32xf32>
    %193 = arith.addf %192, %191 : vector<2x32xf32>
    %194 = arith.divf %192, %193 : vector<2x32xf32>
    %195 = vector.extract_strided_slice %188 {offsets = [0, 32], sizes = [2, 32], strides = [1, 1]} : vector<2x128xf32> to vector<2x32xf32>
    %196 = arith.negf %195 : vector<2x32xf32>
    %197 = math.exp %196 : vector<2x32xf32>
    %cst_57 = arith.constant 1.000000e+00 : f32
    %198 = vector.broadcast %cst_57 : f32 to vector<2x32xf32>
    %199 = arith.addf %198, %197 : vector<2x32xf32>
    %200 = arith.divf %198, %199 : vector<2x32xf32>
    %201 = vector.extract_strided_slice %188 {offsets = [0, 64], sizes = [2, 32], strides = [1, 1]} : vector<2x128xf32> to vector<2x32xf32>
    %202 = math.tanh %201 : vector<2x32xf32>
    %203 = vector.extract_strided_slice %188 {offsets = [0, 96], sizes = [2, 32], strides = [1, 1]} : vector<2x128xf32> to vector<2x32xf32>
    %204 = arith.negf %203 : vector<2x32xf32>
    %205 = math.exp %204 : vector<2x32xf32>
    %cst_58 = arith.constant 1.000000e+00 : f32
    %206 = vector.broadcast %cst_58 : f32 to vector<2x32xf32>
    %207 = arith.addf %206, %205 : vector<2x32xf32>
    %208 = arith.divf %206, %207 : vector<2x32xf32>
    %209 = arith.mulf %200, %177 : vector<2x32xf32>
    %210 = arith.mulf %194, %202 : vector<2x32xf32>
    %211 = arith.addf %209, %210 : vector<2x32xf32>
    %212 = math.tanh %211 : vector<2x32xf32>
    %213 = arith.mulf %208, %212 : vector<2x32xf32>
    %214 = vector.shape_cast %213 : vector<2x32xf32> to vector<2x1x32xf32>
    %c0_59 = arith.constant 0 : index
    %215 = arith.index_cast %c5_i32 : i32 to index
    %c0_60 = arith.constant 0 : index
    %216 = vector.load %arg14[%c0_59, %215, %c0_60] : memref<2x8x32xf32, #tpu.memory_space<vmem>>, vector<2x1x32xf32>
    tpu.vector_store %arg14[%c0_59, %215, %c0_60], %214 {strides = array<i32>} : memref<2x8x32xf32, #tpu.memory_space<vmem>>, vector<2x1x32xf32>,
    %c6_i32 = arith.constant 6 : i32
    %c0_61 = arith.constant 0 : index
    %217 = arith.index_cast %c6_i32 : i32 to index
    %c0_62 = arith.constant 0 : index
    %218 = vector.load %arg15[%c0_61, %217, %c0_62] : memref<2x8x128xf32, #tpu.memory_space<vmem>>, vector<2x1x128xf32>
    %219 = vector.shape_cast %218 : vector<2x1x128xf32> to vector<2x128xf32>
    %220 = arith.truncf %213 : vector<2x32xf32> to vector<2x32xbf16>
    %cst_63 = arith.constant dense<0.000000e+00> : vector<2x128xf32>
    %221 = tpu.matmul %220, %1, %cst_63 {dimension_numbers = #tpu.dot_dimension_numbers<[1], [0], [0], [1], [0, 0, 1, 1], [], []>} : vector<2x32xbf16>, vector<32x128xbf16>, vector<2x128xf32> -> vector<2x128xf32>
    %222 = arith.addf %219, %221 : vector<2x128xf32>
    %223 = vector.extract_strided_slice %222 {offsets = [0, 0], sizes = [2, 32], strides = [1, 1]} : vector<2x128xf32> to vector<2x32xf32>
    %224 = arith.negf %223 : vector<2x32xf32>
    %225 = math.exp %224 : vector<2x32xf32>
    %cst_64 = arith.constant 1.000000e+00 : f32
    %226 = vector.broadcast %cst_64 : f32 to vector<2x32xf32>
    %227 = arith.addf %226, %225 : vector<2x32xf32>
    %228 = arith.divf %226, %227 : vector<2x32xf32>
    %229 = vector.extract_strided_slice %222 {offsets = [0, 32], sizes = [2, 32], strides = [1, 1]} : vector<2x128xf32> to vector<2x32xf32>
    %230 = arith.negf %229 : vector<2x32xf32>
    %231 = math.exp %230 : vector<2x32xf32>
    %cst_65 = arith.constant 1.000000e+00 : f32
    %232 = vector.broadcast %cst_65 : f32 to vector<2x32xf32>
    %233 = arith.addf %232, %231 : vector<2x32xf32>
    %234 = arith.divf %232, %233 : vector<2x32xf32>
    %235 = vector.extract_strided_slice %222 {offsets = [0, 64], sizes = [2, 32], strides = [1, 1]} : vector<2x128xf32> to vector<2x32xf32>
    %236 = math.tanh %235 : vector<2x32xf32>
    %237 = vector.extract_strided_slice %222 {offsets = [0, 96], sizes = [2, 32], strides = [1, 1]} : vector<2x128xf32> to vector<2x32xf32>
    %238 = arith.negf %237 : vector<2x32xf32>
    %239 = math.exp %238 : vector<2x32xf32>
    %cst_66 = arith.constant 1.000000e+00 : f32
    %240 = vector.broadcast %cst_66 : f32 to vector<2x32xf32>
    %241 = arith.addf %240, %239 : vector<2x32xf32>
    %242 = arith.divf %240, %241 : vector<2x32xf32>
    %243 = arith.mulf %234, %211 : vector<2x32xf32>
    %244 = arith.mulf %228, %236 : vector<2x32xf32>
    %245 = arith.addf %243, %244 : vector<2x32xf32>
    %246 = math.tanh %245 : vector<2x32xf32>
    %247 = arith.mulf %242, %246 : vector<2x32xf32>
    %248 = vector.shape_cast %247 : vector<2x32xf32> to vector<2x1x32xf32>
    %c0_67 = arith.constant 0 : index
    %249 = arith.index_cast %c6_i32 : i32 to index
    %c0_68 = arith.constant 0 : index
    %250 = vector.load %arg14[%c0_67, %249, %c0_68] : memref<2x8x32xf32, #tpu.memory_space<vmem>>, vector<2x1x32xf32>
    tpu.vector_store %arg14[%c0_67, %249, %c0_68], %248 {strides = array<i32>} : memref<2x8x32xf32, #tpu.memory_space<vmem>>, vector<2x1x32xf32>,
    %c7_i32 = arith.constant 7 : i32
    %c0_69 = arith.constant 0 : index
    %251 = arith.index_cast %c7_i32 : i32 to index
    %c0_70 = arith.constant 0 : index
    %252 = vector.load %arg15[%c0_69, %251, %c0_70] : memref<2x8x128xf32, #tpu.memory_space<vmem>>, vector<2x1x128xf32>
    %253 = vector.shape_cast %252 : vector<2x1x128xf32> to vector<2x128xf32>
    %254 = arith.truncf %247 : vector<2x32xf32> to vector<2x32xbf16>
    %cst_71 = arith.constant dense<0.000000e+00> : vector<2x128xf32>
    %255 = tpu.matmul %254, %1, %cst_71 {dimension_numbers = #tpu.dot_dimension_numbers<[1], [0], [0], [1], [0, 0, 1, 1], [], []>} : vector<2x32xbf16>, vector<32x128xbf16>, vector<2x128xf32> -> vector<2x128xf32>
    %256 = arith.addf %253, %255 : vector<2x128xf32>
    %257 = vector.extract_strided_slice %256 {offsets = [0, 0], sizes = [2, 32], strides = [1, 1]} : vector<2x128xf32> to vector<2x32xf32>
    %258 = arith.negf %257 : vector<2x32xf32>
    %259 = math.exp %258 : vector<2x32xf32>
    %cst_72 = arith.constant 1.000000e+00 : f32
    %260 = vector.broadcast %cst_72 : f32 to vector<2x32xf32>
    %261 = arith.addf %260, %259 : vector<2x32xf32>
    %262 = arith.divf %260, %261 : vector<2x32xf32>
    %263 = vector.extract_strided_slice %256 {offsets = [0, 32], sizes = [2, 32], strides = [1, 1]} : vector<2x128xf32> to vector<2x32xf32>
    %264 = arith.negf %263 : vector<2x32xf32>
    %265 = math.exp %264 : vector<2x32xf32>
    %cst_73 = arith.constant 1.000000e+00 : f32
    %266 = vector.broadcast %cst_73 : f32 to vector<2x32xf32>
    %267 = arith.addf %266, %265 : vector<2x32xf32>
    %268 = arith.divf %266, %267 : vector<2x32xf32>
    %269 = vector.extract_strided_slice %256 {offsets = [0, 64], sizes = [2, 32], strides = [1, 1]} : vector<2x128xf32> to vector<2x32xf32>
    %270 = math.tanh %269 : vector<2x32xf32>
    %271 = vector.extract_strided_slice %256 {offsets = [0, 96], sizes = [2, 32], strides = [1, 1]} : vector<2x128xf32> to vector<2x32xf32>
    %272 = arith.negf %271 : vector<2x32xf32>
    %273 = math.exp %272 : vector<2x32xf32>
    %cst_74 = arith.constant 1.000000e+00 : f32
    %274 = vector.broadcast %cst_74 : f32 to vector<2x32xf32>
    %275 = arith.addf %274, %273 : vector<2x32xf32>
    %276 = arith.divf %274, %275 : vector<2x32xf32>
    %277 = arith.mulf %268, %245 : vector<2x32xf32>
    %278 = arith.mulf %262, %270 : vector<2x32xf32>
    %279 = arith.addf %277, %278 : vector<2x32xf32>
    %280 = math.tanh %279 : vector<2x32xf32>
    %281 = arith.mulf %276, %280 : vector<2x32xf32>
    %282 = vector.shape_cast %281 : vector<2x32xf32> to vector<2x1x32xf32>
    %c0_75 = arith.constant 0 : index
    %283 = arith.index_cast %c7_i32 : i32 to index
    %c0_76 = arith.constant 0 : index
    %284 = vector.load %arg14[%c0_75, %283, %c0_76] : memref<2x8x32xf32, #tpu.memory_space<vmem>>, vector<2x1x32xf32>
    tpu.vector_store %arg14[%c0_75, %283, %c0_76], %282 {strides = array<i32>} : memref<2x8x32xf32, #tpu.memory_space<vmem>>, vector<2x1x32xf32>,
    %c8_i32 = arith.constant 8 : i32
    %c0_77 = arith.constant 0 : index
    %c0_78 = arith.constant 0 : index
    %c0_79 = arith.constant 0 : index
    %285 = vector.load %arg9[%c0_77, %c0_78, %c0_79] : memref<1x2x32xf32, #tpu.memory_space<vmem>>, vector<1x2x32xf32>
    %286 = vector.shape_cast %285 : vector<1x2x32xf32> to vector<2x32xf32>
    %287 = vector.shape_cast %281 : vector<2x32xf32> to vector<1x2x32xf32>
    tpu.vector_store %arg9[%c0_77, %c0_78, %c0_79], %287 {strides = array<i32>} : memref<1x2x32xf32, #tpu.memory_space<vmem>>, vector<1x2x32xf32>,
    %c0_80 = arith.constant 0 : index
    %c0_81 = arith.constant 0 : index
    %c0_82 = arith.constant 0 : index
    %288 = vector.load %arg10[%c0_80, %c0_81, %c0_82] : memref<1x2x32xf32, #tpu.memory_space<vmem>>, vector<1x2x32xf32>
    %289 = vector.shape_cast %288 : vector<1x2x32xf32> to vector<2x32xf32>
    %290 = vector.shape_cast %279 : vector<2x32xf32> to vector<1x2x32xf32>
    tpu.vector_store %arg10[%c0_80, %c0_81, %c0_82], %290 {strides = array<i32>} : memref<1x2x32xf32, #tpu.memory_space<vmem>>, vector<1x2x32xf32>,
    %c0_83 = arith.constant 0 : index
    %c0_84 = arith.constant 0 : index
    %c0_85 = arith.constant 0 : index
    %291 = vector.load %arg14[%c0_83, %c0_84, %c0_85] : memref<2x8x32xf32, #tpu.memory_space<vmem>>, vector<2x8x32xf32>
    %c0_86 = arith.constant 0 : index
    %c0_87 = arith.constant 0 : index
    %c0_88 = arith.constant 0 : index
    %292 = vector.load %arg8[%c0_86, %c0_87, %c0_88] : memref<2x8x32xf32, #tpu.memory_space<vmem>>, vector<2x8x32xf32>
    tpu.vector_store %arg8[%c0_86, %c0_87, %c0_88], %291 {strides = array<i32>} : memref<2x8x32xf32, #tpu.memory_space<vmem>>, vector<2x8x32xf32>,
    %c0_89 = arith.constant 0 : index
    %c0_90 = arith.constant 0 : index
    %293 = vector.load %arg5[%c0_89, %c0_90] : memref<32x128xbf16, #tpu.memory_space<vmem>>, vector<32x128xbf16>
    %c0_91 = arith.constant 0 : index
    %c0_92 = arith.constant 0 : index
    %294 = vector.load %arg6[%c0_91, %c0_92] : memref<32x128xbf16, #tpu.memory_space<vmem>>, vector<32x128xbf16>
    %c0_93 = arith.constant 0 : index
    %c0_94 = arith.constant 0 : index
    %295 = vector.load %arg7[%c0_93, %c0_94] : memref<1x128xf32, #tpu.memory_space<vmem>>, vector<1x128xf32>
    %c0_95 = arith.constant 0 : index
    %c0_96 = arith.constant 0 : index
    %c0_97 = arith.constant 0 : index
    %296 = vector.load %arg14[%c0_95, %c0_96, %c0_97] : memref<2x8x32xf32, #tpu.memory_space<vmem>>, vector<2x8x32xf32>
    %297 = vector.shape_cast %296 : vector<2x8x32xf32> to vector<16x32xf32>
    %298 = arith.truncf %297 : vector<16x32xf32> to vector<16x32xbf16>
    %cst_98 = arith.constant dense<0.000000e+00> : vector<16x128xf32>
    %299 = tpu.matmul %298, %293, %cst_98 {dimension_numbers = #tpu.dot_dimension_numbers<[1], [0], [0], [1], [0, 0, 1, 1], [], []>} : vector<16x32xbf16>, vector<32x128xbf16>, vector<16x128xf32> -> vector<16x128xf32>
    %300 = vector.broadcast %295 : vector<1x128xf32> to vector<16x128xf32>
    %301 = arith.addf %299, %300 : vector<16x128xf32>
    %302 = vector.shape_cast %301 : vector<16x128xf32> to vector<2x8x128xf32>
    %c0_99 = arith.constant 0 : index
    %c0_100 = arith.constant 0 : index
    %c0_101 = arith.constant 0 : index
    %303 = vector.load %arg15[%c0_99, %c0_100, %c0_101] : memref<2x8x128xf32, #tpu.memory_space<vmem>>, vector<2x8x128xf32>
    tpu.vector_store %arg15[%c0_99, %c0_100, %c0_101], %302 {strides = array<i32>} : memref<2x8x128xf32, #tpu.memory_space<vmem>>, vector<2x8x128xf32>,
    %cst_102 = arith.constant 0.000000e+00 : f32
    %304 = vector.broadcast %cst_102 : f32 to vector<2x32xf32>
    %cst_103 = arith.constant 0.000000e+00 : f32
    %305 = vector.broadcast %cst_103 : f32 to vector<2x32xf32>
    %c0_i32_104 = arith.constant 0 : i32
    %c0_105 = arith.constant 0 : index
    %306 = arith.index_cast %c0_i32_104 : i32 to index
    %c0_106 = arith.constant 0 : index
    %307 = vector.load %arg15[%c0_105, %306, %c0_106] : memref<2x8x128xf32, #tpu.memory_space<vmem>>, vector<2x1x128xf32>
    %308 = vector.shape_cast %307 : vector<2x1x128xf32> to vector<2x128xf32>
    %309 = arith.truncf %304 : vector<2x32xf32> to vector<2x32xbf16>
    %cst_107 = arith.constant dense<0.000000e+00> : vector<2x128xf32>
    %310 = tpu.matmul %309, %294, %cst_107 {dimension_numbers = #tpu.dot_dimension_numbers<[1], [0], [0], [1], [0, 0, 1, 1], [], []>} : vector<2x32xbf16>, vector<32x128xbf16>, vector<2x128xf32> -> vector<2x128xf32>
    %311 = arith.addf %308, %310 : vector<2x128xf32>
    %312 = vector.extract_strided_slice %311 {offsets = [0, 0], sizes = [2, 32], strides = [1, 1]} : vector<2x128xf32> to vector<2x32xf32>
    %313 = arith.negf %312 : vector<2x32xf32>
    %314 = math.exp %313 : vector<2x32xf32>
    %cst_108 = arith.constant 1.000000e+00 : f32
    %315 = vector.broadcast %cst_108 : f32 to vector<2x32xf32>
    %316 = arith.addf %315, %314 : vector<2x32xf32>
    %317 = arith.divf %315, %316 : vector<2x32xf32>
    %318 = vector.extract_strided_slice %311 {offsets = [0, 32], sizes = [2, 32], strides = [1, 1]} : vector<2x128xf32> to vector<2x32xf32>
    %319 = arith.negf %318 : vector<2x32xf32>
    %320 = math.exp %319 : vector<2x32xf32>
    %cst_109 = arith.constant 1.000000e+00 : f32
    %321 = vector.broadcast %cst_109 : f32 to vector<2x32xf32>
    %322 = arith.addf %321, %320 : vector<2x32xf32>
    %323 = arith.divf %321, %322 : vector<2x32xf32>
    %324 = vector.extract_strided_slice %311 {offsets = [0, 64], sizes = [2, 32], strides = [1, 1]} : vector<2x128xf32> to vector<2x32xf32>
    %325 = math.tanh %324 : vector<2x32xf32>
    %326 = vector.extract_strided_slice %311 {offsets = [0, 96], sizes = [2, 32], strides = [1, 1]} : vector<2x128xf32> to vector<2x32xf32>
    %327 = arith.negf %326 : vector<2x32xf32>
    %328 = math.exp %327 : vector<2x32xf32>
    %cst_110 = arith.constant 1.000000e+00 : f32
    %329 = vector.broadcast %cst_110 : f32 to vector<2x32xf32>
    %330 = arith.addf %329, %328 : vector<2x32xf32>
    %331 = arith.divf %329, %330 : vector<2x32xf32>
    %332 = arith.mulf %323, %305 : vector<2x32xf32>
    %333 = arith.mulf %317, %325 : vector<2x32xf32>
    %334 = arith.addf %332, %333 : vector<2x32xf32>
    %335 = math.tanh %334 : vector<2x32xf32>
    %336 = arith.mulf %331, %335 : vector<2x32xf32>
    %337 = vector.shape_cast %336 : vector<2x32xf32> to vector<2x1x32xf32>
    %c0_111 = arith.constant 0 : index
    %338 = arith.index_cast %c0_i32_104 : i32 to index
    %c0_112 = arith.constant 0 : index
    %339 = vector.load %arg14[%c0_111, %338, %c0_112] : memref<2x8x32xf32, #tpu.memory_space<vmem>>, vector<2x1x32xf32>
    tpu.vector_store %arg14[%c0_111, %338, %c0_112], %337 {strides = array<i32>} : memref<2x8x32xf32, #tpu.memory_space<vmem>>, vector<2x1x32xf32>,
    %c1_i32_113 = arith.constant 1 : i32
    %c0_114 = arith.constant 0 : index
    %340 = arith.index_cast %c1_i32_113 : i32 to index
    %c0_115 = arith.constant 0 : index
    %341 = vector.load %arg15[%c0_114, %340, %c0_115] : memref<2x8x128xf32, #tpu.memory_space<vmem>>, vector<2x1x128xf32>
    %342 = vector.shape_cast %341 : vector<2x1x128xf32> to vector<2x128xf32>
    %343 = arith.truncf %336 : vector<2x32xf32> to vector<2x32xbf16>
    %cst_116 = arith.constant dense<0.000000e+00> : vector<2x128xf32>
    %344 = tpu.matmul %343, %294, %cst_116 {dimension_numbers = #tpu.dot_dimension_numbers<[1], [0], [0], [1], [0, 0, 1, 1], [], []>} : vector<2x32xbf16>, vector<32x128xbf16>, vector<2x128xf32> -> vector<2x128xf32>
    %345 = arith.addf %342, %344 : vector<2x128xf32>
    %346 = vector.extract_strided_slice %345 {offsets = [0, 0], sizes = [2, 32], strides = [1, 1]} : vector<2x128xf32> to vector<2x32xf32>
    %347 = arith.negf %346 : vector<2x32xf32>
    %348 = math.exp %347 : vector<2x32xf32>
    %cst_117 = arith.constant 1.000000e+00 : f32
    %349 = vector.broadcast %cst_117 : f32 to vector<2x32xf32>
    %350 = arith.addf %349, %348 : vector<2x32xf32>
    %351 = arith.divf %349, %350 : vector<2x32xf32>
    %352 = vector.extract_strided_slice %345 {offsets = [0, 32], sizes = [2, 32], strides = [1, 1]} : vector<2x128xf32> to vector<2x32xf32>
    %353 = arith.negf %352 : vector<2x32xf32>
    %354 = math.exp %353 : vector<2x32xf32>
    %cst_118 = arith.constant 1.000000e+00 : f32
    %355 = vector.broadcast %cst_118 : f32 to vector<2x32xf32>
    %356 = arith.addf %355, %354 : vector<2x32xf32>
    %357 = arith.divf %355, %356 : vector<2x32xf32>
    %358 = vector.extract_strided_slice %345 {offsets = [0, 64], sizes = [2, 32], strides = [1, 1]} : vector<2x128xf32> to vector<2x32xf32>
    %359 = math.tanh %358 : vector<2x32xf32>
    %360 = vector.extract_strided_slice %345 {offsets = [0, 96], sizes = [2, 32], strides = [1, 1]} : vector<2x128xf32> to vector<2x32xf32>
    %361 = arith.negf %360 : vector<2x32xf32>
    %362 = math.exp %361 : vector<2x32xf32>
    %cst_119 = arith.constant 1.000000e+00 : f32
    %363 = vector.broadcast %cst_119 : f32 to vector<2x32xf32>
    %364 = arith.addf %363, %362 : vector<2x32xf32>
    %365 = arith.divf %363, %364 : vector<2x32xf32>
    %366 = arith.mulf %357, %334 : vector<2x32xf32>
    %367 = arith.mulf %351, %359 : vector<2x32xf32>
    %368 = arith.addf %366, %367 : vector<2x32xf32>
    %369 = math.tanh %368 : vector<2x32xf32>
    %370 = arith.mulf %365, %369 : vector<2x32xf32>
    %371 = vector.shape_cast %370 : vector<2x32xf32> to vector<2x1x32xf32>
    %c0_120 = arith.constant 0 : index
    %372 = arith.index_cast %c1_i32_113 : i32 to index
    %c0_121 = arith.constant 0 : index
    %373 = vector.load %arg14[%c0_120, %372, %c0_121] : memref<2x8x32xf32, #tpu.memory_space<vmem>>, vector<2x1x32xf32>
    tpu.vector_store %arg14[%c0_120, %372, %c0_121], %371 {strides = array<i32>} : memref<2x8x32xf32, #tpu.memory_space<vmem>>, vector<2x1x32xf32>,
    %c2_i32_122 = arith.constant 2 : i32
    %c0_123 = arith.constant 0 : index
    %374 = arith.index_cast %c2_i32_122 : i32 to index
    %c0_124 = arith.constant 0 : index
    %375 = vector.load %arg15[%c0_123, %374, %c0_124] : memref<2x8x128xf32, #tpu.memory_space<vmem>>, vector<2x1x128xf32>
    %376 = vector.shape_cast %375 : vector<2x1x128xf32> to vector<2x128xf32>
    %377 = arith.truncf %370 : vector<2x32xf32> to vector<2x32xbf16>
    %cst_125 = arith.constant dense<0.000000e+00> : vector<2x128xf32>
    %378 = tpu.matmul %377, %294, %cst_125 {dimension_numbers = #tpu.dot_dimension_numbers<[1], [0], [0], [1], [0, 0, 1, 1], [], []>} : vector<2x32xbf16>, vector<32x128xbf16>, vector<2x128xf32> -> vector<2x128xf32>
    %379 = arith.addf %376, %378 : vector<2x128xf32>
    %380 = vector.extract_strided_slice %379 {offsets = [0, 0], sizes = [2, 32], strides = [1, 1]} : vector<2x128xf32> to vector<2x32xf32>
    %381 = arith.negf %380 : vector<2x32xf32>
    %382 = math.exp %381 : vector<2x32xf32>
    %cst_126 = arith.constant 1.000000e+00 : f32
    %383 = vector.broadcast %cst_126 : f32 to vector<2x32xf32>
    %384 = arith.addf %383, %382 : vector<2x32xf32>
    %385 = arith.divf %383, %384 : vector<2x32xf32>
    %386 = vector.extract_strided_slice %379 {offsets = [0, 32], sizes = [2, 32], strides = [1, 1]} : vector<2x128xf32> to vector<2x32xf32>
    %387 = arith.negf %386 : vector<2x32xf32>
    %388 = math.exp %387 : vector<2x32xf32>
    %cst_127 = arith.constant 1.000000e+00 : f32
    %389 = vector.broadcast %cst_127 : f32 to vector<2x32xf32>
    %390 = arith.addf %389, %388 : vector<2x32xf32>
    %391 = arith.divf %389, %390 : vector<2x32xf32>
    %392 = vector.extract_strided_slice %379 {offsets = [0, 64], sizes = [2, 32], strides = [1, 1]} : vector<2x128xf32> to vector<2x32xf32>
    %393 = math.tanh %392 : vector<2x32xf32>
    %394 = vector.extract_strided_slice %379 {offsets = [0, 96], sizes = [2, 32], strides = [1, 1]} : vector<2x128xf32> to vector<2x32xf32>
    %395 = arith.negf %394 : vector<2x32xf32>
    %396 = math.exp %395 : vector<2x32xf32>
    %cst_128 = arith.constant 1.000000e+00 : f32
    %397 = vector.broadcast %cst_128 : f32 to vector<2x32xf32>
    %398 = arith.addf %397, %396 : vector<2x32xf32>
    %399 = arith.divf %397, %398 : vector<2x32xf32>
    %400 = arith.mulf %391, %368 : vector<2x32xf32>
    %401 = arith.mulf %385, %393 : vector<2x32xf32>
    %402 = arith.addf %400, %401 : vector<2x32xf32>
    %403 = math.tanh %402 : vector<2x32xf32>
    %404 = arith.mulf %399, %403 : vector<2x32xf32>
    %405 = vector.shape_cast %404 : vector<2x32xf32> to vector<2x1x32xf32>
    %c0_129 = arith.constant 0 : index
    %406 = arith.index_cast %c2_i32_122 : i32 to index
    %c0_130 = arith.constant 0 : index
    %407 = vector.load %arg14[%c0_129, %406, %c0_130] : memref<2x8x32xf32, #tpu.memory_space<vmem>>, vector<2x1x32xf32>
    tpu.vector_store %arg14[%c0_129, %406, %c0_130], %405 {strides = array<i32>} : memref<2x8x32xf32, #tpu.memory_space<vmem>>, vector<2x1x32xf32>,
    %c3_i32_131 = arith.constant 3 : i32
    %c0_132 = arith.constant 0 : index
    %408 = arith.index_cast %c3_i32_131 : i32 to index
    %c0_133 = arith.constant 0 : index
    %409 = vector.load %arg15[%c0_132, %408, %c0_133] : memref<2x8x128xf32, #tpu.memory_space<vmem>>, vector<2x1x128xf32>
    %410 = vector.shape_cast %409 : vector<2x1x128xf32> to vector<2x128xf32>
    %411 = arith.truncf %404 : vector<2x32xf32> to vector<2x32xbf16>
    %cst_134 = arith.constant dense<0.000000e+00> : vector<2x128xf32>
    %412 = tpu.matmul %411, %294, %cst_134 {dimension_numbers = #tpu.dot_dimension_numbers<[1], [0], [0], [1], [0, 0, 1, 1], [], []>} : vector<2x32xbf16>, vector<32x128xbf16>, vector<2x128xf32> -> vector<2x128xf32>
    %413 = arith.addf %410, %412 : vector<2x128xf32>
    %414 = vector.extract_strided_slice %413 {offsets = [0, 0], sizes = [2, 32], strides = [1, 1]} : vector<2x128xf32> to vector<2x32xf32>
    %415 = arith.negf %414 : vector<2x32xf32>
    %416 = math.exp %415 : vector<2x32xf32>
    %cst_135 = arith.constant 1.000000e+00 : f32
    %417 = vector.broadcast %cst_135 : f32 to vector<2x32xf32>
    %418 = arith.addf %417, %416 : vector<2x32xf32>
    %419 = arith.divf %417, %418 : vector<2x32xf32>
    %420 = vector.extract_strided_slice %413 {offsets = [0, 32], sizes = [2, 32], strides = [1, 1]} : vector<2x128xf32> to vector<2x32xf32>
    %421 = arith.negf %420 : vector<2x32xf32>
    %422 = math.exp %421 : vector<2x32xf32>
    %cst_136 = arith.constant 1.000000e+00 : f32
    %423 = vector.broadcast %cst_136 : f32 to vector<2x32xf32>
    %424 = arith.addf %423, %422 : vector<2x32xf32>
    %425 = arith.divf %423, %424 : vector<2x32xf32>
    %426 = vector.extract_strided_slice %413 {offsets = [0, 64], sizes = [2, 32], strides = [1, 1]} : vector<2x128xf32> to vector<2x32xf32>
    %427 = math.tanh %426 : vector<2x32xf32>
    %428 = vector.extract_strided_slice %413 {offsets = [0, 96], sizes = [2, 32], strides = [1, 1]} : vector<2x128xf32> to vector<2x32xf32>
    %429 = arith.negf %428 : vector<2x32xf32>
    %430 = math.exp %429 : vector<2x32xf32>
    %cst_137 = arith.constant 1.000000e+00 : f32
    %431 = vector.broadcast %cst_137 : f32 to vector<2x32xf32>
    %432 = arith.addf %431, %430 : vector<2x32xf32>
    %433 = arith.divf %431, %432 : vector<2x32xf32>
    %434 = arith.mulf %425, %402 : vector<2x32xf32>
    %435 = arith.mulf %419, %427 : vector<2x32xf32>
    %436 = arith.addf %434, %435 : vector<2x32xf32>
    %437 = math.tanh %436 : vector<2x32xf32>
    %438 = arith.mulf %433, %437 : vector<2x32xf32>
    %439 = vector.shape_cast %438 : vector<2x32xf32> to vector<2x1x32xf32>
    %c0_138 = arith.constant 0 : index
    %440 = arith.index_cast %c3_i32_131 : i32 to index
    %c0_139 = arith.constant 0 : index
    %441 = vector.load %arg14[%c0_138, %440, %c0_139] : memref<2x8x32xf32, #tpu.memory_space<vmem>>, vector<2x1x32xf32>
    tpu.vector_store %arg14[%c0_138, %440, %c0_139], %439 {strides = array<i32>} : memref<2x8x32xf32, #tpu.memory_space<vmem>>, vector<2x1x32xf32>,
    %c4_i32_140 = arith.constant 4 : i32
    %c0_141 = arith.constant 0 : index
    %442 = arith.index_cast %c4_i32_140 : i32 to index
    %c0_142 = arith.constant 0 : index
    %443 = vector.load %arg15[%c0_141, %442, %c0_142] : memref<2x8x128xf32, #tpu.memory_space<vmem>>, vector<2x1x128xf32>
    %444 = vector.shape_cast %443 : vector<2x1x128xf32> to vector<2x128xf32>
    %445 = arith.truncf %438 : vector<2x32xf32> to vector<2x32xbf16>
    %cst_143 = arith.constant dense<0.000000e+00> : vector<2x128xf32>
    %446 = tpu.matmul %445, %294, %cst_143 {dimension_numbers = #tpu.dot_dimension_numbers<[1], [0], [0], [1], [0, 0, 1, 1], [], []>} : vector<2x32xbf16>, vector<32x128xbf16>, vector<2x128xf32> -> vector<2x128xf32>
    %447 = arith.addf %444, %446 : vector<2x128xf32>
    %448 = vector.extract_strided_slice %447 {offsets = [0, 0], sizes = [2, 32], strides = [1, 1]} : vector<2x128xf32> to vector<2x32xf32>
    %449 = arith.negf %448 : vector<2x32xf32>
    %450 = math.exp %449 : vector<2x32xf32>
    %cst_144 = arith.constant 1.000000e+00 : f32
    %451 = vector.broadcast %cst_144 : f32 to vector<2x32xf32>
    %452 = arith.addf %451, %450 : vector<2x32xf32>
    %453 = arith.divf %451, %452 : vector<2x32xf32>
    %454 = vector.extract_strided_slice %447 {offsets = [0, 32], sizes = [2, 32], strides = [1, 1]} : vector<2x128xf32> to vector<2x32xf32>
    %455 = arith.negf %454 : vector<2x32xf32>
    %456 = math.exp %455 : vector<2x32xf32>
    %cst_145 = arith.constant 1.000000e+00 : f32
    %457 = vector.broadcast %cst_145 : f32 to vector<2x32xf32>
    %458 = arith.addf %457, %456 : vector<2x32xf32>
    %459 = arith.divf %457, %458 : vector<2x32xf32>
    %460 = vector.extract_strided_slice %447 {offsets = [0, 64], sizes = [2, 32], strides = [1, 1]} : vector<2x128xf32> to vector<2x32xf32>
    %461 = math.tanh %460 : vector<2x32xf32>
    %462 = vector.extract_strided_slice %447 {offsets = [0, 96], sizes = [2, 32], strides = [1, 1]} : vector<2x128xf32> to vector<2x32xf32>
    %463 = arith.negf %462 : vector<2x32xf32>
    %464 = math.exp %463 : vector<2x32xf32>
    %cst_146 = arith.constant 1.000000e+00 : f32
    %465 = vector.broadcast %cst_146 : f32 to vector<2x32xf32>
    %466 = arith.addf %465, %464 : vector<2x32xf32>
    %467 = arith.divf %465, %466 : vector<2x32xf32>
    %468 = arith.mulf %459, %436 : vector<2x32xf32>
    %469 = arith.mulf %453, %461 : vector<2x32xf32>
    %470 = arith.addf %468, %469 : vector<2x32xf32>
    %471 = math.tanh %470 : vector<2x32xf32>
    %472 = arith.mulf %467, %471 : vector<2x32xf32>
    %473 = vector.shape_cast %472 : vector<2x32xf32> to vector<2x1x32xf32>
    %c0_147 = arith.constant 0 : index
    %474 = arith.index_cast %c4_i32_140 : i32 to index
    %c0_148 = arith.constant 0 : index
    %475 = vector.load %arg14[%c0_147, %474, %c0_148] : memref<2x8x32xf32, #tpu.memory_space<vmem>>, vector<2x1x32xf32>
    tpu.vector_store %arg14[%c0_147, %474, %c0_148], %473 {strides = array<i32>} : memref<2x8x32xf32, #tpu.memory_space<vmem>>, vector<2x1x32xf32>,
    %c5_i32_149 = arith.constant 5 : i32
    %c0_150 = arith.constant 0 : index
    %476 = arith.index_cast %c5_i32_149 : i32 to index
    %c0_151 = arith.constant 0 : index
    %477 = vector.load %arg15[%c0_150, %476, %c0_151] : memref<2x8x128xf32, #tpu.memory_space<vmem>>, vector<2x1x128xf32>
    %478 = vector.shape_cast %477 : vector<2x1x128xf32> to vector<2x128xf32>
    %479 = arith.truncf %472 : vector<2x32xf32> to vector<2x32xbf16>
    %cst_152 = arith.constant dense<0.000000e+00> : vector<2x128xf32>
    %480 = tpu.matmul %479, %294, %cst_152 {dimension_numbers = #tpu.dot_dimension_numbers<[1], [0], [0], [1], [0, 0, 1, 1], [], []>} : vector<2x32xbf16>, vector<32x128xbf16>, vector<2x128xf32> -> vector<2x128xf32>
    %481 = arith.addf %478, %480 : vector<2x128xf32>
    %482 = vector.extract_strided_slice %481 {offsets = [0, 0], sizes = [2, 32], strides = [1, 1]} : vector<2x128xf32> to vector<2x32xf32>
    %483 = arith.negf %482 : vector<2x32xf32>
    %484 = math.exp %483 : vector<2x32xf32>
    %cst_153 = arith.constant 1.000000e+00 : f32
    %485 = vector.broadcast %cst_153 : f32 to vector<2x32xf32>
    %486 = arith.addf %485, %484 : vector<2x32xf32>
    %487 = arith.divf %485, %486 : vector<2x32xf32>
    %488 = vector.extract_strided_slice %481 {offsets = [0, 32], sizes = [2, 32], strides = [1, 1]} : vector<2x128xf32> to vector<2x32xf32>
    %489 = arith.negf %488 : vector<2x32xf32>
    %490 = math.exp %489 : vector<2x32xf32>
    %cst_154 = arith.constant 1.000000e+00 : f32
    %491 = vector.broadcast %cst_154 : f32 to vector<2x32xf32>
    %492 = arith.addf %491, %490 : vector<2x32xf32>
    %493 = arith.divf %491, %492 : vector<2x32xf32>
    %494 = vector.extract_strided_slice %481 {offsets = [0, 64], sizes = [2, 32], strides = [1, 1]} : vector<2x128xf32> to vector<2x32xf32>
    %495 = math.tanh %494 : vector<2x32xf32>
    %496 = vector.extract_strided_slice %481 {offsets = [0, 96], sizes = [2, 32], strides = [1, 1]} : vector<2x128xf32> to vector<2x32xf32>
    %497 = arith.negf %496 : vector<2x32xf32>
    %498 = math.exp %497 : vector<2x32xf32>
    %cst_155 = arith.constant 1.000000e+00 : f32
    %499 = vector.broadcast %cst_155 : f32 to vector<2x32xf32>
    %500 = arith.addf %499, %498 : vector<2x32xf32>
    %501 = arith.divf %499, %500 : vector<2x32xf32>
    %502 = arith.mulf %493, %470 : vector<2x32xf32>
    %503 = arith.mulf %487, %495 : vector<2x32xf32>
    %504 = arith.addf %502, %503 : vector<2x32xf32>
    %505 = math.tanh %504 : vector<2x32xf32>
    %506 = arith.mulf %501, %505 : vector<2x32xf32>
    %507 = vector.shape_cast %506 : vector<2x32xf32> to vector<2x1x32xf32>
    %c0_156 = arith.constant 0 : index
    %508 = arith.index_cast %c5_i32_149 : i32 to index
    %c0_157 = arith.constant 0 : index
    %509 = vector.load %arg14[%c0_156, %508, %c0_157] : memref<2x8x32xf32, #tpu.memory_space<vmem>>, vector<2x1x32xf32>
    tpu.vector_store %arg14[%c0_156, %508, %c0_157], %507 {strides = array<i32>} : memref<2x8x32xf32, #tpu.memory_space<vmem>>, vector<2x1x32xf32>,
    %c6_i32_158 = arith.constant 6 : i32
    %c0_159 = arith.constant 0 : index
    %510 = arith.index_cast %c6_i32_158 : i32 to index
    %c0_160 = arith.constant 0 : index
    %511 = vector.load %arg15[%c0_159, %510, %c0_160] : memref<2x8x128xf32, #tpu.memory_space<vmem>>, vector<2x1x128xf32>
    %512 = vector.shape_cast %511 : vector<2x1x128xf32> to vector<2x128xf32>
    %513 = arith.truncf %506 : vector<2x32xf32> to vector<2x32xbf16>
    %cst_161 = arith.constant dense<0.000000e+00> : vector<2x128xf32>
    %514 = tpu.matmul %513, %294, %cst_161 {dimension_numbers = #tpu.dot_dimension_numbers<[1], [0], [0], [1], [0, 0, 1, 1], [], []>} : vector<2x32xbf16>, vector<32x128xbf16>, vector<2x128xf32> -> vector<2x128xf32>
    %515 = arith.addf %512, %514 : vector<2x128xf32>
    %516 = vector.extract_strided_slice %515 {offsets = [0, 0], sizes = [2, 32], strides = [1, 1]} : vector<2x128xf32> to vector<2x32xf32>
    %517 = arith.negf %516 : vector<2x32xf32>
    %518 = math.exp %517 : vector<2x32xf32>
    %cst_162 = arith.constant 1.000000e+00 : f32
    %519 = vector.broadcast %cst_162 : f32 to vector<2x32xf32>
    %520 = arith.addf %519, %518 : vector<2x32xf32>
    %521 = arith.divf %519, %520 : vector<2x32xf32>
    %522 = vector.extract_strided_slice %515 {offsets = [0, 32], sizes = [2, 32], strides = [1, 1]} : vector<2x128xf32> to vector<2x32xf32>
    %523 = arith.negf %522 : vector<2x32xf32>
    %524 = math.exp %523 : vector<2x32xf32>
    %cst_163 = arith.constant 1.000000e+00 : f32
    %525 = vector.broadcast %cst_163 : f32 to vector<2x32xf32>
    %526 = arith.addf %525, %524 : vector<2x32xf32>
    %527 = arith.divf %525, %526 : vector<2x32xf32>
    %528 = vector.extract_strided_slice %515 {offsets = [0, 64], sizes = [2, 32], strides = [1, 1]} : vector<2x128xf32> to vector<2x32xf32>
    %529 = math.tanh %528 : vector<2x32xf32>
    %530 = vector.extract_strided_slice %515 {offsets = [0, 96], sizes = [2, 32], strides = [1, 1]} : vector<2x128xf32> to vector<2x32xf32>
    %531 = arith.negf %530 : vector<2x32xf32>
    %532 = math.exp %531 : vector<2x32xf32>
    %cst_164 = arith.constant 1.000000e+00 : f32
    %533 = vector.broadcast %cst_164 : f32 to vector<2x32xf32>
    %534 = arith.addf %533, %532 : vector<2x32xf32>
    %535 = arith.divf %533, %534 : vector<2x32xf32>
    %536 = arith.mulf %527, %504 : vector<2x32xf32>
    %537 = arith.mulf %521, %529 : vector<2x32xf32>
    %538 = arith.addf %536, %537 : vector<2x32xf32>
    %539 = math.tanh %538 : vector<2x32xf32>
    %540 = arith.mulf %535, %539 : vector<2x32xf32>
    %541 = vector.shape_cast %540 : vector<2x32xf32> to vector<2x1x32xf32>
    %c0_165 = arith.constant 0 : index
    %542 = arith.index_cast %c6_i32_158 : i32 to index
    %c0_166 = arith.constant 0 : index
    %543 = vector.load %arg14[%c0_165, %542, %c0_166] : memref<2x8x32xf32, #tpu.memory_space<vmem>>, vector<2x1x32xf32>
    tpu.vector_store %arg14[%c0_165, %542, %c0_166], %541 {strides = array<i32>} : memref<2x8x32xf32, #tpu.memory_space<vmem>>, vector<2x1x32xf32>,
    %c7_i32_167 = arith.constant 7 : i32
    %c0_168 = arith.constant 0 : index
    %544 = arith.index_cast %c7_i32_167 : i32 to index
    %c0_169 = arith.constant 0 : index
    %545 = vector.load %arg15[%c0_168, %544, %c0_169] : memref<2x8x128xf32, #tpu.memory_space<vmem>>, vector<2x1x128xf32>
    %546 = vector.shape_cast %545 : vector<2x1x128xf32> to vector<2x128xf32>
    %547 = arith.truncf %540 : vector<2x32xf32> to vector<2x32xbf16>
    %cst_170 = arith.constant dense<0.000000e+00> : vector<2x128xf32>
    %548 = tpu.matmul %547, %294, %cst_170 {dimension_numbers = #tpu.dot_dimension_numbers<[1], [0], [0], [1], [0, 0, 1, 1], [], []>} : vector<2x32xbf16>, vector<32x128xbf16>, vector<2x128xf32> -> vector<2x128xf32>
    %549 = arith.addf %546, %548 : vector<2x128xf32>
    %550 = vector.extract_strided_slice %549 {offsets = [0, 0], sizes = [2, 32], strides = [1, 1]} : vector<2x128xf32> to vector<2x32xf32>
    %551 = arith.negf %550 : vector<2x32xf32>
    %552 = math.exp %551 : vector<2x32xf32>
    %cst_171 = arith.constant 1.000000e+00 : f32
    %553 = vector.broadcast %cst_171 : f32 to vector<2x32xf32>
    %554 = arith.addf %553, %552 : vector<2x32xf32>
    %555 = arith.divf %553, %554 : vector<2x32xf32>
    %556 = vector.extract_strided_slice %549 {offsets = [0, 32], sizes = [2, 32], strides = [1, 1]} : vector<2x128xf32> to vector<2x32xf32>
    %557 = arith.negf %556 : vector<2x32xf32>
    %558 = math.exp %557 : vector<2x32xf32>
    %cst_172 = arith.constant 1.000000e+00 : f32
    %559 = vector.broadcast %cst_172 : f32 to vector<2x32xf32>
    %560 = arith.addf %559, %558 : vector<2x32xf32>
    %561 = arith.divf %559, %560 : vector<2x32xf32>
    %562 = vector.extract_strided_slice %549 {offsets = [0, 64], sizes = [2, 32], strides = [1, 1]} : vector<2x128xf32> to vector<2x32xf32>
    %563 = math.tanh %562 : vector<2x32xf32>
    %564 = vector.extract_strided_slice %549 {offsets = [0, 96], sizes = [2, 32], strides = [1, 1]} : vector<2x128xf32> to vector<2x32xf32>
    %565 = arith.negf %564 : vector<2x32xf32>
    %566 = math.exp %565 : vector<2x32xf32>
    %cst_173 = arith.constant 1.000000e+00 : f32
    %567 = vector.broadcast %cst_173 : f32 to vector<2x32xf32>
    %568 = arith.addf %567, %566 : vector<2x32xf32>
    %569 = arith.divf %567, %568 : vector<2x32xf32>
    %570 = arith.mulf %561, %538 : vector<2x32xf32>
    %571 = arith.mulf %555, %563 : vector<2x32xf32>
    %572 = arith.addf %570, %571 : vector<2x32xf32>
    %573 = math.tanh %572 : vector<2x32xf32>
    %574 = arith.mulf %569, %573 : vector<2x32xf32>
    %575 = vector.shape_cast %574 : vector<2x32xf32> to vector<2x1x32xf32>
    %c0_174 = arith.constant 0 : index
    %576 = arith.index_cast %c7_i32_167 : i32 to index
    %c0_175 = arith.constant 0 : index
    %577 = vector.load %arg14[%c0_174, %576, %c0_175] : memref<2x8x32xf32, #tpu.memory_space<vmem>>, vector<2x1x32xf32>
    tpu.vector_store %arg14[%c0_174, %576, %c0_175], %575 {strides = array<i32>} : memref<2x8x32xf32, #tpu.memory_space<vmem>>, vector<2x1x32xf32>,
    %c8_i32_176 = arith.constant 8 : i32
    %c0_177 = arith.constant 0 : index
    %c0_178 = arith.constant 0 : index
    %c0_179 = arith.constant 0 : index
    %578 = vector.load %arg12[%c0_177, %c0_178, %c0_179] : memref<1x2x32xf32, #tpu.memory_space<vmem>>, vector<1x2x32xf32>
    %579 = vector.shape_cast %578 : vector<1x2x32xf32> to vector<2x32xf32>
    %580 = vector.shape_cast %574 : vector<2x32xf32> to vector<1x2x32xf32>
    tpu.vector_store %arg12[%c0_177, %c0_178, %c0_179], %580 {strides = array<i32>} : memref<1x2x32xf32, #tpu.memory_space<vmem>>, vector<1x2x32xf32>,
    %c0_180 = arith.constant 0 : index
    %c0_181 = arith.constant 0 : index
    %c0_182 = arith.constant 0 : index
    %581 = vector.load %arg13[%c0_180, %c0_181, %c0_182] : memref<1x2x32xf32, #tpu.memory_space<vmem>>, vector<1x2x32xf32>
    %582 = vector.shape_cast %581 : vector<1x2x32xf32> to vector<2x32xf32>
    %583 = vector.shape_cast %572 : vector<2x32xf32> to vector<1x2x32xf32>
    tpu.vector_store %arg13[%c0_180, %c0_181, %c0_182], %583 {strides = array<i32>} : memref<1x2x32xf32, #tpu.memory_space<vmem>>, vector<1x2x32xf32>,
    %c0_183 = arith.constant 0 : index
    %c0_184 = arith.constant 0 : index
    %c0_185 = arith.constant 0 : index
    %584 = vector.load %arg14[%c0_183, %c0_184, %c0_185] : memref<2x8x32xf32, #tpu.memory_space<vmem>>, vector<2x8x32xf32>
    %c0_186 = arith.constant 0 : index
    %c0_187 = arith.constant 0 : index
    %c0_188 = arith.constant 0 : index
    %585 = vector.load %arg11[%c0_186, %c0_187, %c0_188] : memref<2x8x32xf32, #tpu.memory_space<vmem>>, vector<2x8x32xf32>
    tpu.vector_store %arg11[%c0_186, %c0_187, %c0_188], %584 {strides = array<i32>} : memref<2x8x32xf32, #tpu.memory_space<vmem>>, vector<2x8x32xf32>,
    return
  }
  func.func @transform_0(%arg0: i32) -> (i32, i32, i32) {
    %c0_i32 = arith.constant 0 : i32
    %c0_i32_0 = arith.constant 0 : i32
    %c0_i32_1 = arith.constant 0 : i32
    %c0_i32_2 = arith.constant 0 : i32
    return %c0_i32, %c0_i32_0, %c0_i32_1 : i32, i32, i32
  }
  func.func @transform_1(%arg0: i32) -> (i32, i32) {
    %c0_i32 = arith.constant 0 : i32
    %c0_i32_0 = arith.constant 0 : i32
    %c0_i32_1 = arith.constant 0 : i32
    return %c0_i32, %c0_i32_0 : i32, i32
  }
  func.func @transform_2(%arg0: i32) -> (i32, i32) {
    %c0_i32 = arith.constant 0 : i32
    %c0_i32_0 = arith.constant 0 : i32
    %c0_i32_1 = arith.constant 0 : i32
    return %c0_i32, %c0_i32_0 : i32, i32
  }
  func.func @transform_3(%arg0: i32) -> (i32, i32) {
    %c0_i32 = arith.constant 0 : i32
    %c0_i32_0 = arith.constant 0 : i32
    %c0_i32_1 = arith.constant 0 : i32
    return %c0_i32, %c0_i32_0 : i32, i32
  }
  func.func @transform_4(%arg0: i32) -> (i32, i32) {
    %c0_i32 = arith.constant 0 : i32
    %c0_i32_0 = arith.constant 0 : i32
    %c0_i32_1 = arith.constant 0 : i32
    return %c0_i32, %c0_i32_0 : i32, i32
  }
  func.func @transform_5(%arg0: i32) -> (i32, i32) {
    %c0_i32 = arith.constant 0 : i32
    %c0_i32_0 = arith.constant 0 : i32
    %c0_i32_1 = arith.constant 0 : i32
    return %c0_i32, %c0_i32_0 : i32, i32
  }
  func.func @transform_6(%arg0: i32) -> (i32, i32) {
    %c0_i32 = arith.constant 0 : i32
    %c0_i32_0 = arith.constant 0 : i32
    %c0_i32_1 = arith.constant 0 : i32
    return %c0_i32, %c0_i32_0 : i32, i32
  }
  func.func @transform_7(%arg0: i32) -> (i32, i32, i32) {
    %c0_i32 = arith.constant 0 : i32
    %c0_i32_0 = arith.constant 0 : i32
    %c0_i32_1 = arith.constant 0 : i32
    %c0_i32_2 = arith.constant 0 : i32
    return %c0_i32, %c0_i32_0, %c0_i32_1 : i32, i32, i32
  }
  func.func @transform_8(%arg0: i32) -> (i32, i32, i32) {
    %c0_i32 = arith.constant 0 : i32
    %c0_i32_0 = arith.constant 0 : i32
    %c0_i32_1 = arith.constant 0 : i32
    %c0_i32_2 = arith.constant 0 : i32
    return %c0_i32, %c0_i32_0, %c0_i32_1 : i32, i32, i32
  }
  func.func @transform_9(%arg0: i32) -> (i32, i32, i32) {
    %c0_i32 = arith.constant 0 : i32
    %c0_i32_0 = arith.constant 0 : i32
    %c0_i32_1 = arith.constant 0 : i32
    %c0_i32_2 = arith.constant 0 : i32
    return %c0_i32, %c0_i32_0, %c0_i32_1 : i32, i32, i32
  }
  func.func @transform_10(%arg0: i32) -> (i32, i32, i32) {
    %c0_i32 = arith.constant 0 : i32
    %c0_i32_0 = arith.constant 0 : i32
    %c0_i32_1 = arith.constant 0 : i32
    %c0_i32_2 = arith.constant 0 : i32
    return %c0_i32, %c0_i32_0, %c0_i32_1 : i32, i32, i32
  }
  func.func @transform_11(%arg0: i32) -> (i32, i32, i32) {
    %c0_i32 = arith.constant 0 : i32
    %c0_i32_0 = arith.constant 0 : i32
    %c0_i32_1 = arith.constant 0 : i32
    %c0_i32_2 = arith.constant 0 : i32
    return %c0_i32, %c0_i32_0, %c0_i32_1 : i32, i32, i32
  }
  func.func @transform_12(%arg0: i32) -> (i32, i32, i32) {
    %c0_i32 = arith.constant 0 : i32
    %c0_i32_0 = arith.constant 0 : i32
    %c0_i32_1 = arith.constant 0 : i32
    %c0_i32_2 = arith.constant 0 : i32
    return %c0_i32, %c0_i32_0, %c0_i32_1 : i32, i32, i32
  }
}

</mosaic_0001>

<llo_original>
// kernel: global_ae_forward.1
$region0: #{global_ae_forward.1}
  #allocation0 [shape = 'u32[]', space=smem, size = 0x4, offset = 0x4, fixed_abs, tag = 'smem constant byte address 0x4 - core index']
  #allocation1 [shape = 'u32[144,128]{1,0:T(1,128)}', space=vmem, size = 0x12000, scoped, tag = 'internal scratch']
  #allocation2 [shape = 'f32[2,8,32]{2,1,0:T(8,128)}', space=vmem, size = 0x2000, scoped, tag = 'scratch operand']
  #allocation3 [shape = 'f32[2,8,128]{2,1,0:T(8,128)}', space=vmem, size = 0x2000, scoped, tag = 'scratch operand']
  %s0 = inlined_call_operand.vmem [shape: f32[2,8,4], index: 0, kind: input, shape index: {}]
  %s1 = inlined_call_operand.vmem [shape: bf16[4,128], index: 1, kind: input, shape index: {}]
  %s2 = inlined_call_operand.vmem [shape: bf16[32,128], index: 2, kind: input, shape index: {}]
  %s3 = inlined_call_operand.vmem [shape: f32[1,128], index: 3, kind: input, shape index: {}]
  %s4 = inlined_call_operand.vmem [shape: bf16[32,128], index: 4, kind: input, shape index: {}]
  %s5 = inlined_call_operand.vmem [shape: bf16[32,128], index: 5, kind: input, shape index: {}]
  %s6 = inlined_call_operand.vmem [shape: f32[1,128], index: 6, kind: input, shape index: {}]
  %s7 = inlined_call_operand.hbm [shape: f32[2,8,32], index: 7, kind: output, shape index: {0}]
  %s8 = inlined_call_operand.hbm [shape: f32[1,2,32], index: 8, kind: output, shape index: {1}]
  %s9 = inlined_call_operand.hbm [shape: f32[1,2,32], index: 9, kind: output, shape index: {2}]
  %s10 = inlined_call_operand.hbm [shape: f32[2,8,32], index: 10, kind: output, shape index: {3}]
  %s11 = inlined_call_operand.hbm [shape: f32[1,2,32], index: 11, kind: output, shape index: {4}]
  %s12 = inlined_call_operand.hbm [shape: f32[1,2,32], index: 12, kind: output, shape index: {5}]
  %13 = xla_tuple %s7, %s8, %s9, %s10, %s11, %s12
  %s14 = sld [smem:[#allocation0]]
  $region78: #{global_ae_forward.1} parent=0
    _
  %s16 = ssub.s32 1, %s14
  %s17 = scalar_select 0, %s16, %s14
  $region1: #{global_ae_forward.1} parent=0
    #allocation4 [shape = 'u8[8192]{0}', space=vmem, size = 0x2000, scoped, tag = 'output window, operand 0, single buffered']
    #allocation5 [shape = 's32[1]{0}', space=sflag, size = 0x4, scoped, tag = 'scoped memory for global_ae_forward.1']
    #allocation6 [shape = 'u8[1024]{0}', space=vmem, size = 0x400, scoped, tag = 'output window, operand 1, single buffered']
    #allocation7 [shape = 's32[1]{0}', space=sflag, size = 0x4, scoped, tag = 'scoped memory for global_ae_forward.1']
    #allocation8 [shape = 'u8[1024]{0}', space=vmem, size = 0x400, scoped, tag = 'output window, operand 2, single buffered']
    #allocation9 [shape = 'u8[8192]{0}', space=vmem, size = 0x2000, scoped, tag = 'output window, operand 3, single buffered']
    #allocation10 [shape = 's32[1]{0}', space=sflag, size = 0x4, scoped, tag = 'scoped memory for global_ae_forward.1']
    #allocation11 [shape = 'u8[1024]{0}', space=vmem, size = 0x400, scoped, tag = 'output window, operand 4, single buffered']
    #allocation12 [shape = 'u8[1024]{0}', space=vmem, size = 0x400, scoped, tag = 'output window, operand 5, single buffered']
    #allocation13 [shape = 's32[1]{0}', space=sflag, size = 0x4, scoped, tag = 'scoped memory for global_ae_forward.1']
    %18 = vsyncpa [#allocation5], 0
    %19 = vsyncpa [#allocation7], 0
    %20 = vsyncpa [#allocation10], 0
    %21 = vsyncpa [#allocation13], 0
    // Predicated region
    $region2: #{global_ae_forward.1} parent=1 // pred_check
      _
    $region3: #{global_ae_forward.1} parent=1 // pred_check_branch
      %23 = sbr.rel (0) target = $region5
    $region4: #{global_ae_forward.1} parent=1 // pred_region
      _
    $region5: #{global_ae_forward.1} parent=1 // pred_fallthru
      _
    // Predicated region
    $region6: #{global_ae_forward.1} parent=1 // pred_check
      _
    $region7: #{global_ae_forward.1} parent=1 // pred_check_branch
      %25 = sbr.rel (0) target = $region9
    $region8: #{global_ae_forward.1} parent=1 // pred_region
      _
    $region9: #{global_ae_forward.1} parent=1 // pred_fallthru
      _
    // Predicated region
    $region10: #{global_ae_forward.1} parent=1 // pred_check
      _
    $region11: #{global_ae_forward.1} parent=1 // pred_check_branch
      %27 = sbr.rel (0) target = $region13
    $region12: #{global_ae_forward.1} parent=1 // pred_region
      _
    $region13: #{global_ae_forward.1} parent=1 // pred_fallthru
      _
    // Predicated region
    $region14: #{global_ae_forward.1} parent=1 // pred_check
      _
    $region15: #{global_ae_forward.1} parent=1 // pred_check_branch
      %29 = sbr.rel (0) target = $region17
    $region16: #{global_ae_forward.1} parent=1 // pred_region
      _
    $region17: #{global_ae_forward.1} parent=1 // pred_fallthru
      _
    // Predicated region
    $region18: #{global_ae_forward.1} parent=1 // pred_check
      _
    $region19: #{global_ae_forward.1} parent=1 // pred_check_branch
      %31 = sbr.rel (0) target = $region21
    $region20: #{global_ae_forward.1} parent=1 // pred_region
      _
    $region21: #{global_ae_forward.1} parent=1 // pred_fallthru
      _
    // Predicated region
    $region22: #{global_ae_forward.1} parent=1 // pred_check
      _
    $region23: #{global_ae_forward.1} parent=1 // pred_check_branch
      %33 = sbr.rel (0) target = $region25
    $region24: #{global_ae_forward.1} parent=1 // pred_region
      _
    $region25: #{global_ae_forward.1} parent=1 // pred_fallthru
      _
    // Predicated region
    $region26: #{global_ae_forward.1} parent=1 // pred_check
      _
    $region27: #{global_ae_forward.1} parent=1 // pred_check_branch
      %35 = sbr.rel (0) target = $region29
    $region28: #{global_ae_forward.1} parent=1 // pred_region
      _
    $region29: #{global_ae_forward.1} parent=1 // pred_fallthru
      _
    %v37 = vld [vmem:[%s1] sm:$0x3]
    %v38 = vld [vmem:[%s2] sm:$0xf]
    %v39 = vld [vmem:[%s2 + $0x4] sm:$0xf]
    %v40 = vld [vmem:[%s2 + $0x8] sm:$0xf]
    %v41 = vld [vmem:[%s2 + $0xc] sm:$0xf]
    %v42 = vld [vmem:[%s3] sm:$0x1]
    %v43 = vld [vmem:[%s0] sm:$0xff]
    %v44 = vld [vmem:[%s0 + $0x8] sm:$0xff]
    %v45 = vpack.c.bf16 %v44, %v43
    %v47 = vlaneseq
    %v48 = vshrl.u32 %v47, 7
    %v49 = vsub.s32 0, %v48
    %v50 = vrot.slane %v42, %v49
    %vm52 = vcmask 31744
    %v54 = vsel %vm52, %v45, 0
    %vm56 = vcmask 1041408
    %v58 = vsel %vm56, %v37, 0
    %60 = vmatprep.subr.bf16.mxu0 0
    %61 = vmatpush1.bf16.msra.mxu0 0
    %62 = vmatprep.subr.bf16.mxu0 0
    %63 = vmatpush1.bf16.msra.mxu0 0
    %64 = vmatprep.subr.bf16.mxu0 0
    %65 = vmatpush1.bf16.msra.mxu0 0
    %66 = vmatprep.subr.bf16.mxu0 0
    %67 = vmatpush1.bf16.msra.mxu0 0
    %68 = vmatprep.subr.bf16.mxu0 0
    %69 = vmatpush1.bf16.msra.mxu0 0
    %70 = vmatprep.subr.bf16.mxu0 0
    %71 = vmatpush1.bf16.msra.mxu0 0
    %72 = vmatprep.subr.bf16.mxu0 0
    %73 = vmatpush1.bf16.msra.mxu0 0
    %74 = vmatprep.subr.bf16.mxu0 0
    %75 = vmatpush1.bf16.msra.mxu0 %v58
    %76 = vmatprep.subr.bf16.mxu0 0
    %77 = vmatpush2.bf16.msra.mxu0 0
    %78 = vmatprep.subr.bf16.mxu0 0
    %79 = vmatpush2.bf16.msra.mxu0 0
    %80 = vmatprep.subr.bf16.mxu0 0
    %81 = vmatpush2.bf16.msra.mxu0 0
    %82 = vmatprep.subr.bf16.mxu0 0
    %83 = vmatpush2.bf16.msra.mxu0 0
    %84 = vmatprep.subr.bf16.mxu0 0
    %85 = vmatpush2.bf16.msra.mxu0 0
    %86 = vmatprep.subr.bf16.mxu0 0
    %87 = vmatpush2.bf16.msra.mxu0 0
    %88 = vmatprep.subr.bf16.mxu0 0
    %89 = vmatpush2.bf16.msra.mxu0 0
    %90 = vmatprep.subr.bf16.mxu0 0
    %91 = vmatpush2.bf16.msra.mxu0 0
    %92 = vmatprep.mubr.bf16.mxu0 0
    %93 = vmatmul.mubr.bf16.gmra.mxu0 %v54
    %v94 = vpop.f32.mrf.mxu0
    %v95 = vadd.f32 %v50, %v94
    %v96 = vpop.f32.mrf.mxu0
    %v97 = vpop.f32.mrf.mxu0
    %v98 = vadd.f32 %v50, %v97
    %v99 = vpop.f32.mrf.mxu0
    %100 = vdwg.mxu0
    %101 = vst [vmem:[#allocation3] sm:$0xff] %v95
    %102 = vst [vmem:[#allocation3 + $0x8] sm:$0xff] %v98
    %v103 = vld [vmem:[#allocation3] sm:$0x1]
    %v104 = vld [vmem:[#allocation3 + $0x8] sm:$0x1]
    %v109 = vunpack.c.l.b16 %v38
    %v110 = vunpack.c.l.b16 %v39
    %v111 = vunpack.c.l.b16 %v40
    %v112 = vunpack.c.l.b16 %v41
    %v113 = vpack.c.b16 %v110, %v109
    %v114 = vpack.c.b16 %v112, %v111
    %vm117 = vcmask 261120
    %v119 = vsel %vm117, 0, 0
    %121 = vmatprep.subr.bf16.mxu0 0
    %122 = vmatpush1.bf16.msra.mxu0 0
    %123 = vmatprep.subr.bf16.mxu0 0
    %124 = vmatpush1.bf16.msra.mxu0 0
    %125 = vmatprep.subr.bf16.mxu0 0
    %126 = vmatpush1.bf16.msra.mxu0 0
    %127 = vmatprep.subr.bf16.mxu0 0
    %128 = vmatpush1.bf16.msra.mxu0 0
    %129 = vmatprep.subr.bf16.mxu0 0
    %130 = vmatpush1.bf16.msra.mxu0 0
    %131 = vmatprep.subr.bf16.mxu0 0
    %132 = vmatpush1.bf16.msra.mxu0 0
    %133 = vmatprep.subr.bf16.mxu0 0
    %134 = vmatpush1.bf16.msra.mxu0 %v114
    %135 = vmatprep.subr.bf16.mxu0 0
    %136 = vmatpush1.bf16.msra.mxu0 %v113
    %137 = vmatprep.subr.bf16.mxu0 0
    %138 = vmatpush2.bf16.msra.mxu0 0
    %139 = vmatprep.subr.bf16.mxu0 0
    %140 = vmatpush2.bf16.msra.mxu0 0
    %141 = vmatprep.subr.bf16.mxu0 0
    %142 = vmatpush2.bf16.msra.mxu0 0
    %143 = vmatprep.subr.bf16.mxu0 0
    %144 = vmatpush2.bf16.msra.mxu0 0
    %145 = vmatprep.subr.bf16.mxu0 0
    %146 = vmatpush2.bf16.msra.mxu0 0
    %147 = vmatprep.subr.bf16.mxu0 0
    %148 = vmatpush2.bf16.msra.mxu0 0
    %149 = vmatprep.subr.bf16.mxu0 0
    %150 = vmatpush2.bf16.msra.mxu0 0
    %151 = vmatprep.subr.bf16.mxu0 0
    %152 = vmatpush2.bf16.msra.mxu0 0
    %153 = vmatprep.mubr.bf16.mxu0 0
    %154 = vmatmul.mubr.bf16.gmra.mxu0 %v119
    %v155 = vpop.f32.mrf.mxu0
    %v156 = vadd.f32 0.0, %v155
    %v157 = vpop.f32.mrf.mxu0
    %v158 = vpop.f32.mrf.mxu0
    %v159 = vpop.f32.mrf.mxu0
    %160 = vdwg.mxu0
    %v162 = vrot.slane %v156, 1
    %v165 = vadd.f32 %v103, %v156
    %v166 = vadd.f32 %v104, %v162
    %v167 = vxor.u32 %v165, 2147483648
    %v168 = vxor.u32 %v166, 2147483648
    %v169 = vmul.f32 %v167, 1.442695
    %v170 = vpow.pop %v169
    %v171 = vmul.f32 %v168, 1.442695
    %v172 = vpow.pop %v171
    %v173 = vadd.f32 %v170, 1.0
    %v174 = vadd.f32 %v172, 1.0
    %v175 = vrcp.pop %v173
    %v176 = vmul.f32 1.0, %v175
    %v177 = vrcp.pop %v174
    %v178 = vmul.f32 1.0, %v177
    %v179 = vtanh.pop %v165
    %v180 = vtanh.pop %v166
    %v181 = vmul.f32 %v176, 0.0
    %v182 = vmul.f32 %v178, 0.0
    %185 = vrot.lane.b32.xlu0 %v179, 64
    %v186 = vpop.permute.xlu0 %185
    %187 = vrot.lane.b32.xlu0 %v180, 64
    %v188 = vpop.permute.xlu0 %187
    %v191 = vmul.f32 %v176, %v186
    %v192 = vmul.f32 %v178, %v188
    %195 = vrot.lane.b32.xlu0 %v191, 32
    %v196 = vpop.permute.xlu0 %195
    %197 = vrot.lane.b32.xlu0 %v192, 32
    %v198 = vpop.permute.xlu0 %197
    %v201 = vadd.f32 %v181, %v196
    %v202 = vadd.f32 %v182, %v198
    %v203 = vtanh.pop %v201
    %v204 = vtanh.pop %v202
    %207 = vrot.lane.b32.xlu0 %v203, 64
    %v208 = vpop.permute.xlu0 %207
    %209 = vrot.lane.b32.xlu0 %v204, 64
    %v210 = vpop.permute.xlu0 %209
    %v213 = vmul.f32 %v176, %v208
    %v214 = vmul.f32 %v178, %v210
    %217 = vrot.lane.b32.xlu0 %v213, 32
    %v218 = vpop.permute.xlu0 %217
    %219 = vrot.lane.b32.xlu0 %v214, 32
    %v220 = vpop.permute.xlu0 %219
    %vm223 = vcmask 253952
    %224 = vst.msk [vmem:[#allocation2] sm:$0x1] %vm223, %v218
    %225 = vst.msk [vmem:[#allocation2 + $0x8] sm:$0x1] %vm223, %v220
    %v226 = vld [vmem:[#allocation3 + $0x1] sm:$0x1]
    %v227 = vld [vmem:[#allocation3 + $0x9] sm:$0x1]
    %v228 = vpack.c.bf16 %v213, %v213
    %v229 = vpack.c.bf16 %v214, %v214
    %v232 = vunpack.c.l.b16 %v228
    %v233 = vunpack.c.l.b16 %v229
    %v234 = vrot.slane %v233, 7
    %vm235 = vcmask 1041409
    %v236 = vsel %vm235, %v234, %v232
    %v237 = vpack.c.b16 %v236, %v236
    %238 = vrot.lane.b32.xlu0 %v237, 32
    %v239 = vpop.permute.xlu0 %238
    %v241 = vsel %vm117, %v239, 0
    %243 = vmatprep.subr.bf16.mxu0 0
    %244 = vmatpush1.bf16.msra.mxu0 0
    %245 = vmatprep.subr.bf16.mxu0 0
    %246 = vmatpush1.bf16.msra.mxu0 0
    %247 = vmatprep.subr.bf16.mxu0 0
    %248 = vmatpush1.bf16.msra.mxu0 0
    %249 = vmatprep.subr.bf16.mxu0 0
    %250 = vmatpush1.bf16.msra.mxu0 0
    %251 = vmatprep.subr.bf16.mxu0 0
    %252 = vmatpush1.bf16.msra.mxu0 0
    %253 = vmatprep.subr.bf16.mxu0 0
    %254 = vmatpush1.bf16.msra.mxu0 0
    %255 = vmatprep.subr.bf16.mxu0 0
    %256 = vmatpush1.bf16.msra.mxu0 %v114
    %257 = vmatprep.subr.bf16.mxu0 0
    %258 = vmatpush1.bf16.msra.mxu0 %v113
    %259 = vmatprep.subr.bf16.mxu0 0
    %260 = vmatpush2.bf16.msra.mxu0 0
    %261 = vmatprep.subr.bf16.mxu0 0
    %262 = vmatpush2.bf16.msra.mxu0 0
    %263 = vmatprep.subr.bf16.mxu0 0
    %264 = vmatpush2.bf16.msra.mxu0 0
    %265 = vmatprep.subr.bf16.mxu0 0
    %266 = vmatpush2.bf16.msra.mxu0 0
    %267 = vmatprep.subr.bf16.mxu0 0
    %268 = vmatpush2.bf16.msra.mxu0 0
    %269 = vmatprep.subr.bf16.mxu0 0
    %270 = vmatpush2.bf16.msra.mxu0 0
    %271 = vmatprep.subr.bf16.mxu0 0
    %272 = vmatpush2.bf16.msra.mxu0 0
    %273 = vmatprep.subr.bf16.mxu0 0
    %274 = vmatpush2.bf16.msra.mxu0 0
    %275 = vmatprep.mubr.bf16.mxu0 0
    %276 = vmatmul.mubr.bf16.gmra.mxu0 %v241
    %v277 = vpop.f32.mrf.mxu0
    %v278 = vadd.f32 0.0, %v277
    %v279 = vpop.f32.mrf.mxu0
    %v280 = vpop.f32.mrf.mxu0
    %v281 = vpop.f32.mrf.mxu0
    %282 = vdwg.mxu0
    %v284 = vrot.slane %v278, 1
    %v287 = vadd.f32 %v226, %v278
    %v288 = vadd.f32 %v227, %v284
    %v289 = vxor.u32 %v287, 2147483648
    %v290 = vxor.u32 %v288, 2147483648
    %v291 = vmul.f32 %v289, 1.442695
    %v292 = vpow.pop %v291
    %v293 = vmul.f32 %v290, 1.442695
    %v294 = vpow.pop %v293
    %v295 = vadd.f32 %v292, 1.0
    %v296 = vadd.f32 %v294, 1.0
    %v297 = vrcp.pop %v295
    %v298 = vmul.f32 1.0, %v297
    %v299 = vrcp.pop %v296
    %v300 = vmul.f32 1.0, %v299
    %v301 = vtanh.pop %v287
    %v302 = vtanh.pop %v288
    %v303 = vmul.f32 %v298, %v201
    %v304 = vmul.f32 %v300, %v202
    %307 = vrot.lane.b32.xlu0 %v301, 64
    %v308 = vpop.permute.xlu0 %307
    %309 = vrot.lane.b32.xlu0 %v302, 64
    %v310 = vpop.permute.xlu0 %309
    %v313 = vmul.f32 %v298, %v308
    %v314 = vmul.f32 %v300, %v310
    %317 = vrot.lane.b32.xlu0 %v313, 32
    %v318 = vpop.permute.xlu0 %317
    %319 = vrot.lane.b32.xlu0 %v314, 32
    %v320 = vpop.permute.xlu0 %319
    %v323 = vadd.f32 %v303, %v318
    %v324 = vadd.f32 %v304, %v320
    %v325 = vtanh.pop %v323
    %v326 = vtanh.pop %v324
    %329 = vrot.lane.b32.xlu0 %v325, 64
    %v330 = vpop.permute.xlu0 %329
    %331 = vrot.lane.b32.xlu0 %v326, 64
    %v332 = vpop.permute.xlu0 %331
    %v335 = vmul.f32 %v298, %v330
    %v336 = vmul.f32 %v300, %v332
    %339 = vrot.lane.b32.xlu0 %v335, 32
    %v340 = vpop.permute.xlu0 %339
    %341 = vrot.lane.b32.xlu0 %v336, 32
    %v342 = vpop.permute.xlu0 %341
    %345 = vst.msk [vmem:[#allocation2 + $0x1] sm:$0x1] %vm223, %v340
    %346 = vst.msk [vmem:[#allocation2 + $0x9] sm:$0x1] %vm223, %v342
    %v347 = vld [vmem:[#allocation3 + $0x2] sm:$0x1]
    %v348 = vld [vmem:[#allocation3 + $0xa] sm:$0x1]
    %v349 = vpack.c.bf16 %v335, %v335
    %v350 = vpack.c.bf16 %v336, %v336
    %v353 = vunpack.c.l.b16 %v349
    %v354 = vunpack.c.l.b16 %v350
    %v355 = vrot.slane %v354, 7
    %v356 = vsel %vm235, %v355, %v353
    %v357 = vpack.c.b16 %v356, %v356
    %358 = vrot.lane.b32.xlu0 %v357, 32
    %v359 = vpop.permute.xlu0 %358
    %v361 = vsel %vm117, %v359, 0
    %363 = vmatprep.subr.bf16.mxu0 0
    %364 = vmatpush1.bf16.msra.mxu0 0
    %365 = vmatprep.subr.bf16.mxu0 0
    %366 = vmatpush1.bf16.msra.mxu0 0
    %367 = vmatprep.subr.bf16.mxu0 0
    %368 = vmatpush1.bf16.msra.mxu0 0
    %369 = vmatprep.subr.bf16.mxu0 0
    %370 = vmatpush1.bf16.msra.mxu0 0
    %371 = vmatprep.subr.bf16.mxu0 0
    %372 = vmatpush1.bf16.msra.mxu0 0
    %373 = vmatprep.subr.bf16.mxu0 0
    %374 = vmatpush1.bf16.msra.mxu0 0
    %375 = vmatprep.subr.bf16.mxu0 0
    %376 = vmatpush1.bf16.msra.mxu0 %v114
    %377 = vmatprep.subr.bf16.mxu0 0
    %378 = vmatpush1.bf16.msra.mxu0 %v113
    %379 = vmatprep.subr.bf16.mxu0 0
    %380 = vmatpush2.bf16.msra.mxu0 0
    %381 = vmatprep.subr.bf16.mxu0 0
    %382 = vmatpush2.bf16.msra.mxu0 0
    %383 = vmatprep.subr.bf16.mxu0 0
    %384 = vmatpush2.bf16.msra.mxu0 0
    %385 = vmatprep.subr.bf16.mxu0 0
    %386 = vmatpush2.bf16.msra.mxu0 0
    %387 = vmatprep.subr.bf16.mxu0 0
    %388 = vmatpush2.bf16.msra.mxu0 0
    %389 = vmatprep.subr.bf16.mxu0 0
    %390 = vmatpush2.bf16.msra.mxu0 0
    %391 = vmatprep.subr.bf16.mxu0 0
    %392 = vmatpush2.bf16.msra.mxu0 0
    %393 = vmatprep.subr.bf16.mxu0 0
    %394 = vmatpush2.bf16.msra.mxu0 0
    %395 = vmatprep.mubr.bf16.mxu0 0
    %396 = vmatmul.mubr.bf16.gmra.mxu0 %v361
    %v397 = vpop.f32.mrf.mxu0
    %v398 = vadd.f32 0.0, %v397
    %v399 = vpop.f32.mrf.mxu0
    %v400 = vpop.f32.mrf.mxu0
    %v401 = vpop.f32.mrf.mxu0
    %402 = vdwg.mxu0
    %v404 = vrot.slane %v398, 1
    %v407 = vadd.f32 %v347, %v398
    %v408 = vadd.f32 %v348, %v404
    %v409 = vxor.u32 %v407, 2147483648
    %v410 = vxor.u32 %v408, 2147483648
    %v411 = vmul.f32 %v409, 1.442695
    %v412 = vpow.pop %v411
    %v413 = vmul.f32 %v410, 1.442695
    %v414 = vpow.pop %v413
    %v415 = vadd.f32 %v412, 1.0
    %v416 = vadd.f32 %v414, 1.0
    %v417 = vrcp.pop %v415
    %v418 = vmul.f32 1.0, %v417
    %v419 = vrcp.pop %v416
    %v420 = vmul.f32 1.0, %v419
    %v421 = vtanh.pop %v407
    %v422 = vtanh.pop %v408
    %v423 = vmul.f32 %v418, %v323
    %v424 = vmul.f32 %v420, %v324
    %427 = vrot.lane.b32.xlu0 %v421, 64
    %v428 = vpop.permute.xlu0 %427
    %429 = vrot.lane.b32.xlu0 %v422, 64
    %v430 = vpop.permute.xlu0 %429
    %v433 = vmul.f32 %v418, %v428
    %v434 = vmul.f32 %v420, %v430
    %437 = vrot.lane.b32.xlu0 %v433, 32
    %v438 = vpop.permute.xlu0 %437
    %439 = vrot.lane.b32.xlu0 %v434, 32
    %v440 = vpop.permute.xlu0 %439
    %v443 = vadd.f32 %v423, %v438
    %v444 = vadd.f32 %v424, %v440
    %v445 = vtanh.pop %v443
    %v446 = vtanh.pop %v444
    %449 = vrot.lane.b32.xlu0 %v445, 64
    %v450 = vpop.permute.xlu0 %449
    %451 = vrot.lane.b32.xlu0 %v446, 64
    %v452 = vpop.permute.xlu0 %451
    %v455 = vmul.f32 %v418, %v450
    %v456 = vmul.f32 %v420, %v452
    %459 = vrot.lane.b32.xlu0 %v455, 32
    %v460 = vpop.permute.xlu0 %459
    %461 = vrot.lane.b32.xlu0 %v456, 32
    %v462 = vpop.permute.xlu0 %461
    %465 = vst.msk [vmem:[#allocation2 + $0x2] sm:$0x1] %vm223, %v460
    %466 = vst.msk [vmem:[#allocation2 + $0xa] sm:$0x1] %vm223, %v462
    %v467 = vld [vmem:[#allocation3 + $0x3] sm:$0x1]
    %v468 = vld [vmem:[#allocation3 + $0xb] sm:$0x1]
    %v469 = vpack.c.bf16 %v455, %v455
    %v470 = vpack.c.bf16 %v456, %v456
    %v473 = vunpack.c.l.b16 %v469
    %v474 = vunpack.c.l.b16 %v470
    %v475 = vrot.slane %v474, 7
    %v476 = vsel %vm235, %v475, %v473
    %v477 = vpack.c.b16 %v476, %v476
    %478 = vrot.lane.b32.xlu0 %v477, 32
    %v479 = vpop.permute.xlu0 %478
    %v481 = vsel %vm117, %v479, 0
    %483 = vmatprep.subr.bf16.mxu0 0
    %484 = vmatpush1.bf16.msra.mxu0 0
    %485 = vmatprep.subr.bf16.mxu0 0
    %486 = vmatpush1.bf16.msra.mxu0 0
    %487 = vmatprep.subr.bf16.mxu0 0
    %488 = vmatpush1.bf16.msra.mxu0 0
    %489 = vmatprep.subr.bf16.mxu0 0
    %490 = vmatpush1.bf16.msra.mxu0 0
    %491 = vmatprep.subr.bf16.mxu0 0
    %492 = vmatpush1.bf16.msra.mxu0 0
    %493 = vmatprep.subr.bf16.mxu0 0
    %494 = vmatpush1.bf16.msra.mxu0 0
    %495 = vmatprep.subr.bf16.mxu0 0
    %496 = vmatpush1.bf16.msra.mxu0 %v114
    %497 = vmatprep.subr.bf16.mxu0 0
    %498 = vmatpush1.bf16.msra.mxu0 %v113
    %499 = vmatprep.subr.bf16.mxu0 0
    %500 = vmatpush2.bf16.msra.mxu0 0
    %501 = vmatprep.subr.bf16.mxu0 0
    %502 = vmatpush2.bf16.msra.mxu0 0
    %503 = vmatprep.subr.bf16.mxu0 0
    %504 = vmatpush2.bf16.msra.mxu0 0
    %505 = vmatprep.subr.bf16.mxu0 0
    %506 = vmatpush2.bf16.msra.mxu0 0
    %507 = vmatprep.subr.bf16.mxu0 0
    %508 = vmatpush2.bf16.msra.mxu0 0
    %509 = vmatprep.subr.bf16.mxu0 0
    %510 = vmatpush2.bf16.msra.mxu0 0
    %511 = vmatprep.subr.bf16.mxu0 0
    %512 = vmatpush2.bf16.msra.mxu0 0
    %513 = vmatprep.subr.bf16.mxu0 0
    %514 = vmatpush2.bf16.msra.mxu0 0
    %515 = vmatprep.mubr.bf16.mxu0 0
    %516 = vmatmul.mubr.bf16.gmra.mxu0 %v481
    %v517 = vpop.f32.mrf.mxu0
    %v518 = vadd.f32 0.0, %v517
    %v519 = vpop.f32.mrf.mxu0
    %v520 = vpop.f32.mrf.mxu0
    %v521 = vpop.f32.mrf.mxu0
    %522 = vdwg.mxu0
    %v524 = vrot.slane %v518, 1
    %v527 = vadd.f32 %v467, %v518
    %v528 = vadd.f32 %v468, %v524
    %v529 = vxor.u32 %v527, 2147483648
    %v530 = vxor.u32 %v528, 2147483648
    %v531 = vmul.f32 %v529, 1.442695
    %v532 = vpow.pop %v531
    %v533 = vmul.f32 %v530, 1.442695
    %v534 = vpow.pop %v533
    %v535 = vadd.f32 %v532, 1.0
    %v536 = vadd.f32 %v534, 1.0
    %v537 = vrcp.pop %v535
    %v538 = vmul.f32 1.0, %v537
    %v539 = vrcp.pop %v536
    %v540 = vmul.f32 1.0, %v539
    %v541 = vtanh.pop %v527
    %v542 = vtanh.pop %v528
    %v543 = vmul.f32 %v538, %v443
    %v544 = vmul.f32 %v540, %v444
    %547 = vrot.lane.b32.xlu0 %v541, 64
    %v548 = vpop.permute.xlu0 %547
    %549 = vrot.lane.b32.xlu0 %v542, 64
    %v550 = vpop.permute.xlu0 %549
    %v553 = vmul.f32 %v538, %v548
    %v554 = vmul.f32 %v540, %v550
    %557 = vrot.lane.b32.xlu0 %v553, 32
    %v558 = vpop.permute.xlu0 %557
    %559 = vrot.lane.b32.xlu0 %v554, 32
    %v560 = vpop.permute.xlu0 %559
    %v563 = vadd.f32 %v543, %v558
    %v564 = vadd.f32 %v544, %v560
    %v565 = vtanh.pop %v563
    %v566 = vtanh.pop %v564
    %569 = vrot.lane.b32.xlu0 %v565, 64
    %v570 = vpop.permute.xlu0 %569
    %571 = vrot.lane.b32.xlu0 %v566, 64
    %v572 = vpop.permute.xlu0 %571
    %v575 = vmul.f32 %v538, %v570
    %v576 = vmul.f32 %v540, %v572
    %579 = vrot.lane.b32.xlu0 %v575, 32
    %v580 = vpop.permute.xlu0 %579
    %581 = vrot.lane.b32.xlu0 %v576, 32
    %v582 = vpop.permute.xlu0 %581
    %585 = vst.msk [vmem:[#allocation2 + $0x3] sm:$0x1] %vm223, %v580
    %586 = vst.msk [vmem:[#allocation2 + $0xb] sm:$0x1] %vm223, %v582
    %v587 = vld [vmem:[#allocation3 + $0x4] sm:$0x1]
    %v588 = vld [vmem:[#allocation3 + $0xc] sm:$0x1]
    %v589 = vpack.c.bf16 %v575, %v575
    %v590 = vpack.c.bf16 %v576, %v576
    %v593 = vunpack.c.l.b16 %v589
    %v594 = vunpack.c.l.b16 %v590
    %v595 = vrot.slane %v594, 7
    %v596 = vsel %vm235, %v595, %v593
    %v597 = vpack.c.b16 %v596, %v596
    %598 = vrot.lane.b32.xlu0 %v597, 32
    %v599 = vpop.permute.xlu0 %598
    %v601 = vsel %vm117, %v599, 0
    %603 = vmatprep.subr.bf16.mxu0 0
    %604 = vmatpush1.bf16.msra.mxu0 0
    %605 = vmatprep.subr.bf16.mxu0 0
    %606 = vmatpush1.bf16.msra.mxu0 0
    %607 = vmatprep.subr.bf16.mxu0 0
    %608 = vmatpush1.bf16.msra.mxu0 0
    %609 = vmatprep.subr.bf16.mxu0 0
    %610 = vmatpush1.bf16.msra.mxu0 0
    %611 = vmatprep.subr.bf16.mxu0 0
    %612 = vmatpush1.bf16.msra.mxu0 0
    %613 = vmatprep.subr.bf16.mxu0 0
    %614 = vmatpush1.bf16.msra.mxu0 0
    %615 = vmatprep.subr.bf16.mxu0 0
    %616 = vmatpush1.bf16.msra.mxu0 %v114
    %617 = vmatprep.subr.bf16.mxu0 0
    %618 = vmatpush1.bf16.msra.mxu0 %v113
    %619 = vmatprep.subr.bf16.mxu0 0
    %620 = vmatpush2.bf16.msra.mxu0 0
    %621 = vmatprep.subr.bf16.mxu0 0
    %622 = vmatpush2.bf16.msra.mxu0 0
    %623 = vmatprep.subr.bf16.mxu0 0
    %624 = vmatpush2.bf16.msra.mxu0 0
    %625 = vmatprep.subr.bf16.mxu0 0
    %626 = vmatpush2.bf16.msra.mxu0 0
    %627 = vmatprep.subr.bf16.mxu0 0
    %628 = vmatpush2.bf16.msra.mxu0 0
    %629 = vmatprep.subr.bf16.mxu0 0
    %630 = vmatpush2.bf16.msra.mxu0 0
    %631 = vmatprep.subr.bf16.mxu0 0
    %632 = vmatpush2.bf16.msra.mxu0 0
    %633 = vmatprep.subr.bf16.mxu0 0
    %634 = vmatpush2.bf16.msra.mxu0 0
    %635 = vmatprep.mubr.bf16.mxu0 0
    %636 = vmatmul.mubr.bf16.gmra.mxu0 %v601
    %v637 = vpop.f32.mrf.mxu0
    %v638 = vadd.f32 0.0, %v637
    %v639 = vpop.f32.mrf.mxu0
    %v640 = vpop.f32.mrf.mxu0
    %v641 = vpop.f32.mrf.mxu0
    %642 = vdwg.mxu0
    %v644 = vrot.slane %v638, 1
    %v647 = vadd.f32 %v587, %v638
    %v648 = vadd.f32 %v588, %v644
    %v649 = vxor.u32 %v647, 2147483648
    %v650 = vxor.u32 %v648, 2147483648
    %v651 = vmul.f32 %v649, 1.442695
    %v652 = vpow.pop %v651
    %v653 = vmul.f32 %v650, 1.442695
    %v654 = vpow.pop %v653
    %v655 = vadd.f32 %v652, 1.0
    %v656 = vadd.f32 %v654, 1.0
    %v657 = vrcp.pop %v655
    %v658 = vmul.f32 1.0, %v657
    %v659 = vrcp.pop %v656
    %v660 = vmul.f32 1.0, %v659
    %v661 = vtanh.pop %v647
    %v662 = vtanh.pop %v648
    %v663 = vmul.f32 %v658, %v563
    %v664 = vmul.f32 %v660, %v564
    %667 = vrot.lane.b32.xlu0 %v661, 64
    %v668 = vpop.permute.xlu0 %667
    %669 = vrot.lane.b32.xlu0 %v662, 64
    %v670 = vpop.permute.xlu0 %669
    %v673 = vmul.f32 %v658, %v668
    %v674 = vmul.f32 %v660, %v670
    %677 = vrot.lane.b32.xlu0 %v673, 32
    %v678 = vpop.permute.xlu0 %677
    %679 = vrot.lane.b32.xlu0 %v674, 32
    %v680 = vpop.permute.xlu0 %679
    %v683 = vadd.f32 %v663, %v678
    %v684 = vadd.f32 %v664, %v680
    %v685 = vtanh.pop %v683
    %v686 = vtanh.pop %v684
    %689 = vrot.lane.b32.xlu0 %v685, 64
    %v690 = vpop.permute.xlu0 %689
    %691 = vrot.lane.b32.xlu0 %v686, 64
    %v692 = vpop.permute.xlu0 %691
    %v695 = vmul.f32 %v658, %v690
    %v696 = vmul.f32 %v660, %v692
    %699 = vrot.lane.b32.xlu0 %v695, 32
    %v700 = vpop.permute.xlu0 %699
    %701 = vrot.lane.b32.xlu0 %v696, 32
    %v702 = vpop.permute.xlu0 %701
    %705 = vst.msk [vmem:[#allocation2 + $0x4] sm:$0x1] %vm223, %v700
    %706 = vst.msk [vmem:[#allocation2 + $0xc] sm:$0x1] %vm223, %v702
    %v707 = vld [vmem:[#allocation3 + $0x5] sm:$0x1]
    %v708 = vld [vmem:[#allocation3 + $0xd] sm:$0x1]
    %v709 = vpack.c.bf16 %v695, %v695
    %v710 = vpack.c.bf16 %v696, %v696
    %v713 = vunpack.c.l.b16 %v709
    %v714 = vunpack.c.l.b16 %v710
    %v715 = vrot.slane %v714, 7
    %v716 = vsel %vm235, %v715, %v713
    %v717 = vpack.c.b16 %v716, %v716
    %718 = vrot.lane.b32.xlu0 %v717, 32
    %v719 = vpop.permute.xlu0 %718
    %v721 = vsel %vm117, %v719, 0
    %723 = vmatprep.subr.bf16.mxu0 0
    %724 = vmatpush1.bf16.msra.mxu0 0
    %725 = vmatprep.subr.bf16.mxu0 0
    %726 = vmatpush1.bf16.msra.mxu0 0
    %727 = vmatprep.subr.bf16.mxu0 0
    %728 = vmatpush1.bf16.msra.mxu0 0
    %729 = vmatprep.subr.bf16.mxu0 0
    %730 = vmatpush1.bf16.msra.mxu0 0
    %731 = vmatprep.subr.bf16.mxu0 0
    %732 = vmatpush1.bf16.msra.mxu0 0
    %733 = vmatprep.subr.bf16.mxu0 0
    %734 = vmatpush1.bf16.msra.mxu0 0
    %735 = vmatprep.subr.bf16.mxu0 0
    %736 = vmatpush1.bf16.msra.mxu0 %v114
    %737 = vmatprep.subr.bf16.mxu0 0
    %738 = vmatpush1.bf16.msra.mxu0 %v113
    %739 = vmatprep.subr.bf16.mxu0 0
    %740 = vmatpush2.bf16.msra.mxu0 0
    %741 = vmatprep.subr.bf16.mxu0 0
    %742 = vmatpush2.bf16.msra.mxu0 0
    %743 = vmatprep.subr.bf16.mxu0 0
    %744 = vmatpush2.bf16.msra.mxu0 0
    %745 = vmatprep.subr.bf16.mxu0 0
    %746 = vmatpush2.bf16.msra.mxu0 0
    %747 = vmatprep.subr.bf16.mxu0 0
    %748 = vmatpush2.bf16.msra.mxu0 0
    %749 = vmatprep.subr.bf16.mxu0 0
    %750 = vmatpush2.bf16.msra.mxu0 0
    %751 = vmatprep.subr.bf16.mxu0 0
    %752 = vmatpush2.bf16.msra.mxu0 0
    %753 = vmatprep.subr.bf16.mxu0 0
    %754 = vmatpush2.bf16.msra.mxu0 0
    %755 = vmatprep.mubr.bf16.mxu0 0
    %756 = vmatmul.mubr.bf16.gmra.mxu0 %v721
    %v757 = vpop.f32.mrf.mxu0
    %v758 = vadd.f32 0.0, %v757
    %v759 = vpop.f32.mrf.mxu0
    %v760 = vpop.f32.mrf.mxu0
    %v761 = vpop.f32.mrf.mxu0
    %762 = vdwg.mxu0
    %v764 = vrot.slane %v758, 1
    %v767 = vadd.f32 %v707, %v758
    %v768 = vadd.f32 %v708, %v764
    %v769 = vxor.u32 %v767, 2147483648
    %v770 = vxor.u32 %v768, 2147483648
    %v771 = vmul.f32 %v769, 1.442695
    %v772 = vpow.pop %v771
    %v773 = vmul.f32 %v770, 1.442695
    %v774 = vpow.pop %v773
    %v775 = vadd.f32 %v772, 1.0
    %v776 = vadd.f32 %v774, 1.0
    %v777 = vrcp.pop %v775
    %v778 = vmul.f32 1.0, %v777
    %v779 = vrcp.pop %v776
    %v780 = vmul.f32 1.0, %v779
    %v781 = vtanh.pop %v767
    %v782 = vtanh.pop %v768
    %v783 = vmul.f32 %v778, %v683
    %v784 = vmul.f32 %v780, %v684
    %787 = vrot.lane.b32.xlu0 %v781, 64
    %v788 = vpop.permute.xlu0 %787
    %789 = vrot.lane.b32.xlu0 %v782, 64
    %v790 = vpop.permute.xlu0 %789
    %v793 = vmul.f32 %v778, %v788
    %v794 = vmul.f32 %v780, %v790
    %797 = vrot.lane.b32.xlu0 %v793, 32
    %v798 = vpop.permute.xlu0 %797
    %799 = vrot.lane.b32.xlu0 %v794, 32
    %v800 = vpop.permute.xlu0 %799
    %v803 = vadd.f32 %v783, %v798
    %v804 = vadd.f32 %v784, %v800
    %v805 = vtanh.pop %v803
    %v806 = vtanh.pop %v804
    %809 = vrot.lane.b32.xlu0 %v805, 64
    %v810 = vpop.permute.xlu0 %809
    %811 = vrot.lane.b32.xlu0 %v806, 64
    %v812 = vpop.permute.xlu0 %811
    %v815 = vmul.f32 %v778, %v810
    %v816 = vmul.f32 %v780, %v812
    %819 = vrot.lane.b32.xlu0 %v815, 32
    %v820 = vpop.permute.xlu0 %819
    %821 = vrot.lane.b32.xlu0 %v816, 32
    %v822 = vpop.permute.xlu0 %821
    %825 = vst.msk [vmem:[#allocation2 + $0x5] sm:$0x1] %vm223, %v820
    %826 = vst.msk [vmem:[#allocation2 + $0xd] sm:$0x1] %vm223, %v822
    %v827 = vld [vmem:[#allocation3 + $0x6] sm:$0x1]
    %v828 = vld [vmem:[#allocation3 + $0xe] sm:$0x1]
    %v829 = vpack.c.bf16 %v815, %v815
    %v830 = vpack.c.bf16 %v816, %v816
    %v833 = vunpack.c.l.b16 %v829
    %v834 = vunpack.c.l.b16 %v830
    %v835 = vrot.slane %v834, 7
    %v836 = vsel %vm235, %v835, %v833
    %v837 = vpack.c.b16 %v836, %v836
    %838 = vrot.lane.b32.xlu0 %v837, 32
    %v839 = vpop.permute.xlu0 %838
    %v841 = vsel %vm117, %v839, 0
    %843 = vmatprep.subr.bf16.mxu0 0
    %844 = vmatpush1.bf16.msra.mxu0 0
    %845 = vmatprep.subr.bf16.mxu0 0
    %846 = vmatpush1.bf16.msra.mxu0 0
    %847 = vmatprep.subr.bf16.mxu0 0
    %848 = vmatpush1.bf16.msra.mxu0 0
    %849 = vmatprep.subr.bf16.mxu0 0
    %850 = vmatpush1.bf16.msra.mxu0 0
    %851 = vmatprep.subr.bf16.mxu0 0
    %852 = vmatpush1.bf16.msra.mxu0 0
    %853 = vmatprep.subr.bf16.mxu0 0
    %854 = vmatpush1.bf16.msra.mxu0 0
    %855 = vmatprep.subr.bf16.mxu0 0
    %856 = vmatpush1.bf16.msra.mxu0 %v114
    %857 = vmatprep.subr.bf16.mxu0 0
    %858 = vmatpush1.bf16.msra.mxu0 %v113
    %859 = vmatprep.subr.bf16.mxu0 0
    %860 = vmatpush2.bf16.msra.mxu0 0
    %861 = vmatprep.subr.bf16.mxu0 0
    %862 = vmatpush2.bf16.msra.mxu0 0
    %863 = vmatprep.subr.bf16.mxu0 0
    %864 = vmatpush2.bf16.msra.mxu0 0
    %865 = vmatprep.subr.bf16.mxu0 0
    %866 = vmatpush2.bf16.msra.mxu0 0
    %867 = vmatprep.subr.bf16.mxu0 0
    %868 = vmatpush2.bf16.msra.mxu0 0
    %869 = vmatprep.subr.bf16.mxu0 0
    %870 = vmatpush2.bf16.msra.mxu0 0
    %871 = vmatprep.subr.bf16.mxu0 0
    %872 = vmatpush2.bf16.msra.mxu0 0
    %873 = vmatprep.subr.bf16.mxu0 0
    %874 = vmatpush2.bf16.msra.mxu0 0
    %875 = vmatprep.mubr.bf16.mxu0 0
    %876 = vmatmul.mubr.bf16.gmra.mxu0 %v841
    %v877 = vpop.f32.mrf.mxu0
    %v878 = vadd.f32 0.0, %v877
    %v879 = vpop.f32.mrf.mxu0
    %v880 = vpop.f32.mrf.mxu0
    %v881 = vpop.f32.mrf.mxu0
    %882 = vdwg.mxu0
    %v884 = vrot.slane %v878, 1
    %v887 = vadd.f32 %v827, %v878
    %v888 = vadd.f32 %v828, %v884
    %v889 = vxor.u32 %v887, 2147483648
    %v890 = vxor.u32 %v888, 2147483648
    %v891 = vmul.f32 %v889, 1.442695
    %v892 = vpow.pop %v891
    %v893 = vmul.f32 %v890, 1.442695
    %v894 = vpow.pop %v893
    %v895 = vadd.f32 %v892, 1.0
    %v896 = vadd.f32 %v894, 1.0
    %v897 = vrcp.pop %v895
    %v898 = vmul.f32 1.0, %v897
    %v899 = vrcp.pop %v896
    %v900 = vmul.f32 1.0, %v899
    %v901 = vtanh.pop %v887
    %v902 = vtanh.pop %v888
    %v903 = vmul.f32 %v898, %v803
    %v904 = vmul.f32 %v900, %v804
    %907 = vrot.lane.b32.xlu0 %v901, 64
    %v908 = vpop.permute.xlu0 %907
    %909 = vrot.lane.b32.xlu0 %v902, 64
    %v910 = vpop.permute.xlu0 %909
    %v913 = vmul.f32 %v898, %v908
    %v914 = vmul.f32 %v900, %v910
    %917 = vrot.lane.b32.xlu0 %v913, 32
    %v918 = vpop.permute.xlu0 %917
    %919 = vrot.lane.b32.xlu0 %v914, 32
    %v920 = vpop.permute.xlu0 %919
    %v923 = vadd.f32 %v903, %v918
    %v924 = vadd.f32 %v904, %v920
    %v925 = vtanh.pop %v923
    %v926 = vtanh.pop %v924
    %929 = vrot.lane.b32.xlu0 %v925, 64
    %v930 = vpop.permute.xlu0 %929
    %931 = vrot.lane.b32.xlu0 %v926, 64
    %v932 = vpop.permute.xlu0 %931
    %v935 = vmul.f32 %v898, %v930
    %v936 = vmul.f32 %v900, %v932
    %939 = vrot.lane.b32.xlu0 %v935, 32
    %v940 = vpop.permute.xlu0 %939
    %941 = vrot.lane.b32.xlu0 %v936, 32
    %v942 = vpop.permute.xlu0 %941
    %945 = vst.msk [vmem:[#allocation2 + $0x6] sm:$0x1] %vm223, %v940
    %946 = vst.msk [vmem:[#allocation2 + $0xe] sm:$0x1] %vm223, %v942
    %v947 = vld [vmem:[#allocation3 + $0x7] sm:$0x1]
    %v948 = vld [vmem:[#allocation3 + $0xf] sm:$0x1]
    %v949 = vpack.c.bf16 %v935, %v935
    %v950 = vpack.c.bf16 %v936, %v936
    %v953 = vunpack.c.l.b16 %v949
    %v954 = vunpack.c.l.b16 %v950
    %v955 = vrot.slane %v954, 7
    %v956 = vsel %vm235, %v955, %v953
    %v957 = vpack.c.b16 %v956, %v956
    %958 = vrot.lane.b32.xlu0 %v957, 32
    %v959 = vpop.permute.xlu0 %958
    %v961 = vsel %vm117, %v959, 0
    %963 = vmatprep.subr.bf16.mxu0 0
    %964 = vmatpush1.bf16.msra.mxu0 0
    %965 = vmatprep.subr.bf16.mxu0 0
    %966 = vmatpush1.bf16.msra.mxu0 0
    %967 = vmatprep.subr.bf16.mxu0 0
    %968 = vmatpush1.bf16.msra.mxu0 0
    %969 = vmatprep.subr.bf16.mxu0 0
    %970 = vmatpush1.bf16.msra.mxu0 0
    %971 = vmatprep.subr.bf16.mxu0 0
    %972 = vmatpush1.bf16.msra.mxu0 0
    %973 = vmatprep.subr.bf16.mxu0 0
    %974 = vmatpush1.bf16.msra.mxu0 0
    %975 = vmatprep.subr.bf16.mxu0 0
    %976 = vmatpush1.bf16.msra.mxu0 %v114
    %977 = vmatprep.subr.bf16.mxu0 0
    %978 = vmatpush1.bf16.msra.mxu0 %v113
    %979 = vmatprep.subr.bf16.mxu0 0
    %980 = vmatpush2.bf16.msra.mxu0 0
    %981 = vmatprep.subr.bf16.mxu0 0
    %982 = vmatpush2.bf16.msra.mxu0 0
    %983 = vmatprep.subr.bf16.mxu0 0
    %984 = vmatpush2.bf16.msra.mxu0 0
    %985 = vmatprep.subr.bf16.mxu0 0
    %986 = vmatpush2.bf16.msra.mxu0 0
    %987 = vmatprep.subr.bf16.mxu0 0
    %988 = vmatpush2.bf16.msra.mxu0 0
    %989 = vmatprep.subr.bf16.mxu0 0
    %990 = vmatpush2.bf16.msra.mxu0 0
    %991 = vmatprep.subr.bf16.mxu0 0
    %992 = vmatpush2.bf16.msra.mxu0 0
    %993 = vmatprep.subr.bf16.mxu0 0
    %994 = vmatpush2.bf16.msra.mxu0 0
    %995 = vmatprep.mubr.bf16.mxu0 0
    %996 = vmatmul.mubr.bf16.gmra.mxu0 %v961
    %v997 = vpop.f32.mrf.mxu0
    %v998 = vadd.f32 0.0, %v997
    %v999 = vpop.f32.mrf.mxu0
    %v1000 = vpop.f32.mrf.mxu0
    %v1001 = vpop.f32.mrf.mxu0
    %1002 = vdwg.mxu0
    %v1004 = vrot.slane %v998, 1
    %v1007 = vadd.f32 %v947, %v998
    %v1008 = vadd.f32 %v948, %v1004
    %v1009 = vxor.u32 %v1007, 2147483648
    %v1010 = vxor.u32 %v1008, 2147483648
    %v1011 = vmul.f32 %v1009, 1.442695
    %v1012 = vpow.pop %v1011
    %v1013 = vmul.f32 %v1010, 1.442695
    %v1014 = vpow.pop %v1013
    %v1015 = vadd.f32 %v1012, 1.0
    %v1016 = vadd.f32 %v1014, 1.0
    %v1017 = vrcp.pop %v1015
    %v1018 = vmul.f32 1.0, %v1017
    %v1019 = vrcp.pop %v1016
    %v1020 = vmul.f32 1.0, %v1019
    %v1021 = vtanh.pop %v1007
    %v1022 = vtanh.pop %v1008
    %v1023 = vmul.f32 %v1018, %v923
    %v1024 = vmul.f32 %v1020, %v924
    %1027 = vrot.lane.b32.xlu0 %v1021, 64
    %v1028 = vpop.permute.xlu0 %1027
    %1029 = vrot.lane.b32.xlu0 %v1022, 64
    %v1030 = vpop.permute.xlu0 %1029
    %v1033 = vmul.f32 %v1018, %v1028
    %v1034 = vmul.f32 %v1020, %v1030
    %1037 = vrot.lane.b32.xlu0 %v1033, 32
    %v1038 = vpop.permute.xlu0 %1037
    %1039 = vrot.lane.b32.xlu0 %v1034, 32
    %v1040 = vpop.permute.xlu0 %1039
    %v1043 = vadd.f32 %v1023, %v1038
    %v1044 = vadd.f32 %v1024, %v1040
    %v1045 = vtanh.pop %v1043
    %v1046 = vtanh.pop %v1044
    %1049 = vrot.lane.b32.xlu0 %v1045, 64
    %v1050 = vpop.permute.xlu0 %1049
    %1051 = vrot.lane.b32.xlu0 %v1046, 64
    %v1052 = vpop.permute.xlu0 %1051
    %v1055 = vmul.f32 %v1018, %v1050
    %v1056 = vmul.f32 %v1020, %v1052
    %1059 = vrot.lane.b32.xlu0 %v1055, 32
    %v1060 = vpop.permute.xlu0 %1059
    %1061 = vrot.lane.b32.xlu0 %v1056, 32
    %v1062 = vpop.permute.xlu0 %1061
    %1065 = vst.msk [vmem:[#allocation2 + $0x7] sm:$0x1] %vm223, %v1060
    %1066 = vst.msk [vmem:[#allocation2 + $0xf] sm:$0x1] %vm223, %v1062
    %v1067 = vrot.slane %v1056, 7
    %v1068 = vsel %vm235, %v1067, %v1055
    %1069 = vrot.lane.b32.xlu0 %v1068, 32
    %v1070 = vpop.permute.xlu0 %1069
    %vm1072 = vcmask 254976
    %1073 = vst.msk [vmem:[#allocation6] sm:$0x3] %vm1072, %v1070
    %v1076 = vrot.slane %v1044, 7
    %v1077 = vsel %vm235, %v1076, %v1043
    %1078 = vrot.lane.b32.xlu0 %v1077, 96
    %v1079 = vpop.permute.xlu0 %1078
    %1081 = vst.msk [vmem:[#allocation8] sm:$0x3] %vm1072, %v1079
    %v1082 = vld [vmem:[#allocation2] sm:$0xff]
    %v1083 = vld [vmem:[#allocation2 + $0x8] sm:$0xff]
    %1084 = vst.msk [vmem:[#allocation4] sm:$0xff] %vm117, %v1082
    %1085 = vst.msk [vmem:[#allocation4 + $0x8] sm:$0xff] %vm117, %v1083
    %v1086 = vld [vmem:[%s4] sm:$0xf]
    %v1087 = vld [vmem:[%s4 + $0x4] sm:$0xf]
    %v1088 = vld [vmem:[%s4 + $0x8] sm:$0xf]
    %v1089 = vld [vmem:[%s4 + $0xc] sm:$0xf]
    %v1090 = vld [vmem:[%s5] sm:$0xf]
    %v1091 = vld [vmem:[%s5 + $0x4] sm:$0xf]
    %v1092 = vld [vmem:[%s5 + $0x8] sm:$0xf]
    %v1093 = vld [vmem:[%s5 + $0xc] sm:$0xf]
    %v1094 = vld [vmem:[%s6] sm:$0x1]
    %v1095 = vld [vmem:[#allocation2] sm:$0xff]
    %v1096 = vld [vmem:[#allocation2 + $0x8] sm:$0xff]
    %v1097 = vpack.c.bf16 %v1096, %v1095
    %v1099 = vlaneseq
    %v1100 = vshrl.u32 %v1099, 7
    %v1101 = vsub.s32 0, %v1100
    %v1102 = vrot.slane %v1094, %v1101
    %v1108 = vunpack.c.l.b16 %v1086
    %v1109 = vunpack.c.l.b16 %v1087
    %v1110 = vunpack.c.l.b16 %v1088
    %v1111 = vunpack.c.l.b16 %v1089
    %v1112 = vpack.c.b16 %v1109, %v1108
    %v1113 = vpack.c.b16 %v1111, %v1110
    %v1117 = vsel %vm117, %v1097, 0
    %1119 = vmatprep.subr.bf16.mxu0 0
    %1120 = vmatpush1.bf16.msra.mxu0 0
    %1121 = vmatprep.subr.bf16.mxu0 0
    %1122 = vmatpush1.bf16.msra.mxu0 0
    %1123 = vmatprep.subr.bf16.mxu0 0
    %1124 = vmatpush1.bf16.msra.mxu0 0
    %1125 = vmatprep.subr.bf16.mxu0 0
    %1126 = vmatpush1.bf16.msra.mxu0 0
    %1127 = vmatprep.subr.bf16.mxu0 0
    %1128 = vmatpush1.bf16.msra.mxu0 0
    %1129 = vmatprep.subr.bf16.mxu0 0
    %1130 = vmatpush1.bf16.msra.mxu0 0
    %1131 = vmatprep.subr.bf16.mxu0 0
    %1132 = vmatpush1.bf16.msra.mxu0 %v1113
    %1133 = vmatprep.subr.bf16.mxu0 0
    %1134 = vmatpush1.bf16.msra.mxu0 %v1112
    %1135 = vmatprep.subr.bf16.mxu0 0
    %1136 = vmatpush2.bf16.msra.mxu0 0
    %1137 = vmatprep.subr.bf16.mxu0 0
    %1138 = vmatpush2.bf16.msra.mxu0 0
    %1139 = vmatprep.subr.bf16.mxu0 0
    %1140 = vmatpush2.bf16.msra.mxu0 0
    %1141 = vmatprep.subr.bf16.mxu0 0
    %1142 = vmatpush2.bf16.msra.mxu0 0
    %1143 = vmatprep.subr.bf16.mxu0 0
    %1144 = vmatpush2.bf16.msra.mxu0 0
    %1145 = vmatprep.subr.bf16.mxu0 0
    %1146 = vmatpush2.bf16.msra.mxu0 0
    %1147 = vmatprep.subr.bf16.mxu0 0
    %1148 = vmatpush2.bf16.msra.mxu0 0
    %1149 = vmatprep.subr.bf16.mxu0 0
    %1150 = vmatpush2.bf16.msra.mxu0 0
    %1151 = vmatprep.mubr.bf16.mxu0 0
    %1152 = vmatmul.mubr.bf16.gmra.mxu0 %v1117
    %v1153 = vpop.f32.mrf.mxu0
    %v1154 = vadd.f32 %v1102, %v1153
    %v1155 = vpop.f32.mrf.mxu0
    %v1156 = vpop.f32.mrf.mxu0
    %v1157 = vadd.f32 %v1102, %v1156
    %v1158 = vpop.f32.mrf.mxu0
    %1159 = vdwg.mxu0
    %1160 = vst [vmem:[#allocation3] sm:$0xff] %v1154
    %1161 = vst [vmem:[#allocation3 + $0x8] sm:$0xff] %v1157
    %v1162 = vld [vmem:[#allocation3] sm:$0x1]
    %v1163 = vld [vmem:[#allocation3 + $0x8] sm:$0x1]
    %v1168 = vunpack.c.l.b16 %v1090
    %v1169 = vunpack.c.l.b16 %v1091
    %v1170 = vunpack.c.l.b16 %v1092
    %v1171 = vunpack.c.l.b16 %v1093
    %v1172 = vpack.c.b16 %v1169, %v1168
    %v1173 = vpack.c.b16 %v1171, %v1170
    %1176 = vmatprep.subr.bf16.mxu0 0
    %1177 = vmatpush1.bf16.msra.mxu0 0
    %1178 = vmatprep.subr.bf16.mxu0 0
    %1179 = vmatpush1.bf16.msra.mxu0 0
    %1180 = vmatprep.subr.bf16.mxu0 0
    %1181 = vmatpush1.bf16.msra.mxu0 0
    %1182 = vmatprep.subr.bf16.mxu0 0
    %1183 = vmatpush1.bf16.msra.mxu0 0
    %1184 = vmatprep.subr.bf16.mxu0 0
    %1185 = vmatpush1.bf16.msra.mxu0 0
    %1186 = vmatprep.subr.bf16.mxu0 0
    %1187 = vmatpush1.bf16.msra.mxu0 0
    %1188 = vmatprep.subr.bf16.mxu0 0
    %1189 = vmatpush1.bf16.msra.mxu0 %v1173
    %1190 = vmatprep.subr.bf16.mxu0 0
    %1191 = vmatpush1.bf16.msra.mxu0 %v1172
    %1192 = vmatprep.subr.bf16.mxu0 0
    %1193 = vmatpush2.bf16.msra.mxu0 0
    %1194 = vmatprep.subr.bf16.mxu0 0
    %1195 = vmatpush2.bf16.msra.mxu0 0
    %1196 = vmatprep.subr.bf16.mxu0 0
    %1197 = vmatpush2.bf16.msra.mxu0 0
    %1198 = vmatprep.subr.bf16.mxu0 0
    %1199 = vmatpush2.bf16.msra.mxu0 0
    %1200 = vmatprep.subr.bf16.mxu0 0
    %1201 = vmatpush2.bf16.msra.mxu0 0
    %1202 = vmatprep.subr.bf16.mxu0 0
    %1203 = vmatpush2.bf16.msra.mxu0 0
    %1204 = vmatprep.subr.bf16.mxu0 0
    %1205 = vmatpush2.bf16.msra.mxu0 0
    %1206 = vmatprep.subr.bf16.mxu0 0
    %1207 = vmatpush2.bf16.msra.mxu0 0
    %1208 = vmatprep.mubr.bf16.mxu0 0
    %1209 = vmatmul.mubr.bf16.gmra.mxu0 %v119
    %v1210 = vpop.f32.mrf.mxu0
    %v1211 = vadd.f32 0.0, %v1210
    %v1212 = vpop.f32.mrf.mxu0
    %v1213 = vpop.f32.mrf.mxu0
    %v1214 = vpop.f32.mrf.mxu0
    %1215 = vdwg.mxu0
    %v1217 = vrot.slane %v1211, 1
    %v1220 = vadd.f32 %v1162, %v1211
    %v1221 = vadd.f32 %v1163, %v1217
    %v1222 = vxor.u32 %v1220, 2147483648
    %v1223 = vxor.u32 %v1221, 2147483648
    %v1224 = vmul.f32 %v1222, 1.442695
    %v1225 = vpow.pop %v1224
    %v1226 = vmul.f32 %v1223, 1.442695
    %v1227 = vpow.pop %v1226
    %v1228 = vadd.f32 %v1225, 1.0
    %v1229 = vadd.f32 %v1227, 1.0
    %v1230 = vrcp.pop %v1228
    %v1231 = vmul.f32 1.0, %v1230
    %v1232 = vrcp.pop %v1229
    %v1233 = vmul.f32 1.0, %v1232
    %v1234 = vtanh.pop %v1220
    %v1235 = vtanh.pop %v1221
    %v1236 = vmul.f32 %v1231, 0.0
    %v1237 = vmul.f32 %v1233, 0.0
    %1240 = vrot.lane.b32.xlu0 %v1234, 64
    %v1241 = vpop.permute.xlu0 %1240
    %1242 = vrot.lane.b32.xlu0 %v1235, 64
    %v1243 = vpop.permute.xlu0 %1242
    %v1246 = vmul.f32 %v1231, %v1241
    %v1247 = vmul.f32 %v1233, %v1243
    %1250 = vrot.lane.b32.xlu0 %v1246, 32
    %v1251 = vpop.permute.xlu0 %1250
    %1252 = vrot.lane.b32.xlu0 %v1247, 32
    %v1253 = vpop.permute.xlu0 %1252
    %v1256 = vadd.f32 %v1236, %v1251
    %v1257 = vadd.f32 %v1237, %v1253
    %v1258 = vtanh.pop %v1256
    %v1259 = vtanh.pop %v1257
    %1262 = vrot.lane.b32.xlu0 %v1258, 64
    %v1263 = vpop.permute.xlu0 %1262
    %1264 = vrot.lane.b32.xlu0 %v1259, 64
    %v1265 = vpop.permute.xlu0 %1264
    %v1268 = vmul.f32 %v1231, %v1263
    %v1269 = vmul.f32 %v1233, %v1265
    %1272 = vrot.lane.b32.xlu0 %v1268, 32
    %v1273 = vpop.permute.xlu0 %1272
    %1274 = vrot.lane.b32.xlu0 %v1269, 32
    %v1275 = vpop.permute.xlu0 %1274
    %1278 = vst.msk [vmem:[#allocation2] sm:$0x1] %vm223, %v1273
    %1279 = vst.msk [vmem:[#allocation2 + $0x8] sm:$0x1] %vm223, %v1275
    %v1280 = vld [vmem:[#allocation3 + $0x1] sm:$0x1]
    %v1281 = vld [vmem:[#allocation3 + $0x9] sm:$0x1]
    %v1282 = vpack.c.bf16 %v1268, %v1268
    %v1283 = vpack.c.bf16 %v1269, %v1269
    %v1286 = vunpack.c.l.b16 %v1282
    %v1287 = vunpack.c.l.b16 %v1283
    %v1288 = vrot.slane %v1287, 7
    %v1289 = vsel %vm235, %v1288, %v1286
    %v1290 = vpack.c.b16 %v1289, %v1289
    %1291 = vrot.lane.b32.xlu0 %v1290, 32
    %v1292 = vpop.permute.xlu0 %1291
    %v1294 = vsel %vm117, %v1292, 0
    %1296 = vmatprep.subr.bf16.mxu0 0
    %1297 = vmatpush1.bf16.msra.mxu0 0
    %1298 = vmatprep.subr.bf16.mxu0 0
    %1299 = vmatpush1.bf16.msra.mxu0 0
    %1300 = vmatprep.subr.bf16.mxu0 0
    %1301 = vmatpush1.bf16.msra.mxu0 0
    %1302 = vmatprep.subr.bf16.mxu0 0
    %1303 = vmatpush1.bf16.msra.mxu0 0
    %1304 = vmatprep.subr.bf16.mxu0 0
    %1305 = vmatpush1.bf16.msra.mxu0 0
    %1306 = vmatprep.subr.bf16.mxu0 0
    %1307 = vmatpush1.bf16.msra.mxu0 0
    %1308 = vmatprep.subr.bf16.mxu0 0
    %1309 = vmatpush1.bf16.msra.mxu0 %v1173
    %1310 = vmatprep.subr.bf16.mxu0 0
    %1311 = vmatpush1.bf16.msra.mxu0 %v1172
    %1312 = vmatprep.subr.bf16.mxu0 0
    %1313 = vmatpush2.bf16.msra.mxu0 0
    %1314 = vmatprep.subr.bf16.mxu0 0
    %1315 = vmatpush2.bf16.msra.mxu0 0
    %1316 = vmatprep.subr.bf16.mxu0 0
    %1317 = vmatpush2.bf16.msra.mxu0 0
    %1318 = vmatprep.subr.bf16.mxu0 0
    %1319 = vmatpush2.bf16.msra.mxu0 0
    %1320 = vmatprep.subr.bf16.mxu0 0
    %1321 = vmatpush2.bf16.msra.mxu0 0
    %1322 = vmatprep.subr.bf16.mxu0 0
    %1323 = vmatpush2.bf16.msra.mxu0 0
    %1324 = vmatprep.subr.bf16.mxu0 0
    %1325 = vmatpush2.bf16.msra.mxu0 0
    %1326 = vmatprep.subr.bf16.mxu0 0
    %1327 = vmatpush2.bf16.msra.mxu0 0
    %1328 = vmatprep.mubr.bf16.mxu0 0
    %1329 = vmatmul.mubr.bf16.gmra.mxu0 %v1294
    %v1330 = vpop.f32.mrf.mxu0
    %v1331 = vadd.f32 0.0, %v1330
    %v1332 = vpop.f32.mrf.mxu0
    %v1333 = vpop.f32.mrf.mxu0
    %v1334 = vpop.f32.mrf.mxu0
    %1335 = vdwg.mxu0
    %v1337 = vrot.slane %v1331, 1
    %v1340 = vadd.f32 %v1280, %v1331
    %v1341 = vadd.f32 %v1281, %v1337
    %v1342 = vxor.u32 %v1340, 2147483648
    %v1343 = vxor.u32 %v1341, 2147483648
    %v1344 = vmul.f32 %v1342, 1.442695
    %v1345 = vpow.pop %v1344
    %v1346 = vmul.f32 %v1343, 1.442695
    %v1347 = vpow.pop %v1346
    %v1348 = vadd.f32 %v1345, 1.0
    %v1349 = vadd.f32 %v1347, 1.0
    %v1350 = vrcp.pop %v1348
    %v1351 = vmul.f32 1.0, %v1350
    %v1352 = vrcp.pop %v1349
    %v1353 = vmul.f32 1.0, %v1352
    %v1354 = vtanh.pop %v1340
    %v1355 = vtanh.pop %v1341
    %v1356 = vmul.f32 %v1351, %v1256
    %v1357 = vmul.f32 %v1353, %v1257
    %1360 = vrot.lane.b32.xlu0 %v1354, 64
    %v1361 = vpop.permute.xlu0 %1360
    %1362 = vrot.lane.b32.xlu0 %v1355, 64
    %v1363 = vpop.permute.xlu0 %1362
    %v1366 = vmul.f32 %v1351, %v1361
    %v1367 = vmul.f32 %v1353, %v1363
    %1370 = vrot.lane.b32.xlu0 %v1366, 32
    %v1371 = vpop.permute.xlu0 %1370
    %1372 = vrot.lane.b32.xlu0 %v1367, 32
    %v1373 = vpop.permute.xlu0 %1372
    %v1376 = vadd.f32 %v1356, %v1371
    %v1377 = vadd.f32 %v1357, %v1373
    %v1378 = vtanh.pop %v1376
    %v1379 = vtanh.pop %v1377
    %1382 = vrot.lane.b32.xlu0 %v1378, 64
    %v1383 = vpop.permute.xlu0 %1382
    %1384 = vrot.lane.b32.xlu0 %v1379, 64
    %v1385 = vpop.permute.xlu0 %1384
    %v1388 = vmul.f32 %v1351, %v1383
    %v1389 = vmul.f32 %v1353, %v1385
    %1392 = vrot.lane.b32.xlu0 %v1388, 32
    %v1393 = vpop.permute.xlu0 %1392
    %1394 = vrot.lane.b32.xlu0 %v1389, 32
    %v1395 = vpop.permute.xlu0 %1394
    %1398 = vst.msk [vmem:[#allocation2 + $0x1] sm:$0x1] %vm223, %v1393
    %1399 = vst.msk [vmem:[#allocation2 + $0x9] sm:$0x1] %vm223, %v1395
    %v1400 = vld [vmem:[#allocation3 + $0x2] sm:$0x1]
    %v1401 = vld [vmem:[#allocation3 + $0xa] sm:$0x1]
    %v1402 = vpack.c.bf16 %v1388, %v1388
    %v1403 = vpack.c.bf16 %v1389, %v1389
    %v1406 = vunpack.c.l.b16 %v1402
    %v1407 = vunpack.c.l.b16 %v1403
    %v1408 = vrot.slane %v1407, 7
    %v1409 = vsel %vm235, %v1408, %v1406
    %v1410 = vpack.c.b16 %v1409, %v1409
    %1411 = vrot.lane.b32.xlu0 %v1410, 32
    %v1412 = vpop.permute.xlu0 %1411
    %v1414 = vsel %vm117, %v1412, 0
    %1416 = vmatprep.subr.bf16.mxu0 0
    %1417 = vmatpush1.bf16.msra.mxu0 0
    %1418 = vmatprep.subr.bf16.mxu0 0
    %1419 = vmatpush1.bf16.msra.mxu0 0
    %1420 = vmatprep.subr.bf16.mxu0 0
    %1421 = vmatpush1.bf16.msra.mxu0 0
    %1422 = vmatprep.subr.bf16.mxu0 0
    %1423 = vmatpush1.bf16.msra.mxu0 0
    %1424 = vmatprep.subr.bf16.mxu0 0
    %1425 = vmatpush1.bf16.msra.mxu0 0
    %1426 = vmatprep.subr.bf16.mxu0 0
    %1427 = vmatpush1.bf16.msra.mxu0 0
    %1428 = vmatprep.subr.bf16.mxu0 0
    %1429 = vmatpush1.bf16.msra.mxu0 %v1173
    %1430 = vmatprep.subr.bf16.mxu0 0
    %1431 = vmatpush1.bf16.msra.mxu0 %v1172
    %1432 = vmatprep.subr.bf16.mxu0 0
    %1433 = vmatpush2.bf16.msra.mxu0 0
    %1434 = vmatprep.subr.bf16.mxu0 0
    %1435 = vmatpush2.bf16.msra.mxu0 0
    %1436 = vmatprep.subr.bf16.mxu0 0
    %1437 = vmatpush2.bf16.msra.mxu0 0
    %1438 = vmatprep.subr.bf16.mxu0 0
    %1439 = vmatpush2.bf16.msra.mxu0 0
    %1440 = vmatprep.subr.bf16.mxu0 0
    %1441 = vmatpush2.bf16.msra.mxu0 0
    %1442 = vmatprep.subr.bf16.mxu0 0
    %1443 = vmatpush2.bf16.msra.mxu0 0
    %1444 = vmatprep.subr.bf16.mxu0 0
    %1445 = vmatpush2.bf16.msra.mxu0 0
    %1446 = vmatprep.subr.bf16.mxu0 0
    %1447 = vmatpush2.bf16.msra.mxu0 0
    %1448 = vmatprep.mubr.bf16.mxu0 0
    %1449 = vmatmul.mubr.bf16.gmra.mxu0 %v1414
    %v1450 = vpop.f32.mrf.mxu0
    %v1451 = vadd.f32 0.0, %v1450
    %v1452 = vpop.f32.mrf.mxu0
    %v1453 = vpop.f32.mrf.mxu0
    %v1454 = vpop.f32.mrf.mxu0
    %1455 = vdwg.mxu0
    %v1457 = vrot.slane %v1451, 1
    %v1460 = vadd.f32 %v1400, %v1451
    %v1461 = vadd.f32 %v1401, %v1457
    %v1462 = vxor.u32 %v1460, 2147483648
    %v1463 = vxor.u32 %v1461, 2147483648
    %v1464 = vmul.f32 %v1462, 1.442695
    %v1465 = vpow.pop %v1464
    %v1466 = vmul.f32 %v1463, 1.442695
    %v1467 = vpow.pop %v1466
    %v1468 = vadd.f32 %v1465, 1.0
    %v1469 = vadd.f32 %v1467, 1.0
    %v1470 = vrcp.pop %v1468
    %v1471 = vmul.f32 1.0, %v1470
    %v1472 = vrcp.pop %v1469
    %v1473 = vmul.f32 1.0, %v1472
    %v1474 = vtanh.pop %v1460
    %v1475 = vtanh.pop %v1461
    %v1476 = vmul.f32 %v1471, %v1376
    %v1477 = vmul.f32 %v1473, %v1377
    %1480 = vrot.lane.b32.xlu0 %v1474, 64
    %v1481 = vpop.permute.xlu0 %1480
    %1482 = vrot.lane.b32.xlu0 %v1475, 64
    %v1483 = vpop.permute.xlu0 %1482
    %v1486 = vmul.f32 %v1471, %v1481
    %v1487 = vmul.f32 %v1473, %v1483
    %1490 = vrot.lane.b32.xlu0 %v1486, 32
    %v1491 = vpop.permute.xlu0 %1490
    %1492 = vrot.lane.b32.xlu0 %v1487, 32
    %v1493 = vpop.permute.xlu0 %1492
    %v1496 = vadd.f32 %v1476, %v1491
    %v1497 = vadd.f32 %v1477, %v1493
    %v1498 = vtanh.pop %v1496
    %v1499 = vtanh.pop %v1497
    %1502 = vrot.lane.b32.xlu0 %v1498, 64
    %v1503 = vpop.permute.xlu0 %1502
    %1504 = vrot.lane.b32.xlu0 %v1499, 64
    %v1505 = vpop.permute.xlu0 %1504
    %v1508 = vmul.f32 %v1471, %v1503
    %v1509 = vmul.f32 %v1473, %v1505
    %1512 = vrot.lane.b32.xlu0 %v1508, 32
    %v1513 = vpop.permute.xlu0 %1512
    %1514 = vrot.lane.b32.xlu0 %v1509, 32
    %v1515 = vpop.permute.xlu0 %1514
    %1518 = vst.msk [vmem:[#allocation2 + $0x2] sm:$0x1] %vm223, %v1513
    %1519 = vst.msk [vmem:[#allocation2 + $0xa] sm:$0x1] %vm223, %v1515
    %v1520 = vld [vmem:[#allocation3 + $0x3] sm:$0x1]
    %v1521 = vld [vmem:[#allocation3 + $0xb] sm:$0x1]
    %v1522 = vpack.c.bf16 %v1508, %v1508
    %v1523 = vpack.c.bf16 %v1509, %v1509
    %v1526 = vunpack.c.l.b16 %v1522
    %v1527 = vunpack.c.l.b16 %v1523
    %v1528 = vrot.slane %v1527, 7
    %v1529 = vsel %vm235, %v1528, %v1526
    %v1530 = vpack.c.b16 %v1529, %v1529
    %1531 = vrot.lane.b32.xlu0 %v1530, 32
    %v1532 = vpop.permute.xlu0 %1531
    %v1534 = vsel %vm117, %v1532, 0
    %1536 = vmatprep.subr.bf16.mxu0 0
    %1537 = vmatpush1.bf16.msra.mxu0 0
    %1538 = vmatprep.subr.bf16.mxu0 0
    %1539 = vmatpush1.bf16.msra.mxu0 0
    %1540 = vmatprep.subr.bf16.mxu0 0
    %1541 = vmatpush1.bf16.msra.mxu0 0
    %1542 = vmatprep.subr.bf16.mxu0 0
    %1543 = vmatpush1.bf16.msra.mxu0 0
    %1544 = vmatprep.subr.bf16.mxu0 0
    %1545 = vmatpush1.bf16.msra.mxu0 0
    %1546 = vmatprep.subr.bf16.mxu0 0
    %1547 = vmatpush1.bf16.msra.mxu0 0
    %1548 = vmatprep.subr.bf16.mxu0 0
    %1549 = vmatpush1.bf16.msra.mxu0 %v1173
    %1550 = vmatprep.subr.bf16.mxu0 0
    %1551 = vmatpush1.bf16.msra.mxu0 %v1172
    %1552 = vmatprep.subr.bf16.mxu0 0
    %1553 = vmatpush2.bf16.msra.mxu0 0
    %1554 = vmatprep.subr.bf16.mxu0 0
    %1555 = vmatpush2.bf16.msra.mxu0 0
    %1556 = vmatprep.subr.bf16.mxu0 0
    %1557 = vmatpush2.bf16.msra.mxu0 0
    %1558 = vmatprep.subr.bf16.mxu0 0
    %1559 = vmatpush2.bf16.msra.mxu0 0
    %1560 = vmatprep.subr.bf16.mxu0 0
    %1561 = vmatpush2.bf16.msra.mxu0 0
    %1562 = vmatprep.subr.bf16.mxu0 0
    %1563 = vmatpush2.bf16.msra.mxu0 0
    %1564 = vmatprep.subr.bf16.mxu0 0
    %1565 = vmatpush2.bf16.msra.mxu0 0
    %1566 = vmatprep.subr.bf16.mxu0 0
    %1567 = vmatpush2.bf16.msra.mxu0 0
    %1568 = vmatprep.mubr.bf16.mxu0 0
    %1569 = vmatmul.mubr.bf16.gmra.mxu0 %v1534
    %v1570 = vpop.f32.mrf.mxu0
    %v1571 = vadd.f32 0.0, %v1570
    %v1572 = vpop.f32.mrf.mxu0
    %v1573 = vpop.f32.mrf.mxu0
    %v1574 = vpop.f32.mrf.mxu0
    %1575 = vdwg.mxu0
    %v1577 = vrot.slane %v1571, 1
    %v1580 = vadd.f32 %v1520, %v1571
    %v1581 = vadd.f32 %v1521, %v1577
    %v1582 = vxor.u32 %v1580, 2147483648
    %v1583 = vxor.u32 %v1581, 2147483648
    %v1584 = vmul.f32 %v1582, 1.442695
    %v1585 = vpow.pop %v1584
    %v1586 = vmul.f32 %v1583, 1.442695
    %v1587 = vpow.pop %v1586
    %v1588 = vadd.f32 %v1585, 1.0
    %v1589 = vadd.f32 %v1587, 1.0
    %v1590 = vrcp.pop %v1588
    %v1591 = vmul.f32 1.0, %v1590
    %v1592 = vrcp.pop %v1589
    %v1593 = vmul.f32 1.0, %v1592
    %v1594 = vtanh.pop %v1580
    %v1595 = vtanh.pop %v1581
    %v1596 = vmul.f32 %v1591, %v1496
    %v1597 = vmul.f32 %v1593, %v1497
    %1600 = vrot.lane.b32.xlu0 %v1594, 64
    %v1601 = vpop.permute.xlu0 %1600
    %1602 = vrot.lane.b32.xlu0 %v1595, 64
    %v1603 = vpop.permute.xlu0 %1602
    %v1606 = vmul.f32 %v1591, %v1601
    %v1607 = vmul.f32 %v1593, %v1603
    %1610 = vrot.lane.b32.xlu0 %v1606, 32
    %v1611 = vpop.permute.xlu0 %1610
    %1612 = vrot.lane.b32.xlu0 %v1607, 32
    %v1613 = vpop.permute.xlu0 %1612
    %v1616 = vadd.f32 %v1596, %v1611
    %v1617 = vadd.f32 %v1597, %v1613
    %v1618 = vtanh.pop %v1616
    %v1619 = vtanh.pop %v1617
    %1622 = vrot.lane.b32.xlu0 %v1618, 64
    %v1623 = vpop.permute.xlu0 %1622
    %1624 = vrot.lane.b32.xlu0 %v1619, 64
    %v1625 = vpop.permute.xlu0 %1624
    %v1628 = vmul.f32 %v1591, %v1623
    %v1629 = vmul.f32 %v1593, %v1625
    %1632 = vrot.lane.b32.xlu0 %v1628, 32
    %v1633 = vpop.permute.xlu0 %1632
    %1634 = vrot.lane.b32.xlu0 %v1629, 32
    %v1635 = vpop.permute.xlu0 %1634
    %1638 = vst.msk [vmem:[#allocation2 + $0x3] sm:$0x1] %vm223, %v1633
    %1639 = vst.msk [vmem:[#allocation2 + $0xb] sm:$0x1] %vm223, %v1635
    %v1640 = vld [vmem:[#allocation3 + $0x4] sm:$0x1]
    %v1641 = vld [vmem:[#allocation3 + $0xc] sm:$0x1]
    %v1642 = vpack.c.bf16 %v1628, %v1628
    %v1643 = vpack.c.bf16 %v1629, %v1629
    %v1646 = vunpack.c.l.b16 %v1642
    %v1647 = vunpack.c.l.b16 %v1643
    %v1648 = vrot.slane %v1647, 7
    %v1649 = vsel %vm235, %v1648, %v1646
    %v1650 = vpack.c.b16 %v1649, %v1649
    %1651 = vrot.lane.b32.xlu0 %v1650, 32
    %v1652 = vpop.permute.xlu0 %1651
    %v1654 = vsel %vm117, %v1652, 0
    %1656 = vmatprep.subr.bf16.mxu0 0
    %1657 = vmatpush1.bf16.msra.mxu0 0
    %1658 = vmatprep.subr.bf16.mxu0 0
    %1659 = vmatpush1.bf16.msra.mxu0 0
    %1660 = vmatprep.subr.bf16.mxu0 0
    %1661 = vmatpush1.bf16.msra.mxu0 0
    %1662 = vmatprep.subr.bf16.mxu0 0
    %1663 = vmatpush1.bf16.msra.mxu0 0
    %1664 = vmatprep.subr.bf16.mxu0 0
    %1665 = vmatpush1.bf16.msra.mxu0 0
    %1666 = vmatprep.subr.bf16.mxu0 0
    %1667 = vmatpush1.bf16.msra.mxu0 0
    %1668 = vmatprep.subr.bf16.mxu0 0
    %1669 = vmatpush1.bf16.msra.mxu0 %v1173
    %1670 = vmatprep.subr.bf16.mxu0 0
    %1671 = vmatpush1.bf16.msra.mxu0 %v1172
    %1672 = vmatprep.subr.bf16.mxu0 0
    %1673 = vmatpush2.bf16.msra.mxu0 0
    %1674 = vmatprep.subr.bf16.mxu0 0
    %1675 = vmatpush2.bf16.msra.mxu0 0
    %1676 = vmatprep.subr.bf16.mxu0 0
    %1677 = vmatpush2.bf16.msra.mxu0 0
    %1678 = vmatprep.subr.bf16.mxu0 0
    %1679 = vmatpush2.bf16.msra.mxu0 0
    %1680 = vmatprep.subr.bf16.mxu0 0
    %1681 = vmatpush2.bf16.msra.mxu0 0
    %1682 = vmatprep.subr.bf16.mxu0 0
    %1683 = vmatpush2.bf16.msra.mxu0 0
    %1684 = vmatprep.subr.bf16.mxu0 0
    %1685 = vmatpush2.bf16.msra.mxu0 0
    %1686 = vmatprep.subr.bf16.mxu0 0
    %1687 = vmatpush2.bf16.msra.mxu0 0
    %1688 = vmatprep.mubr.bf16.mxu0 0
    %1689 = vmatmul.mubr.bf16.gmra.mxu0 %v1654
    %v1690 = vpop.f32.mrf.mxu0
    %v1691 = vadd.f32 0.0, %v1690
    %v1692 = vpop.f32.mrf.mxu0
    %v1693 = vpop.f32.mrf.mxu0
    %v1694 = vpop.f32.mrf.mxu0
    %1695 = vdwg.mxu0
    %v1697 = vrot.slane %v1691, 1
    %v1700 = vadd.f32 %v1640, %v1691
    %v1701 = vadd.f32 %v1641, %v1697
    %v1702 = vxor.u32 %v1700, 2147483648
    %v1703 = vxor.u32 %v1701, 2147483648
    %v1704 = vmul.f32 %v1702, 1.442695
    %v1705 = vpow.pop %v1704
    %v1706 = vmul.f32 %v1703, 1.442695
    %v1707 = vpow.pop %v1706
    %v1708 = vadd.f32 %v1705, 1.0
    %v1709 = vadd.f32 %v1707, 1.0
    %v1710 = vrcp.pop %v1708
    %v1711 = vmul.f32 1.0, %v1710
    %v1712 = vrcp.pop %v1709
    %v1713 = vmul.f32 1.0, %v1712
    %v1714 = vtanh.pop %v1700
    %v1715 = vtanh.pop %v1701
    %v1716 = vmul.f32 %v1711, %v1616
    %v1717 = vmul.f32 %v1713, %v1617
    %1720 = vrot.lane.b32.xlu0 %v1714, 64
    %v1721 = vpop.permute.xlu0 %1720
    %1722 = vrot.lane.b32.xlu0 %v1715, 64
    %v1723 = vpop.permute.xlu0 %1722
    %v1726 = vmul.f32 %v1711, %v1721
    %v1727 = vmul.f32 %v1713, %v1723
    %1730 = vrot.lane.b32.xlu0 %v1726, 32
    %v1731 = vpop.permute.xlu0 %1730
    %1732 = vrot.lane.b32.xlu0 %v1727, 32
    %v1733 = vpop.permute.xlu0 %1732
    %v1736 = vadd.f32 %v1716, %v1731
    %v1737 = vadd.f32 %v1717, %v1733
    %v1738 = vtanh.pop %v1736
    %v1739 = vtanh.pop %v1737
    %1742 = vrot.lane.b32.xlu0 %v1738, 64
    %v1743 = vpop.permute.xlu0 %1742
    %1744 = vrot.lane.b32.xlu0 %v1739, 64
    %v1745 = vpop.permute.xlu0 %1744
    %v1748 = vmul.f32 %v1711, %v1743
    %v1749 = vmul.f32 %v1713, %v1745
    %1752 = vrot.lane.b32.xlu0 %v1748, 32
    %v1753 = vpop.permute.xlu0 %1752
    %1754 = vrot.lane.b32.xlu0 %v1749, 32
    %v1755 = vpop.permute.xlu0 %1754
    %1758 = vst.msk [vmem:[#allocation2 + $0x4] sm:$0x1] %vm223, %v1753
    %1759 = vst.msk [vmem:[#allocation2 + $0xc] sm:$0x1] %vm223, %v1755
    %v1760 = vld [vmem:[#allocation3 + $0x5] sm:$0x1]
    %v1761 = vld [vmem:[#allocation3 + $0xd] sm:$0x1]
    %v1762 = vpack.c.bf16 %v1748, %v1748
    %v1763 = vpack.c.bf16 %v1749, %v1749
    %v1766 = vunpack.c.l.b16 %v1762
    %v1767 = vunpack.c.l.b16 %v1763
    %v1768 = vrot.slane %v1767, 7
    %v1769 = vsel %vm235, %v1768, %v1766
    %v1770 = vpack.c.b16 %v1769, %v1769
    %1771 = vrot.lane.b32.xlu0 %v1770, 32
    %v1772 = vpop.permute.xlu0 %1771
    %v1774 = vsel %vm117, %v1772, 0
    %1776 = vmatprep.subr.bf16.mxu0 0
    %1777 = vmatpush1.bf16.msra.mxu0 0
    %1778 = vmatprep.subr.bf16.mxu0 0
    %1779 = vmatpush1.bf16.msra.mxu0 0
    %1780 = vmatprep.subr.bf16.mxu0 0
    %1781 = vmatpush1.bf16.msra.mxu0 0
    %1782 = vmatprep.subr.bf16.mxu0 0
    %1783 = vmatpush1.bf16.msra.mxu0 0
    %1784 = vmatprep.subr.bf16.mxu0 0
    %1785 = vmatpush1.bf16.msra.mxu0 0
    %1786 = vmatprep.subr.bf16.mxu0 0
    %1787 = vmatpush1.bf16.msra.mxu0 0
    %1788 = vmatprep.subr.bf16.mxu0 0
    %1789 = vmatpush1.bf16.msra.mxu0 %v1173
    %1790 = vmatprep.subr.bf16.mxu0 0
    %1791 = vmatpush1.bf16.msra.mxu0 %v1172
    %1792 = vmatprep.subr.bf16.mxu0 0
    %1793 = vmatpush2.bf16.msra.mxu0 0
    %1794 = vmatprep.subr.bf16.mxu0 0
    %1795 = vmatpush2.bf16.msra.mxu0 0
    %1796 = vmatprep.subr.bf16.mxu0 0
    %1797 = vmatpush2.bf16.msra.mxu0 0
    %1798 = vmatprep.subr.bf16.mxu0 0
    %1799 = vmatpush2.bf16.msra.mxu0 0
    %1800 = vmatprep.subr.bf16.mxu0 0
    %1801 = vmatpush2.bf16.msra.mxu0 0
    %1802 = vmatprep.subr.bf16.mxu0 0
    %1803 = vmatpush2.bf16.msra.mxu0 0
    %1804 = vmatprep.subr.bf16.mxu0 0
    %1805 = vmatpush2.bf16.msra.mxu0 0
    %1806 = vmatprep.subr.bf16.mxu0 0
    %1807 = vmatpush2.bf16.msra.mxu0 0
    %1808 = vmatprep.mubr.bf16.mxu0 0
    %1809 = vmatmul.mubr.bf16.gmra.mxu0 %v1774
    %v1810 = vpop.f32.mrf.mxu0
    %v1811 = vadd.f32 0.0, %v1810
    %v1812 = vpop.f32.mrf.mxu0
    %v1813 = vpop.f32.mrf.mxu0
    %v1814 = vpop.f32.mrf.mxu0
    %1815 = vdwg.mxu0
    %v1817 = vrot.slane %v1811, 1
    %v1820 = vadd.f32 %v1760, %v1811
    %v1821 = vadd.f32 %v1761, %v1817
    %v1822 = vxor.u32 %v1820, 2147483648
    %v1823 = vxor.u32 %v1821, 2147483648
    %v1824 = vmul.f32 %v1822, 1.442695
    %v1825 = vpow.pop %v1824
    %v1826 = vmul.f32 %v1823, 1.442695
    %v1827 = vpow.pop %v1826
    %v1828 = vadd.f32 %v1825, 1.0
    %v1829 = vadd.f32 %v1827, 1.0
    %v1830 = vrcp.pop %v1828
    %v1831 = vmul.f32 1.0, %v1830
    %v1832 = vrcp.pop %v1829
    %v1833 = vmul.f32 1.0, %v1832
    %v1834 = vtanh.pop %v1820
    %v1835 = vtanh.pop %v1821
    %v1836 = vmul.f32 %v1831, %v1736
    %v1837 = vmul.f32 %v1833, %v1737
    %1840 = vrot.lane.b32.xlu0 %v1834, 64
    %v1841 = vpop.permute.xlu0 %1840
    %1842 = vrot.lane.b32.xlu0 %v1835, 64
    %v1843 = vpop.permute.xlu0 %1842
    %v1846 = vmul.f32 %v1831, %v1841
    %v1847 = vmul.f32 %v1833, %v1843
    %1850 = vrot.lane.b32.xlu0 %v1846, 32
    %v1851 = vpop.permute.xlu0 %1850
    %1852 = vrot.lane.b32.xlu0 %v1847, 32
    %v1853 = vpop.permute.xlu0 %1852
    %v1856 = vadd.f32 %v1836, %v1851
    %v1857 = vadd.f32 %v1837, %v1853
    %v1858 = vtanh.pop %v1856
    %v1859 = vtanh.pop %v1857
    %1862 = vrot.lane.b32.xlu0 %v1858, 64
    %v1863 = vpop.permute.xlu0 %1862
    %1864 = vrot.lane.b32.xlu0 %v1859, 64
    %v1865 = vpop.permute.xlu0 %1864
    %v1868 = vmul.f32 %v1831, %v1863
    %v1869 = vmul.f32 %v1833, %v1865
    %1872 = vrot.lane.b32.xlu0 %v1868, 32
    %v1873 = vpop.permute.xlu0 %1872
    %1874 = vrot.lane.b32.xlu0 %v1869, 32
    %v1875 = vpop.permute.xlu0 %1874
    %1878 = vst.msk [vmem:[#allocation2 + $0x5] sm:$0x1] %vm223, %v1873
    %1879 = vst.msk [vmem:[#allocation2 + $0xd] sm:$0x1] %vm223, %v1875
    %v1880 = vld [vmem:[#allocation3 + $0x6] sm:$0x1]
    %v1881 = vld [vmem:[#allocation3 + $0xe] sm:$0x1]
    %v1882 = vpack.c.bf16 %v1868, %v1868
    %v1883 = vpack.c.bf16 %v1869, %v1869
    %v1886 = vunpack.c.l.b16 %v1882
    %v1887 = vunpack.c.l.b16 %v1883
    %v1888 = vrot.slane %v1887, 7
    %v1889 = vsel %vm235, %v1888, %v1886
    %v1890 = vpack.c.b16 %v1889, %v1889
    %1891 = vrot.lane.b32.xlu0 %v1890, 32
    %v1892 = vpop.permute.xlu0 %1891
    %v1894 = vsel %vm117, %v1892, 0
    %1896 = vmatprep.subr.bf16.mxu0 0
    %1897 = vmatpush1.bf16.msra.mxu0 0
    %1898 = vmatprep.subr.bf16.mxu0 0
    %1899 = vmatpush1.bf16.msra.mxu0 0
    %1900 = vmatprep.subr.bf16.mxu0 0
    %1901 = vmatpush1.bf16.msra.mxu0 0
    %1902 = vmatprep.subr.bf16.mxu0 0
    %1903 = vmatpush1.bf16.msra.mxu0 0
    %1904 = vmatprep.subr.bf16.mxu0 0
    %1905 = vmatpush1.bf16.msra.mxu0 0
    %1906 = vmatprep.subr.bf16.mxu0 0
    %1907 = vmatpush1.bf16.msra.mxu0 0
    %1908 = vmatprep.subr.bf16.mxu0 0
    %1909 = vmatpush1.bf16.msra.mxu0 %v1173
    %1910 = vmatprep.subr.bf16.mxu0 0
    %1911 = vmatpush1.bf16.msra.mxu0 %v1172
    %1912 = vmatprep.subr.bf16.mxu0 0
    %1913 = vmatpush2.bf16.msra.mxu0 0
    %1914 = vmatprep.subr.bf16.mxu0 0
    %1915 = vmatpush2.bf16.msra.mxu0 0
    %1916 = vmatprep.subr.bf16.mxu0 0
    %1917 = vmatpush2.bf16.msra.mxu0 0
    %1918 = vmatprep.subr.bf16.mxu0 0
    %1919 = vmatpush2.bf16.msra.mxu0 0
    %1920 = vmatprep.subr.bf16.mxu0 0
    %1921 = vmatpush2.bf16.msra.mxu0 0
    %1922 = vmatprep.subr.bf16.mxu0 0
    %1923 = vmatpush2.bf16.msra.mxu0 0
    %1924 = vmatprep.subr.bf16.mxu0 0
    %1925 = vmatpush2.bf16.msra.mxu0 0
    %1926 = vmatprep.subr.bf16.mxu0 0
    %1927 = vmatpush2.bf16.msra.mxu0 0
    %1928 = vmatprep.mubr.bf16.mxu0 0
    %1929 = vmatmul.mubr.bf16.gmra.mxu0 %v1894
    %v1930 = vpop.f32.mrf.mxu0
    %v1931 = vadd.f32 0.0, %v1930
    %v1932 = vpop.f32.mrf.mxu0
    %v1933 = vpop.f32.mrf.mxu0
    %v1934 = vpop.f32.mrf.mxu0
    %1935 = vdwg.mxu0
    %v1937 = vrot.slane %v1931, 1
    %v1940 = vadd.f32 %v1880, %v1931
    %v1941 = vadd.f32 %v1881, %v1937
    %v1942 = vxor.u32 %v1940, 2147483648
    %v1943 = vxor.u32 %v1941, 2147483648
    %v1944 = vmul.f32 %v1942, 1.442695
    %v1945 = vpow.pop %v1944
    %v1946 = vmul.f32 %v1943, 1.442695
    %v1947 = vpow.pop %v1946
    %v1948 = vadd.f32 %v1945, 1.0
    %v1949 = vadd.f32 %v1947, 1.0
    %v1950 = vrcp.pop %v1948
    %v1951 = vmul.f32 1.0, %v1950
    %v1952 = vrcp.pop %v1949
    %v1953 = vmul.f32 1.0, %v1952
    %v1954 = vtanh.pop %v1940
    %v1955 = vtanh.pop %v1941
    %v1956 = vmul.f32 %v1951, %v1856
    %v1957 = vmul.f32 %v1953, %v1857
    %1960 = vrot.lane.b32.xlu0 %v1954, 64
    %v1961 = vpop.permute.xlu0 %1960
    %1962 = vrot.lane.b32.xlu0 %v1955, 64
    %v1963 = vpop.permute.xlu0 %1962
    %v1966 = vmul.f32 %v1951, %v1961
    %v1967 = vmul.f32 %v1953, %v1963
    %1970 = vrot.lane.b32.xlu0 %v1966, 32
    %v1971 = vpop.permute.xlu0 %1970
    %1972 = vrot.lane.b32.xlu0 %v1967, 32
    %v1973 = vpop.permute.xlu0 %1972
    %v1976 = vadd.f32 %v1956, %v1971
    %v1977 = vadd.f32 %v1957, %v1973
    %v1978 = vtanh.pop %v1976
    %v1979 = vtanh.pop %v1977
    %1982 = vrot.lane.b32.xlu0 %v1978, 64
    %v1983 = vpop.permute.xlu0 %1982
    %1984 = vrot.lane.b32.xlu0 %v1979, 64
    %v1985 = vpop.permute.xlu0 %1984
    %v1988 = vmul.f32 %v1951, %v1983
    %v1989 = vmul.f32 %v1953, %v1985
    %1992 = vrot.lane.b32.xlu0 %v1988, 32
    %v1993 = vpop.permute.xlu0 %1992
    %1994 = vrot.lane.b32.xlu0 %v1989, 32
    %v1995 = vpop.permute.xlu0 %1994
    %1998 = vst.msk [vmem:[#allocation2 + $0x6] sm:$0x1] %vm223, %v1993
    %1999 = vst.msk [vmem:[#allocation2 + $0xe] sm:$0x1] %vm223, %v1995
    %v2000 = vld [vmem:[#allocation3 + $0x7] sm:$0x1]
    %v2001 = vld [vmem:[#allocation3 + $0xf] sm:$0x1]
    %v2002 = vpack.c.bf16 %v1988, %v1988
    %v2003 = vpack.c.bf16 %v1989, %v1989
    %v2006 = vunpack.c.l.b16 %v2002
    %v2007 = vunpack.c.l.b16 %v2003
    %v2008 = vrot.slane %v2007, 7
    %v2009 = vsel %vm235, %v2008, %v2006
    %v2010 = vpack.c.b16 %v2009, %v2009
    %2011 = vrot.lane.b32.xlu0 %v2010, 32
    %v2012 = vpop.permute.xlu0 %2011
    %v2014 = vsel %vm117, %v2012, 0
    %2016 = vmatprep.subr.bf16.mxu0 0
    %2017 = vmatpush1.bf16.msra.mxu0 0
    %2018 = vmatprep.subr.bf16.mxu0 0
    %2019 = vmatpush1.bf16.msra.mxu0 0
    %2020 = vmatprep.subr.bf16.mxu0 0
    %2021 = vmatpush1.bf16.msra.mxu0 0
    %2022 = vmatprep.subr.bf16.mxu0 0
    %2023 = vmatpush1.bf16.msra.mxu0 0
    %2024 = vmatprep.subr.bf16.mxu0 0
    %2025 = vmatpush1.bf16.msra.mxu0 0
    %2026 = vmatprep.subr.bf16.mxu0 0
    %2027 = vmatpush1.bf16.msra.mxu0 0
    %2028 = vmatprep.subr.bf16.mxu0 0
    %2029 = vmatpush1.bf16.msra.mxu0 %v1173
    %2030 = vmatprep.subr.bf16.mxu0 0
    %2031 = vmatpush1.bf16.msra.mxu0 %v1172
    %2032 = vmatprep.subr.bf16.mxu0 0
    %2033 = vmatpush2.bf16.msra.mxu0 0
    %2034 = vmatprep.subr.bf16.mxu0 0
    %2035 = vmatpush2.bf16.msra.mxu0 0
    %2036 = vmatprep.subr.bf16.mxu0 0
    %2037 = vmatpush2.bf16.msra.mxu0 0
    %2038 = vmatprep.subr.bf16.mxu0 0
    %2039 = vmatpush2.bf16.msra.mxu0 0
    %2040 = vmatprep.subr.bf16.mxu0 0
    %2041 = vmatpush2.bf16.msra.mxu0 0
    %2042 = vmatprep.subr.bf16.mxu0 0
    %2043 = vmatpush2.bf16.msra.mxu0 0
    %2044 = vmatprep.subr.bf16.mxu0 0
    %2045 = vmatpush2.bf16.msra.mxu0 0
    %2046 = vmatprep.subr.bf16.mxu0 0
    %2047 = vmatpush2.bf16.msra.mxu0 0
    %2048 = vmatprep.mubr.bf16.mxu0 0
    %2049 = vmatmul.mubr.bf16.gmra.mxu0 %v2014
    %v2050 = vpop.f32.mrf.mxu0
    %v2051 = vadd.f32 0.0, %v2050
    %v2052 = vpop.f32.mrf.mxu0
    %v2053 = vpop.f32.mrf.mxu0
    %v2054 = vpop.f32.mrf.mxu0
    %2055 = vdwg.mxu0
    %v2057 = vrot.slane %v2051, 1
    %v2060 = vadd.f32 %v2000, %v2051
    %v2061 = vadd.f32 %v2001, %v2057
    %v2062 = vxor.u32 %v2060, 2147483648
    %v2063 = vxor.u32 %v2061, 2147483648
    %v2064 = vmul.f32 %v2062, 1.442695
    %v2065 = vpow.pop %v2064
    %v2066 = vmul.f32 %v2063, 1.442695
    %v2067 = vpow.pop %v2066
    %v2068 = vadd.f32 %v2065, 1.0
    %v2069 = vadd.f32 %v2067, 1.0
    %v2070 = vrcp.pop %v2068
    %v2071 = vmul.f32 1.0, %v2070
    %v2072 = vrcp.pop %v2069
    %v2073 = vmul.f32 1.0, %v2072
    %v2074 = vtanh.pop %v2060
    %v2075 = vtanh.pop %v2061
    %v2076 = vmul.f32 %v2071, %v1976
    %v2077 = vmul.f32 %v2073, %v1977
    %2080 = vrot.lane.b32.xlu0 %v2074, 64
    %v2081 = vpop.permute.xlu0 %2080
    %2082 = vrot.lane.b32.xlu0 %v2075, 64
    %v2083 = vpop.permute.xlu0 %2082
    %v2086 = vmul.f32 %v2071, %v2081
    %v2087 = vmul.f32 %v2073, %v2083
    %2090 = vrot.lane.b32.xlu0 %v2086, 32
    %v2091 = vpop.permute.xlu0 %2090
    %2092 = vrot.lane.b32.xlu0 %v2087, 32
    %v2093 = vpop.permute.xlu0 %2092
    %v2096 = vadd.f32 %v2076, %v2091
    %v2097 = vadd.f32 %v2077, %v2093
    %v2098 = vtanh.pop %v2096
    %v2099 = vtanh.pop %v2097
    %2102 = vrot.lane.b32.xlu0 %v2098, 64
    %v2103 = vpop.permute.xlu0 %2102
    %2104 = vrot.lane.b32.xlu0 %v2099, 64
    %v2105 = vpop.permute.xlu0 %2104
    %v2108 = vmul.f32 %v2071, %v2103
    %v2109 = vmul.f32 %v2073, %v2105
    %2112 = vrot.lane.b32.xlu0 %v2108, 32
    %v2113 = vpop.permute.xlu0 %2112
    %2114 = vrot.lane.b32.xlu0 %v2109, 32
    %v2115 = vpop.permute.xlu0 %2114
    %2118 = vst.msk [vmem:[#allocation2 + $0x7] sm:$0x1] %vm223, %v2113
    %2119 = vst.msk [vmem:[#allocation2 + $0xf] sm:$0x1] %vm223, %v2115
    %v2120 = vrot.slane %v2109, 7
    %v2121 = vsel %vm235, %v2120, %v2108
    %2122 = vrot.lane.b32.xlu0 %v2121, 32
    %v2123 = vpop.permute.xlu0 %2122
    %2125 = vst.msk [vmem:[#allocation11] sm:$0x3] %vm1072, %v2123
    %v2128 = vrot.slane %v2097, 7
    %v2129 = vsel %vm235, %v2128, %v2096
    %2130 = vrot.lane.b32.xlu0 %v2129, 96
    %v2131 = vpop.permute.xlu0 %2130
    %2133 = vst.msk [vmem:[#allocation12] sm:$0x3] %vm1072, %v2131
    %v2134 = vld [vmem:[#allocation2] sm:$0xff]
    %v2135 = vld [vmem:[#allocation2 + $0x8] sm:$0xff]
    %2136 = vst.msk [vmem:[#allocation9] sm:$0xff] %vm117, %v2134
    %2137 = vst.msk [vmem:[#allocation9 + $0x8] sm:$0xff] %vm117, %v2135
    // Predicated region
    $region30: #{global_ae_forward.1} parent=1 // pred_check
      _
    $region31: #{global_ae_forward.1} parent=1 // pred_check_branch
      %2139 = sbr.rel (0) target = $region33
    $region32: #{global_ae_forward.1} parent=1 // pred_region
      %s2141 = ssub.s32 256, 256
      %2142 = vsyncadd [#allocation5], %s2141
      %s2143 = sshll.u32 [#allocation4], 4
      %s2144 = int_to_ptr.vmem [resolvable:$true] %s2143
      %2149 = dma.vmem_to_hbm [thread:$0]  %s2144, 256, %s7, [#allocation5], 128, 128, 8
    $region33: #{global_ae_forward.1} parent=1 // pred_fallthru
      _
    // Predicated region
    $region34: #{global_ae_forward.1} parent=1 // pred_check
      _
    $region35: #{global_ae_forward.1} parent=1 // pred_check_branch
      %2151 = sbr.rel (0) target = $region37
    $region36: #{global_ae_forward.1} parent=1 // pred_region
      %s2153 = ssub.s32 32, 32
      %2154 = vsyncadd [#allocation7], %s2153
      %s2156 = sshll.u32 [#allocation6], 4
      %s2157 = int_to_ptr.vmem [resolvable:$true] %s2156
      %2159 = dma.vmem_to_hbm [thread:$0]  %s2157, 32, %s8, [#allocation7]
    $region37: #{global_ae_forward.1} parent=1 // pred_fallthru
      _
    // Predicated region
    $region38: #{global_ae_forward.1} parent=1 // pred_check
      _
    $region39: #{global_ae_forward.1} parent=1 // pred_check_branch
      %2161 = sbr.rel (0) target = $region41
    $region40: #{global_ae_forward.1} parent=1 // pred_region
      %s2163 = ssub.s32 32, 32
      %2164 = vsyncadd [#allocation7], %s2163
      %s2166 = sshll.u32 [#allocation8], 4
      %s2167 = int_to_ptr.vmem [resolvable:$true] %s2166
      %2169 = dma.vmem_to_hbm [thread:$0]  %s2167, 32, %s9, [#allocation7]
    $region41: #{global_ae_forward.1} parent=1 // pred_fallthru
      _
    // Predicated region
    $region42: #{global_ae_forward.1} parent=1 // pred_check
      _
    $region43: #{global_ae_forward.1} parent=1 // pred_check_branch
      %2171 = sbr.rel (0) target = $region45
    $region44: #{global_ae_forward.1} parent=1 // pred_region
      %s2173 = ssub.s32 256, 256
      %2174 = vsyncadd [#allocation10], %s2173
      %s2175 = sshll.u32 [#allocation9], 4
      %s2176 = int_to_ptr.vmem [resolvable:$true] %s2175
      %2181 = dma.vmem_to_hbm [thread:$0]  %s2176, 256, %s10, [#allocation10], 128, 128, 8
    $region45: #{global_ae_forward.1} parent=1 // pred_fallthru
      _
    // Predicated region
    $region46: #{global_ae_forward.1} parent=1 // pred_check
      _
    $region47: #{global_ae_forward.1} parent=1 // pred_check_branch
      %2183 = sbr.rel (0) target = $region49
    $region48: #{global_ae_forward.1} parent=1 // pred_region
      %s2185 = ssub.s32 32, 32
      %2186 = vsyncadd [#allocation10], %s2185
      %s2188 = sshll.u32 [#allocation11], 4
      %s2189 = int_to_ptr.vmem [resolvable:$true] %s2188
      %2191 = dma.vmem_to_hbm [thread:$0]  %s2189, 32, %s11, [#allocation10]
    $region49: #{global_ae_forward.1} parent=1 // pred_fallthru
      _
    // Predicated region
    $region50: #{global_ae_forward.1} parent=1 // pred_check
      _
    $region51: #{global_ae_forward.1} parent=1 // pred_check_branch
      %2193 = sbr.rel (0) target = $region53
    $region52: #{global_ae_forward.1} parent=1 // pred_region
      %s2195 = ssub.s32 32, 32
      %2196 = vsyncadd [#allocation13], %s2195
      %s2198 = sshll.u32 [#allocation12], 4
      %s2199 = int_to_ptr.vmem [resolvable:$true] %s2198
      %2201 = dma.vmem_to_hbm [thread:$0]  %s2199, 32, %s12, [#allocation13]
    $region53: #{global_ae_forward.1} parent=1 // pred_fallthru
      _
    // Predicated region
    $region54: #{global_ae_forward.1} parent=1 // pred_check
      _
    $region55: #{global_ae_forward.1} parent=1 // pred_check_branch
      %2203 = sbr.rel (0) target = $region57
    $region56: #{global_ae_forward.1} parent=1 // pred_region
      %2204 = dma.done [#allocation5], 256
    $region57: #{global_ae_forward.1} parent=1 // pred_fallthru
      _
    // Predicated region
    $region58: #{global_ae_forward.1} parent=1 // pred_check
      _
    $region59: #{global_ae_forward.1} parent=1 // pred_check_branch
      %2206 = sbr.rel (0) target = $region61
    $region60: #{global_ae_forward.1} parent=1 // pred_region
      %2207 = dma.done [#allocation7], 32
    $region61: #{global_ae_forward.1} parent=1 // pred_fallthru
      _
    // Predicated region
    $region62: #{global_ae_forward.1} parent=1 // pred_check
      _
    $region63: #{global_ae_forward.1} parent=1 // pred_check_branch
      %2209 = sbr.rel (0) target = $region65
    $region64: #{global_ae_forward.1} parent=1 // pred_region
      %2210 = dma.done [#allocation7], 32
    $region65: #{global_ae_forward.1} parent=1 // pred_fallthru
      _
    // Predicated region
    $region66: #{global_ae_forward.1} parent=1 // pred_check
      _
    $region67: #{global_ae_forward.1} parent=1 // pred_check_branch
      %2212 = sbr.rel (0) target = $region69
    $region68: #{global_ae_forward.1} parent=1 // pred_region
      %2213 = dma.done [#allocation10], 256
    $region69: #{global_ae_forward.1} parent=1 // pred_fallthru
      _
    // Predicated region
    $region70: #{global_ae_forward.1} parent=1 // pred_check
      _
    $region71: #{global_ae_forward.1} parent=1 // pred_check_branch
      %2215 = sbr.rel (0) target = $region73
    $region72: #{global_ae_forward.1} parent=1 // pred_region
      %2216 = dma.done [#allocation10], 32
    $region73: #{global_ae_forward.1} parent=1 // pred_fallthru
      _
    // Predicated region
    $region74: #{global_ae_forward.1} parent=1 // pred_check
      _
    $region75: #{global_ae_forward.1} parent=1 // pred_check_branch
      %2218 = sbr.rel (0) target = $region77
    $region76: #{global_ae_forward.1} parent=1 // pred_region
      %2219 = dma.done [#allocation13], 32
    $region77: #{global_ae_forward.1} parent=1 // pred_fallthru
      _
    %2220 = vsyncpa [#allocation5], 1
    %2221 = vsyncpa [#allocation7], 1
    %2222 = vsyncpa [#allocation10], 1
    %2223 = vsyncpa [#allocation13], 1

</llo_original>
